<compile_context>
chip_gen: v7x
topology: tpu7x:2x2x1
jax: 0.10.0
libtpu: 0.0.40
codegen_flags: <defaults>
</compile_context>

<pallas_src>
import functools

import jax
import jax.numpy as jnp
from jax.experimental import pallas as pl
from jax.experimental.pallas import tpu as pltpu


# ------------------------------ shared math -------------------------------- #

def _layernorm(x, gamma, beta, eps=1e-5):
    mu = jnp.mean(x, axis=-1, keepdims=True)
    var = jnp.mean((x - mu) ** 2, axis=-1, keepdims=True)
    return (x - mu) * jax.lax.rsqrt(var + eps) * gamma + beta


def _softmax(x, *, approx_recip=False):
    m = jnp.max(x, axis=-1, keepdims=True)
    e = jnp.exp(x - m)
    s = jnp.sum(e, axis=-1, keepdims=True)
    if approx_recip:
        # EUP reciprocal: frees the VPU divide slot (only valid inside kernels).
        return e * pl.reciprocal(s, approx=True)
    return e / s


def _attn_heads(q, k, v, num_heads, *, approx_recip):
    """Scaled dot-product attention with heads as static lane slices.

    q: (Sq, H), k/v: (Sk, H)  ->  (Sq, H).  No 3-D transposes / reshapes.
    """
    H = q.shape[-1]
    hd = H // num_heads
    scale = hd ** -0.5
    ctx = []
    for h in range(num_heads):
        lo, hi = h * hd, (h + 1) * hd
        qh, kh, vh = q[:, lo:hi], k[:, lo:hi], v[:, lo:hi]
        s = jnp.einsum('qd,kd->qk', qh, kh,
                       preferred_element_type=jnp.float32) * scale
        a = _softmax(s, approx_recip=approx_recip)
        ctx.append(jnp.dot(a, vh, preferred_element_type=jnp.float32))
    return jnp.concatenate(ctx, axis=-1)


KERNEL_PARAM_NAMES = [
    'w_lin', 'b_lin',
    'sa_wq', 'sa_wk', 'sa_wv', 'sa_bq', 'sa_bk', 'sa_bv', 'sa_wout', 'sa_bout',
    'n1_g', 'n1_b',
    'ff1_w', 'ff1_b', 'ff2_w', 'ff2_b',
    'n2_g', 'n2_b',
    'ca_wq', 'ca_wk', 'ca_wv', 'ca_bq', 'ca_bk', 'ca_bv', 'ca_wout', 'ca_bout',
]


# ------------------------------ Pallas kernel ------------------------------ #

def encoder_pca_kernel(x_ref, we_ref, *rest, batch, seq_len, num_heads):
    n_p = len(KERNEL_PARAM_NAMES)
    p = {name: r[...] for name, r in zip(KERNEL_PARAM_NAMES, rest[:n_p])}
    out_ref = rest[n_p]

    x2d = x_ref[...]          # (B*S, Din) -- whole batch, flattened
    we = we_ref[...]          # (T, H) word embedding (shared across batch)

    # input linear ---------------------------------------------------------- #
    h = jnp.dot(x2d, p['w_lin'], preferred_element_type=jnp.float32) + p['b_lin']

    # self-attention: projections for the whole batch at once, attention per
    # batch element (must not mix rows across the batch boundary). ----------- #
    q = jnp.dot(h, p['sa_wq'], preferred_element_type=jnp.float32) + p['sa_bq']
    k = jnp.dot(h, p['sa_wk'], preferred_element_type=jnp.float32) + p['sa_bk']
    v = jnp.dot(h, p['sa_wv'], preferred_element_type=jnp.float32) + p['sa_bv']
    sa_ctx = []
    for b in range(batch):                      # static unroll (small B)
        rows = slice(b * seq_len, (b + 1) * seq_len)
        sa_ctx.append(_attn_heads(q[rows], k[rows], v[rows], num_heads,
                                  approx_recip=True))
    sa = jnp.concatenate(sa_ctx, axis=0)        # (B*S, H)
    sa = (jnp.dot(sa, p['sa_wout'], preferred_element_type=jnp.float32)
          + p['sa_bout'])

    # post-norm TransformerEncoderLayer (eval mode: dropout = identity) ------ #
    h = _layernorm(h + sa, p['n1_g'], p['n1_b'])
    ff = jnp.maximum(
        jnp.dot(h, p['ff1_w'], preferred_element_type=jnp.float32) + p['ff1_b'],
        0.0)
    ff = jnp.dot(ff, p['ff2_w'], preferred_element_type=jnp.float32) + p['ff2_b']
    x_time = _layernorm(h + ff, p['n2_g'], p['n2_b'])

    # cross-attention: queries from encoded x, K/V from the word embedding.
    # K/V are identical for every batch element -> projected exactly once; no
    # mask, so all B*S query rows attend jointly. ---------------------------- #
    cq = (jnp.dot(x_time, p['ca_wq'], preferred_element_type=jnp.float32)
          + p['ca_bq'])
    ck = jnp.dot(we, p['ca_wk'], preferred_element_type=jnp.float32) + p['ca_bk']
    cv = jnp.dot(we, p['ca_wv'], preferred_element_type=jnp.float32) + p['ca_bv']
    ca = _attn_heads(cq, ck, cv, num_heads, approx_recip=True)
    x_out = (jnp.dot(ca, p['ca_wout'], preferred_element_type=jnp.float32)
             + p['ca_bout'])

    # single lane-dense (B*S, 2H) store: [x_time | x_out] -------------------- #
    out_ref[...] = jnp.concatenate([x_time, x_out], axis=-1).astype(out_ref.dtype)


# --------------------------------- wrapper ---------------------------------- #

def encoder_pca_forward(x, word_embedding_HT, params, *, num_heads):
    """x: (B, S, Din) f32; word_embedding_HT: (H, T) (pre-.T, as in __init__)."""
    B, S, Din = x.shape
    we = word_embedding_HT.T                         # (T, H)
    T, H = we.shape

    # Pre-split the packed [q|k|v] in-projection weights/biases in XLA (free),
    # so the kernel never slices at non-128-aligned lane offsets.
    kp = dict(
        w_lin=params['w_lin'], b_lin=params['b_lin'],
        sa_wq=params['sa_win'][:, 0:H],
        sa_wk=params['sa_win'][:, H:2 * H],
        sa_wv=params['sa_win'][:, 2 * H:3 * H],
        sa_bq=params['sa_bin'][:, 0:H],
        sa_bk=params['sa_bin'][:, H:2 * H],
        sa_bv=params['sa_bin'][:, 2 * H:3 * H],
        sa_wout=params['sa_wout'], sa_bout=params['sa_bout'],
        n1_g=params['n1_g'], n1_b=params['n1_b'],
        ff1_w=params['ff1_w'], ff1_b=params['ff1_b'],
        ff2_w=params['ff2_w'], ff2_b=params['ff2_b'],
        n2_g=params['n2_g'], n2_b=params['n2_b'],
        ca_wq=params['ca_win'][:, 0:H],
        ca_wk=params['ca_win'][:, H:2 * H],
        ca_wv=params['ca_win'][:, 2 * H:3 * H],
        ca_bq=params['ca_bin'][:, 0:H],
        ca_bk=params['ca_bin'][:, H:2 * H],
        ca_bv=params['ca_bin'][:, 2 * H:3 * H],
        ca_wout=params['ca_wout'], ca_bout=params['ca_bout'],
    )
    param_list = [kp[name] for name in KERNEL_PARAM_NAMES]

    x2d = x.reshape(B * S, Din)                      # whole batch, one block

    in_specs = [
        pl.BlockSpec((B * S, Din), lambda i: (0, 0)),
        pl.BlockSpec((T, H), lambda i: (0, 0)),
    ] + [
        pl.BlockSpec(w.shape, lambda i: (0, 0)) for w in param_list
    ]

    out_shape = jax.ShapeDtypeStruct((B * S, 2 * H), jnp.float32)
    out_specs = pl.BlockSpec((B * S, 2 * H), lambda i: (0, 0))

    kernel = functools.partial(
        encoder_pca_kernel, batch=B, seq_len=S, num_heads=num_heads)

    out2d = pl.pallas_call(
        kernel,
        out_shape=out_shape,
        grid=(1,),                                   # grid collapsed
        in_specs=in_specs,
        out_specs=out_specs,
        compiler_params=pltpu.CompilerParams(
            dimension_semantics=("arbitrary",)),
    )(x2d, we, *param_list)

    out = out2d.reshape(B, S, 2 * H)
    return out[..., :H], out[..., H:]                # (x_time, x)


# ------------------------- pure-JAX reference (check) ----------------------- #

def _ref_mha(q_in, k_in, v_in, w_in, b_in, w_out, b_out, num_heads):
    H = q_in.shape[-1]
    hd = H // num_heads
    wq, wk, wv = w_in[:, 0:H], w_in[:, H:2 * H], w_in[:, 2 * H:3 * H]
    bq, bk, bv = b_in[0, 0:H], b_in[0, H:2 * H], b_in[0, 2 * H:3 * H]
    q = q_in @ wq + bq
    k = k_in @ wk + bk
    v = v_in @ wv + bv
    Sq, Sk = q_in.shape[0], k_in.shape[0]
    qh = q.reshape(Sq, num_heads, hd).transpose(1, 0, 2)
    kh = k.reshape(Sk, num_heads, hd).transpose(1, 0, 2)
    vh = v.reshape(Sk, num_heads, hd).transpose(1, 0, 2)
    s = jnp.einsum('hqd,hkd->hqk', qh, kh) / jnp.sqrt(jnp.float32(hd))
    a = jax.nn.softmax(s, axis=-1)
    ctx = jnp.einsum('hqk,hkd->hqd', a, vh).transpose(1, 0, 2).reshape(Sq, H)
    return ctx @ w_out + b_out[0]


def _ref_forward_single(x, we, p, num_heads):
    h = x @ p['w_lin'] + p['b_lin'][0]
    sa = _ref_mha(h, h, h, p['sa_win'], p['sa_bin'], p['sa_wout'], p['sa_bout'],
                  num_heads)
    h = _layernorm(h + sa, p['n1_g'][0], p['n1_b'][0])
    ff = jnp.maximum(h @ p['ff1_w'] + p['ff1_b'][0], 0.0)
    ff = ff @ p['ff2_w'] + p['ff2_b'][0]
    h = _layernorm(h + ff, p['n2_g'][0], p['n2_b'][0])
    ca = _ref_mha(h, we, we, p['ca_win'], p['ca_bin'], p['ca_wout'],
                  p['ca_bout'], num_heads)
    return h, ca


# ------------------------------ parameter init ------------------------------ #

def make_params(key, input_dim, hidden_dim, ffn_dim):
    ks = jax.random.split(key, 16)
    s = 0.1
    f32 = jnp.float32
    return {
        'w_lin':  s * jax.random.normal(ks[0], (input_dim, hidden_dim), f32),
        'b_lin':  s * jax.random.normal(ks[1], (1, hidden_dim), f32),
        'sa_win': s * jax.random.normal(ks[2], (hidden_dim, 3 * hidden_dim), f32),
        'sa_bin': s * jax.random.normal(ks[3], (1, 3 * hidden_dim), f32),
        'sa_wout': s * jax.random.normal(ks[4], (hidden_dim, hidden_dim), f32),
        'sa_bout': s * jax.random.normal(ks[5], (1, hidden_dim), f32),
        'n1_g': jnp.ones((1, hidden_dim), f32),
        'n1_b': jnp.zeros((1, hidden_dim), f32),
        'ff1_w': s * jax.random.normal(ks[6], (hidden_dim, ffn_dim), f32),
        'ff1_b': s * jax.random.normal(ks[7], (1, ffn_dim), f32),
        'ff2_w': s * jax.random.normal(ks[8], (ffn_dim, hidden_dim), f32),
        'ff2_b': s * jax.random.normal(ks[9], (1, hidden_dim), f32),
        'n2_g': jnp.ones((1, hidden_dim), f32),
        'n2_b': jnp.zeros((1, hidden_dim), f32),
        'ca_win': s * jax.random.normal(ks[10], (hidden_dim, 3 * hidden_dim), f32),
        'ca_bin': s * jax.random.normal(ks[11], (1, 3 * hidden_dim), f32),
        'ca_wout': s * jax.random.normal(ks[12], (hidden_dim, hidden_dim), f32),
        'ca_bout': s * jax.random.normal(ks[13], (1, hidden_dim), f32),
    }


# --------------------------------- main ------------------------------------- #

if __name__ == "__main__":
    B, S, INPUT_DIM = 2, 8, 16          # x: (B, S, input_dim)
    HIDDEN, NUM_HEADS = 32, 4           # hidden_dim, nhead (head_dim = 8)
    FFN_DIM = 64                        # TransformerEncoderLayer dim_feedforward
    T = 16                              # number of word-embedding tokens

    key = jax.random.PRNGKey(0)
    k_x, k_we, k_p = jax.random.split(key, 3)

    x = jax.random.normal(k_x, (B, S, INPUT_DIM), jnp.float32)
    # As in the PyTorch __init__, the word embedding is passed as (H, T) and .T'd.
    word_embedding_HT = 0.1 * jax.random.normal(k_we, (HIDDEN, T), jnp.float32)
    params = make_params(k_p, INPUT_DIM, HIDDEN, FFN_DIM)

    x_time, x_out = encoder_pca_forward(
        x, word_embedding_HT, params, num_heads=NUM_HEADS)
    jax.block_until_ready((x_time, x_out))

    # Independent pure-JAX reference (different head-split / softmax path).
    we = word_embedding_HT.T
    ref_time, ref_out = jax.vmap(
        lambda xb: _ref_forward_single(xb, we, params, NUM_HEADS))(x)

    assert x_time.shape == (B, S, HIDDEN) and x_out.shape == (B, S, HIDDEN)
    assert jnp.allclose(x_time, ref_time, atol=2e-2, rtol=2e-2)
    assert jnp.allclose(x_out, ref_out, atol=2e-2, rtol=2e-2)

    print("KERNEL_OK")
</pallas_src>

<mosaic_0001>
module attributes {stable_mosaic.version = 11 : i64} {
  func.func @encoder_pca_kernel(%arg0: i32, %arg1: memref<16x16xf32, #tpu.memory_space<vmem>>, %arg2: memref<16x32xf32, #tpu.memory_space<vmem>>, %arg3: memref<16x32xf32, #tpu.memory_space<vmem>>, %arg4: memref<1x32xf32, #tpu.memory_space<vmem>>, %arg5: memref<32x32xf32, #tpu.memory_space<vmem>>, %arg6: memref<32x32xf32, #tpu.memory_space<vmem>>, %arg7: memref<32x32xf32, #tpu.memory_space<vmem>>, %arg8: memref<1x32xf32, #tpu.memory_space<vmem>>, %arg9: memref<1x32xf32, #tpu.memory_space<vmem>>, %arg10: memref<1x32xf32, #tpu.memory_space<vmem>>, %arg11: memref<32x32xf32, #tpu.memory_space<vmem>>, %arg12: memref<1x32xf32, #tpu.memory_space<vmem>>, %arg13: memref<1x32xf32, #tpu.memory_space<vmem>>, %arg14: memref<1x32xf32, #tpu.memory_space<vmem>>, %arg15: memref<32x64xf32, #tpu.memory_space<vmem>>, %arg16: memref<1x64xf32, #tpu.memory_space<vmem>>, %arg17: memref<64x32xf32, #tpu.memory_space<vmem>>, %arg18: memref<1x32xf32, #tpu.memory_space<vmem>>, %arg19: memref<1x32xf32, #tpu.memory_space<vmem>>, %arg20: memref<1x32xf32, #tpu.memory_space<vmem>>, %arg21: memref<32x32xf32, #tpu.memory_space<vmem>>, %arg22: memref<32x32xf32, #tpu.memory_space<vmem>>, %arg23: memref<32x32xf32, #tpu.memory_space<vmem>>, %arg24: memref<1x32xf32, #tpu.memory_space<vmem>>, %arg25: memref<1x32xf32, #tpu.memory_space<vmem>>, %arg26: memref<1x32xf32, #tpu.memory_space<vmem>>, %arg27: memref<32x32xf32, #tpu.memory_space<vmem>>, %arg28: memref<1x32xf32, #tpu.memory_space<vmem>>, %arg29: memref<16x64xf32, #tpu.memory_space<vmem>>) attributes {dimension_semantics = [#tpu.dimension_semantics<arbitrary>], iteration_bounds = array<i64: 1>, scalar_prefetch = 0 : i64, scratch_operands = 0 : i64, tpu.core_type = #tpu.core_type<tc>, window_params = [{pipeline_mode = #tpu.pipeline_mode<synchronous>, transform_indices = @transform_0, window_bounds = array<i64: 16, 16>}, {pipeline_mode = #tpu.pipeline_mode<synchronous>, transform_indices = @transform_1, window_bounds = array<i64: 16, 32>}, {pipeline_mode = #tpu.pipeline_mode<synchronous>, transform_indices = @transform_2, window_bounds = array<i64: 16, 32>}, {pipeline_mode = #tpu.pipeline_mode<synchronous>, transform_indices = @transform_3, window_bounds = array<i64: 1, 32>}, {pipeline_mode = #tpu.pipeline_mode<synchronous>, transform_indices = @transform_4, window_bounds = array<i64: 32, 32>}, {pipeline_mode = #tpu.pipeline_mode<synchronous>, transform_indices = @transform_5, window_bounds = array<i64: 32, 32>}, {pipeline_mode = #tpu.pipeline_mode<synchronous>, transform_indices = @transform_6, window_bounds = array<i64: 32, 32>}, {pipeline_mode = #tpu.pipeline_mode<synchronous>, transform_indices = @transform_7, window_bounds = array<i64: 1, 32>}, {pipeline_mode = #tpu.pipeline_mode<synchronous>, transform_indices = @transform_8, window_bounds = array<i64: 1, 32>}, {pipeline_mode = #tpu.pipeline_mode<synchronous>, transform_indices = @transform_9, window_bounds = array<i64: 1, 32>}, {pipeline_mode = #tpu.pipeline_mode<synchronous>, transform_indices = @transform_10, window_bounds = array<i64: 32, 32>}, {pipeline_mode = #tpu.pipeline_mode<synchronous>, transform_indices = @transform_11, window_bounds = array<i64: 1, 32>}, {pipeline_mode = #tpu.pipeline_mode<synchronous>, transform_indices = @transform_12, window_bounds = array<i64: 1, 32>}, {pipeline_mode = #tpu.pipeline_mode<synchronous>, transform_indices = @transform_13, window_bounds = array<i64: 1, 32>}, {pipeline_mode = #tpu.pipeline_mode<synchronous>, transform_indices = @transform_14, window_bounds = array<i64: 32, 64>}, {pipeline_mode = #tpu.pipeline_mode<synchronous>, transform_indices = @transform_15, window_bounds = array<i64: 1, 64>}, {pipeline_mode = #tpu.pipeline_mode<synchronous>, transform_indices = @transform_16, window_bounds = array<i64: 64, 32>}, {pipeline_mode = #tpu.pipeline_mode<synchronous>, transform_indices = @transform_17, window_bounds = array<i64: 1, 32>}, {pipeline_mode = #tpu.pipeline_mode<synchronous>, transform_indices = @transform_18, window_bounds = array<i64: 1, 32>}, {pipeline_mode = #tpu.pipeline_mode<synchronous>, transform_indices = @transform_19, window_bounds = array<i64: 1, 32>}, {pipeline_mode = #tpu.pipeline_mode<synchronous>, transform_indices = @transform_20, window_bounds = array<i64: 32, 32>}, {pipeline_mode = #tpu.pipeline_mode<synchronous>, transform_indices = @transform_21, window_bounds = array<i64: 32, 32>}, {pipeline_mode = #tpu.pipeline_mode<synchronous>, transform_indices = @transform_22, window_bounds = array<i64: 32, 32>}, {pipeline_mode = #tpu.pipeline_mode<synchronous>, transform_indices = @transform_23, window_bounds = array<i64: 1, 32>}, {pipeline_mode = #tpu.pipeline_mode<synchronous>, transform_indices = @transform_24, window_bounds = array<i64: 1, 32>}, {pipeline_mode = #tpu.pipeline_mode<synchronous>, transform_indices = @transform_25, window_bounds = array<i64: 1, 32>}, {pipeline_mode = #tpu.pipeline_mode<synchronous>, transform_indices = @transform_26, window_bounds = array<i64: 32, 32>}, {pipeline_mode = #tpu.pipeline_mode<synchronous>, transform_indices = @transform_27, window_bounds = array<i64: 1, 32>}, {pipeline_mode = #tpu.pipeline_mode<synchronous>, transform_indices = @transform_28, window_bounds = array<i64: 16, 64>}]} {
    %c0 = arith.constant 0 : index
    %c0_0 = arith.constant 0 : index
    %0 = vector.load %arg3[%c0, %c0_0] : memref<16x32xf32, #tpu.memory_space<vmem>>, vector<16x32xf32>
    %c0_1 = arith.constant 0 : index
    %c0_2 = arith.constant 0 : index
    %1 = vector.load %arg4[%c0_1, %c0_2] : memref<1x32xf32, #tpu.memory_space<vmem>>, vector<1x32xf32>
    %c0_3 = arith.constant 0 : index
    %c0_4 = arith.constant 0 : index
    %2 = vector.load %arg5[%c0_3, %c0_4] : memref<32x32xf32, #tpu.memory_space<vmem>>, vector<32x32xf32>
    %c0_5 = arith.constant 0 : index
    %c0_6 = arith.constant 0 : index
    %3 = vector.load %arg6[%c0_5, %c0_6] : memref<32x32xf32, #tpu.memory_space<vmem>>, vector<32x32xf32>
    %c0_7 = arith.constant 0 : index
    %c0_8 = arith.constant 0 : index
    %4 = vector.load %arg7[%c0_7, %c0_8] : memref<32x32xf32, #tpu.memory_space<vmem>>, vector<32x32xf32>
    %c0_9 = arith.constant 0 : index
    %c0_10 = arith.constant 0 : index
    %5 = vector.load %arg8[%c0_9, %c0_10] : memref<1x32xf32, #tpu.memory_space<vmem>>, vector<1x32xf32>
    %c0_11 = arith.constant 0 : index
    %c0_12 = arith.constant 0 : index
    %6 = vector.load %arg9[%c0_11, %c0_12] : memref<1x32xf32, #tpu.memory_space<vmem>>, vector<1x32xf32>
    %c0_13 = arith.constant 0 : index
    %c0_14 = arith.constant 0 : index
    %7 = vector.load %arg10[%c0_13, %c0_14] : memref<1x32xf32, #tpu.memory_space<vmem>>, vector<1x32xf32>
    %c0_15 = arith.constant 0 : index
    %c0_16 = arith.constant 0 : index
    %8 = vector.load %arg11[%c0_15, %c0_16] : memref<32x32xf32, #tpu.memory_space<vmem>>, vector<32x32xf32>
    %c0_17 = arith.constant 0 : index
    %c0_18 = arith.constant 0 : index
    %9 = vector.load %arg12[%c0_17, %c0_18] : memref<1x32xf32, #tpu.memory_space<vmem>>, vector<1x32xf32>
    %c0_19 = arith.constant 0 : index
    %c0_20 = arith.constant 0 : index
    %10 = vector.load %arg13[%c0_19, %c0_20] : memref<1x32xf32, #tpu.memory_space<vmem>>, vector<1x32xf32>
    %c0_21 = arith.constant 0 : index
    %c0_22 = arith.constant 0 : index
    %11 = vector.load %arg14[%c0_21, %c0_22] : memref<1x32xf32, #tpu.memory_space<vmem>>, vector<1x32xf32>
    %c0_23 = arith.constant 0 : index
    %c0_24 = arith.constant 0 : index
    %12 = vector.load %arg15[%c0_23, %c0_24] : memref<32x64xf32, #tpu.memory_space<vmem>>, vector<32x64xf32>
    %c0_25 = arith.constant 0 : index
    %c0_26 = arith.constant 0 : index
    %13 = vector.load %arg16[%c0_25, %c0_26] : memref<1x64xf32, #tpu.memory_space<vmem>>, vector<1x64xf32>
    %c0_27 = arith.constant 0 : index
    %c0_28 = arith.constant 0 : index
    %14 = vector.load %arg17[%c0_27, %c0_28] : memref<64x32xf32, #tpu.memory_space<vmem>>, vector<64x32xf32>
    %c0_29 = arith.constant 0 : index
    %c0_30 = arith.constant 0 : index
    %15 = vector.load %arg18[%c0_29, %c0_30] : memref<1x32xf32, #tpu.memory_space<vmem>>, vector<1x32xf32>
    %c0_31 = arith.constant 0 : index
    %c0_32 = arith.constant 0 : index
    %16 = vector.load %arg19[%c0_31, %c0_32] : memref<1x32xf32, #tpu.memory_space<vmem>>, vector<1x32xf32>
    %c0_33 = arith.constant 0 : index
    %c0_34 = arith.constant 0 : index
    %17 = vector.load %arg20[%c0_33, %c0_34] : memref<1x32xf32, #tpu.memory_space<vmem>>, vector<1x32xf32>
    %c0_35 = arith.constant 0 : index
    %c0_36 = arith.constant 0 : index
    %18 = vector.load %arg21[%c0_35, %c0_36] : memref<32x32xf32, #tpu.memory_space<vmem>>, vector<32x32xf32>
    %c0_37 = arith.constant 0 : index
    %c0_38 = arith.constant 0 : index
    %19 = vector.load %arg22[%c0_37, %c0_38] : memref<32x32xf32, #tpu.memory_space<vmem>>, vector<32x32xf32>
    %c0_39 = arith.constant 0 : index
    %c0_40 = arith.constant 0 : index
    %20 = vector.load %arg23[%c0_39, %c0_40] : memref<32x32xf32, #tpu.memory_space<vmem>>, vector<32x32xf32>
    %c0_41 = arith.constant 0 : index
    %c0_42 = arith.constant 0 : index
    %21 = vector.load %arg24[%c0_41, %c0_42] : memref<1x32xf32, #tpu.memory_space<vmem>>, vector<1x32xf32>
    %c0_43 = arith.constant 0 : index
    %c0_44 = arith.constant 0 : index
    %22 = vector.load %arg25[%c0_43, %c0_44] : memref<1x32xf32, #tpu.memory_space<vmem>>, vector<1x32xf32>
    %c0_45 = arith.constant 0 : index
    %c0_46 = arith.constant 0 : index
    %23 = vector.load %arg26[%c0_45, %c0_46] : memref<1x32xf32, #tpu.memory_space<vmem>>, vector<1x32xf32>
    %c0_47 = arith.constant 0 : index
    %c0_48 = arith.constant 0 : index
    %24 = vector.load %arg27[%c0_47, %c0_48] : memref<32x32xf32, #tpu.memory_space<vmem>>, vector<32x32xf32>
    %c0_49 = arith.constant 0 : index
    %c0_50 = arith.constant 0 : index
    %25 = vector.load %arg28[%c0_49, %c0_50] : memref<1x32xf32, #tpu.memory_space<vmem>>, vector<1x32xf32>
    %c0_51 = arith.constant 0 : index
    %c0_52 = arith.constant 0 : index
    %26 = vector.load %arg1[%c0_51, %c0_52] : memref<16x16xf32, #tpu.memory_space<vmem>>, vector<16x16xf32>
    %c0_53 = arith.constant 0 : index
    %c0_54 = arith.constant 0 : index
    %27 = vector.load %arg2[%c0_53, %c0_54] : memref<16x32xf32, #tpu.memory_space<vmem>>, vector<16x32xf32>
    %cst = arith.constant dense<0.000000e+00> : vector<16x32xf32>
    %28 = tpu.matmul %26, %0, %cst {dimension_numbers = #tpu.dot_dimension_numbers<[1], [0], [0], [1], [0, 0, 1, 1], [], []>} : vector<16x16xf32>, vector<16x32xf32>, vector<16x32xf32> -> vector<16x32xf32>
    %29 = vector.broadcast %1 : vector<1x32xf32> to vector<16x32xf32>
    %30 = arith.addf %28, %29 : vector<16x32xf32>
    %cst_55 = arith.constant dense<0.000000e+00> : vector<16x32xf32>
    %31 = tpu.matmul %30, %2, %cst_55 {dimension_numbers = #tpu.dot_dimension_numbers<[1], [0], [0], [1], [0, 0, 1, 1], [], []>} : vector<16x32xf32>, vector<32x32xf32>, vector<16x32xf32> -> vector<16x32xf32>
    %32 = vector.broadcast %5 : vector<1x32xf32> to vector<16x32xf32>
    %33 = arith.addf %31, %32 : vector<16x32xf32>
    %cst_56 = arith.constant dense<0.000000e+00> : vector<16x32xf32>
    %34 = tpu.matmul %30, %3, %cst_56 {dimension_numbers = #tpu.dot_dimension_numbers<[1], [0], [0], [1], [0, 0, 1, 1], [], []>} : vector<16x32xf32>, vector<32x32xf32>, vector<16x32xf32> -> vector<16x32xf32>
    %35 = vector.broadcast %6 : vector<1x32xf32> to vector<16x32xf32>
    %36 = arith.addf %34, %35 : vector<16x32xf32>
    %cst_57 = arith.constant dense<0.000000e+00> : vector<16x32xf32>
    %37 = tpu.matmul %30, %4, %cst_57 {dimension_numbers = #tpu.dot_dimension_numbers<[1], [0], [0], [1], [0, 0, 1, 1], [], []>} : vector<16x32xf32>, vector<32x32xf32>, vector<16x32xf32> -> vector<16x32xf32>
    %38 = vector.broadcast %7 : vector<1x32xf32> to vector<16x32xf32>
    %39 = arith.addf %37, %38 : vector<16x32xf32>
    %40 = vector.extract_strided_slice %33 {offsets = [0, 0], sizes = [8, 32], strides = [1, 1]} : vector<16x32xf32> to vector<8x32xf32>
    %41 = vector.extract_strided_slice %36 {offsets = [0, 0], sizes = [8, 32], strides = [1, 1]} : vector<16x32xf32> to vector<8x32xf32>
    %42 = vector.extract_strided_slice %39 {offsets = [0, 0], sizes = [8, 32], strides = [1, 1]} : vector<16x32xf32> to vector<8x32xf32>
    %43 = vector.extract_strided_slice %40 {offsets = [0, 0], sizes = [8, 8], strides = [1, 1]} : vector<8x32xf32> to vector<8x8xf32>
    %44 = vector.extract_strided_slice %41 {offsets = [0, 0], sizes = [8, 8], strides = [1, 1]} : vector<8x32xf32> to vector<8x8xf32>
    %45 = vector.extract_strided_slice %42 {offsets = [0, 0], sizes = [8, 8], strides = [1, 1]} : vector<8x32xf32> to vector<8x8xf32>
    "tpu.trace_start"() <{level = 10 : i32, message = "qd,kd->qk"}> : () -> ()
    %cst_58 = arith.constant dense<0.000000e+00> : vector<8x8xf32>
    %46 = tpu.matmul %43, %44, %cst_58 {dimension_numbers = #tpu.dot_dimension_numbers<[1], [1], [0], [0], [0, 0, 1, 0], [], []>} : vector<8x8xf32>, vector<8x8xf32>, vector<8x8xf32> -> vector<8x8xf32>
    "tpu.trace_stop"() : () -> ()
    %cst_59 = arith.constant 0.353553385 : f32
    %47 = vector.broadcast %cst_59 : f32 to vector<8x8xf32>
    %48 = arith.mulf %46, %47 : vector<8x8xf32>
    %cst_60 = arith.constant dense<0xFF800000> : vector<8xf32>
    %49 = vector.multi_reduction <maximumf>, %48, %cst_60 [1] : vector<8x8xf32> to vector<8xf32>
    %50 = vector.shape_cast %49 : vector<8xf32> to vector<8x1xf32>
    %51 = vector.broadcast %50 : vector<8x1xf32> to vector<8x8xf32>
    %52 = arith.subf %48, %51 : vector<8x8xf32>
    %53 = math.exp %52 : vector<8x8xf32>
    %cst_61 = arith.constant dense<0.000000e+00> : vector<8xf32>
    %54 = vector.multi_reduction <add>, %53, %cst_61 [1] : vector<8x8xf32> to vector<8xf32>
    %55 = vector.shape_cast %54 : vector<8xf32> to vector<8x1xf32>
    %56 = tpu.reciprocal %55 {approx = true} : vector<8x1xf32> -> vector<8x1xf32>
    %57 = vector.broadcast %56 : vector<8x1xf32> to vector<8x8xf32>
    %58 = arith.mulf %53, %57 : vector<8x8xf32>
    %cst_62 = arith.constant dense<0.000000e+00> : vector<8x8xf32>
    %59 = tpu.matmul %58, %45, %cst_62 {dimension_numbers = #tpu.dot_dimension_numbers<[1], [0], [0], [1], [0, 0, 1, 1], [], []>} : vector<8x8xf32>, vector<8x8xf32>, vector<8x8xf32> -> vector<8x8xf32>
    %60 = vector.extract_strided_slice %40 {offsets = [0, 8], sizes = [8, 8], strides = [1, 1]} : vector<8x32xf32> to vector<8x8xf32>
    %61 = vector.extract_strided_slice %41 {offsets = [0, 8], sizes = [8, 8], strides = [1, 1]} : vector<8x32xf32> to vector<8x8xf32>
    %62 = vector.extract_strided_slice %42 {offsets = [0, 8], sizes = [8, 8], strides = [1, 1]} : vector<8x32xf32> to vector<8x8xf32>
    "tpu.trace_start"() <{level = 10 : i32, message = "qd,kd->qk"}> : () -> ()
    %cst_63 = arith.constant dense<0.000000e+00> : vector<8x8xf32>
    %63 = tpu.matmul %60, %61, %cst_63 {dimension_numbers = #tpu.dot_dimension_numbers<[1], [1], [0], [0], [0, 0, 1, 0], [], []>} : vector<8x8xf32>, vector<8x8xf32>, vector<8x8xf32> -> vector<8x8xf32>
    "tpu.trace_stop"() : () -> ()
    %cst_64 = arith.constant 0.353553385 : f32
    %64 = vector.broadcast %cst_64 : f32 to vector<8x8xf32>
    %65 = arith.mulf %63, %64 : vector<8x8xf32>
    %cst_65 = arith.constant dense<0xFF800000> : vector<8xf32>
    %66 = vector.multi_reduction <maximumf>, %65, %cst_65 [1] : vector<8x8xf32> to vector<8xf32>
    %67 = vector.shape_cast %66 : vector<8xf32> to vector<8x1xf32>
    %68 = vector.broadcast %67 : vector<8x1xf32> to vector<8x8xf32>
    %69 = arith.subf %65, %68 : vector<8x8xf32>
    %70 = math.exp %69 : vector<8x8xf32>
    %cst_66 = arith.constant dense<0.000000e+00> : vector<8xf32>
    %71 = vector.multi_reduction <add>, %70, %cst_66 [1] : vector<8x8xf32> to vector<8xf32>
    %72 = vector.shape_cast %71 : vector<8xf32> to vector<8x1xf32>
    %73 = tpu.reciprocal %72 {approx = true} : vector<8x1xf32> -> vector<8x1xf32>
    %74 = vector.broadcast %73 : vector<8x1xf32> to vector<8x8xf32>
    %75 = arith.mulf %70, %74 : vector<8x8xf32>
    %cst_67 = arith.constant dense<0.000000e+00> : vector<8x8xf32>
    %76 = tpu.matmul %75, %62, %cst_67 {dimension_numbers = #tpu.dot_dimension_numbers<[1], [0], [0], [1], [0, 0, 1, 1], [], []>} : vector<8x8xf32>, vector<8x8xf32>, vector<8x8xf32> -> vector<8x8xf32>
    %77 = vector.extract_strided_slice %40 {offsets = [0, 16], sizes = [8, 8], strides = [1, 1]} : vector<8x32xf32> to vector<8x8xf32>
    %78 = vector.extract_strided_slice %41 {offsets = [0, 16], sizes = [8, 8], strides = [1, 1]} : vector<8x32xf32> to vector<8x8xf32>
    %79 = vector.extract_strided_slice %42 {offsets = [0, 16], sizes = [8, 8], strides = [1, 1]} : vector<8x32xf32> to vector<8x8xf32>
    "tpu.trace_start"() <{level = 10 : i32, message = "qd,kd->qk"}> : () -> ()
    %cst_68 = arith.constant dense<0.000000e+00> : vector<8x8xf32>
    %80 = tpu.matmul %77, %78, %cst_68 {dimension_numbers = #tpu.dot_dimension_numbers<[1], [1], [0], [0], [0, 0, 1, 0], [], []>} : vector<8x8xf32>, vector<8x8xf32>, vector<8x8xf32> -> vector<8x8xf32>
    "tpu.trace_stop"() : () -> ()
    %cst_69 = arith.constant 0.353553385 : f32
    %81 = vector.broadcast %cst_69 : f32 to vector<8x8xf32>
    %82 = arith.mulf %80, %81 : vector<8x8xf32>
    %cst_70 = arith.constant dense<0xFF800000> : vector<8xf32>
    %83 = vector.multi_reduction <maximumf>, %82, %cst_70 [1] : vector<8x8xf32> to vector<8xf32>
    %84 = vector.shape_cast %83 : vector<8xf32> to vector<8x1xf32>
    %85 = vector.broadcast %84 : vector<8x1xf32> to vector<8x8xf32>
    %86 = arith.subf %82, %85 : vector<8x8xf32>
    %87 = math.exp %86 : vector<8x8xf32>
    %cst_71 = arith.constant dense<0.000000e+00> : vector<8xf32>
    %88 = vector.multi_reduction <add>, %87, %cst_71 [1] : vector<8x8xf32> to vector<8xf32>
    %89 = vector.shape_cast %88 : vector<8xf32> to vector<8x1xf32>
    %90 = tpu.reciprocal %89 {approx = true} : vector<8x1xf32> -> vector<8x1xf32>
    %91 = vector.broadcast %90 : vector<8x1xf32> to vector<8x8xf32>
    %92 = arith.mulf %87, %91 : vector<8x8xf32>
    %cst_72 = arith.constant dense<0.000000e+00> : vector<8x8xf32>
    %93 = tpu.matmul %92, %79, %cst_72 {dimension_numbers = #tpu.dot_dimension_numbers<[1], [0], [0], [1], [0, 0, 1, 1], [], []>} : vector<8x8xf32>, vector<8x8xf32>, vector<8x8xf32> -> vector<8x8xf32>
    %94 = vector.extract_strided_slice %40 {offsets = [0, 24], sizes = [8, 8], strides = [1, 1]} : vector<8x32xf32> to vector<8x8xf32>
    %95 = vector.extract_strided_slice %41 {offsets = [0, 24], sizes = [8, 8], strides = [1, 1]} : vector<8x32xf32> to vector<8x8xf32>
    %96 = vector.extract_strided_slice %42 {offsets = [0, 24], sizes = [8, 8], strides = [1, 1]} : vector<8x32xf32> to vector<8x8xf32>
    "tpu.trace_start"() <{level = 10 : i32, message = "qd,kd->qk"}> : () -> ()
    %cst_73 = arith.constant dense<0.000000e+00> : vector<8x8xf32>
    %97 = tpu.matmul %94, %95, %cst_73 {dimension_numbers = #tpu.dot_dimension_numbers<[1], [1], [0], [0], [0, 0, 1, 0], [], []>} : vector<8x8xf32>, vector<8x8xf32>, vector<8x8xf32> -> vector<8x8xf32>
    "tpu.trace_stop"() : () -> ()
    %cst_74 = arith.constant 0.353553385 : f32
    %98 = vector.broadcast %cst_74 : f32 to vector<8x8xf32>
    %99 = arith.mulf %97, %98 : vector<8x8xf32>
    %cst_75 = arith.constant dense<0xFF800000> : vector<8xf32>
    %100 = vector.multi_reduction <maximumf>, %99, %cst_75 [1] : vector<8x8xf32> to vector<8xf32>
    %101 = vector.shape_cast %100 : vector<8xf32> to vector<8x1xf32>
    %102 = vector.broadcast %101 : vector<8x1xf32> to vector<8x8xf32>
    %103 = arith.subf %99, %102 : vector<8x8xf32>
    %104 = math.exp %103 : vector<8x8xf32>
    %cst_76 = arith.constant dense<0.000000e+00> : vector<8xf32>
    %105 = vector.multi_reduction <add>, %104, %cst_76 [1] : vector<8x8xf32> to vector<8xf32>
    %106 = vector.shape_cast %105 : vector<8xf32> to vector<8x1xf32>
    %107 = tpu.reciprocal %106 {approx = true} : vector<8x1xf32> -> vector<8x1xf32>
    %108 = vector.broadcast %107 : vector<8x1xf32> to vector<8x8xf32>
    %109 = arith.mulf %104, %108 : vector<8x8xf32>
    %cst_77 = arith.constant dense<0.000000e+00> : vector<8x8xf32>
    %110 = tpu.matmul %109, %96, %cst_77 {dimension_numbers = #tpu.dot_dimension_numbers<[1], [0], [0], [1], [0, 0, 1, 1], [], []>} : vector<8x8xf32>, vector<8x8xf32>, vector<8x8xf32> -> vector<8x8xf32>
    %111 = tpu.concatenate %59, %76, %93, %110 in 1 : vector<8x8xf32>, vector<8x8xf32>, vector<8x8xf32>, vector<8x8xf32> -> vector<8x32xf32>
    %112 = vector.extract_strided_slice %33 {offsets = [8, 0], sizes = [8, 32], strides = [1, 1]} : vector<16x32xf32> to vector<8x32xf32>
    %113 = vector.extract_strided_slice %36 {offsets = [8, 0], sizes = [8, 32], strides = [1, 1]} : vector<16x32xf32> to vector<8x32xf32>
    %114 = vector.extract_strided_slice %39 {offsets = [8, 0], sizes = [8, 32], strides = [1, 1]} : vector<16x32xf32> to vector<8x32xf32>
    %115 = vector.extract_strided_slice %112 {offsets = [0, 0], sizes = [8, 8], strides = [1, 1]} : vector<8x32xf32> to vector<8x8xf32>
    %116 = vector.extract_strided_slice %113 {offsets = [0, 0], sizes = [8, 8], strides = [1, 1]} : vector<8x32xf32> to vector<8x8xf32>
    %117 = vector.extract_strided_slice %114 {offsets = [0, 0], sizes = [8, 8], strides = [1, 1]} : vector<8x32xf32> to vector<8x8xf32>
    "tpu.trace_start"() <{level = 10 : i32, message = "qd,kd->qk"}> : () -> ()
    %cst_78 = arith.constant dense<0.000000e+00> : vector<8x8xf32>
    %118 = tpu.matmul %115, %116, %cst_78 {dimension_numbers = #tpu.dot_dimension_numbers<[1], [1], [0], [0], [0, 0, 1, 0], [], []>} : vector<8x8xf32>, vector<8x8xf32>, vector<8x8xf32> -> vector<8x8xf32>
    "tpu.trace_stop"() : () -> ()
    %cst_79 = arith.constant 0.353553385 : f32
    %119 = vector.broadcast %cst_79 : f32 to vector<8x8xf32>
    %120 = arith.mulf %118, %119 : vector<8x8xf32>
    %cst_80 = arith.constant dense<0xFF800000> : vector<8xf32>
    %121 = vector.multi_reduction <maximumf>, %120, %cst_80 [1] : vector<8x8xf32> to vector<8xf32>
    %122 = vector.shape_cast %121 : vector<8xf32> to vector<8x1xf32>
    %123 = vector.broadcast %122 : vector<8x1xf32> to vector<8x8xf32>
    %124 = arith.subf %120, %123 : vector<8x8xf32>
    %125 = math.exp %124 : vector<8x8xf32>
    %cst_81 = arith.constant dense<0.000000e+00> : vector<8xf32>
    %126 = vector.multi_reduction <add>, %125, %cst_81 [1] : vector<8x8xf32> to vector<8xf32>
    %127 = vector.shape_cast %126 : vector<8xf32> to vector<8x1xf32>
    %128 = tpu.reciprocal %127 {approx = true} : vector<8x1xf32> -> vector<8x1xf32>
    %129 = vector.broadcast %128 : vector<8x1xf32> to vector<8x8xf32>
    %130 = arith.mulf %125, %129 : vector<8x8xf32>
    %cst_82 = arith.constant dense<0.000000e+00> : vector<8x8xf32>
    %131 = tpu.matmul %130, %117, %cst_82 {dimension_numbers = #tpu.dot_dimension_numbers<[1], [0], [0], [1], [0, 0, 1, 1], [], []>} : vector<8x8xf32>, vector<8x8xf32>, vector<8x8xf32> -> vector<8x8xf32>
    %132 = vector.extract_strided_slice %112 {offsets = [0, 8], sizes = [8, 8], strides = [1, 1]} : vector<8x32xf32> to vector<8x8xf32>
    %133 = vector.extract_strided_slice %113 {offsets = [0, 8], sizes = [8, 8], strides = [1, 1]} : vector<8x32xf32> to vector<8x8xf32>
    %134 = vector.extract_strided_slice %114 {offsets = [0, 8], sizes = [8, 8], strides = [1, 1]} : vector<8x32xf32> to vector<8x8xf32>
    "tpu.trace_start"() <{level = 10 : i32, message = "qd,kd->qk"}> : () -> ()
    %cst_83 = arith.constant dense<0.000000e+00> : vector<8x8xf32>
    %135 = tpu.matmul %132, %133, %cst_83 {dimension_numbers = #tpu.dot_dimension_numbers<[1], [1], [0], [0], [0, 0, 1, 0], [], []>} : vector<8x8xf32>, vector<8x8xf32>, vector<8x8xf32> -> vector<8x8xf32>
    "tpu.trace_stop"() : () -> ()
    %cst_84 = arith.constant 0.353553385 : f32
    %136 = vector.broadcast %cst_84 : f32 to vector<8x8xf32>
    %137 = arith.mulf %135, %136 : vector<8x8xf32>
    %cst_85 = arith.constant dense<0xFF800000> : vector<8xf32>
    %138 = vector.multi_reduction <maximumf>, %137, %cst_85 [1] : vector<8x8xf32> to vector<8xf32>
    %139 = vector.shape_cast %138 : vector<8xf32> to vector<8x1xf32>
    %140 = vector.broadcast %139 : vector<8x1xf32> to vector<8x8xf32>
    %141 = arith.subf %137, %140 : vector<8x8xf32>
    %142 = math.exp %141 : vector<8x8xf32>
    %cst_86 = arith.constant dense<0.000000e+00> : vector<8xf32>
    %143 = vector.multi_reduction <add>, %142, %cst_86 [1] : vector<8x8xf32> to vector<8xf32>
    %144 = vector.shape_cast %143 : vector<8xf32> to vector<8x1xf32>
    %145 = tpu.reciprocal %144 {approx = true} : vector<8x1xf32> -> vector<8x1xf32>
    %146 = vector.broadcast %145 : vector<8x1xf32> to vector<8x8xf32>
    %147 = arith.mulf %142, %146 : vector<8x8xf32>
    %cst_87 = arith.constant dense<0.000000e+00> : vector<8x8xf32>
    %148 = tpu.matmul %147, %134, %cst_87 {dimension_numbers = #tpu.dot_dimension_numbers<[1], [0], [0], [1], [0, 0, 1, 1], [], []>} : vector<8x8xf32>, vector<8x8xf32>, vector<8x8xf32> -> vector<8x8xf32>
    %149 = vector.extract_strided_slice %112 {offsets = [0, 16], sizes = [8, 8], strides = [1, 1]} : vector<8x32xf32> to vector<8x8xf32>
    %150 = vector.extract_strided_slice %113 {offsets = [0, 16], sizes = [8, 8], strides = [1, 1]} : vector<8x32xf32> to vector<8x8xf32>
    %151 = vector.extract_strided_slice %114 {offsets = [0, 16], sizes = [8, 8], strides = [1, 1]} : vector<8x32xf32> to vector<8x8xf32>
    "tpu.trace_start"() <{level = 10 : i32, message = "qd,kd->qk"}> : () -> ()
    %cst_88 = arith.constant dense<0.000000e+00> : vector<8x8xf32>
    %152 = tpu.matmul %149, %150, %cst_88 {dimension_numbers = #tpu.dot_dimension_numbers<[1], [1], [0], [0], [0, 0, 1, 0], [], []>} : vector<8x8xf32>, vector<8x8xf32>, vector<8x8xf32> -> vector<8x8xf32>
    "tpu.trace_stop"() : () -> ()
    %cst_89 = arith.constant 0.353553385 : f32
    %153 = vector.broadcast %cst_89 : f32 to vector<8x8xf32>
    %154 = arith.mulf %152, %153 : vector<8x8xf32>
    %cst_90 = arith.constant dense<0xFF800000> : vector<8xf32>
    %155 = vector.multi_reduction <maximumf>, %154, %cst_90 [1] : vector<8x8xf32> to vector<8xf32>
    %156 = vector.shape_cast %155 : vector<8xf32> to vector<8x1xf32>
    %157 = vector.broadcast %156 : vector<8x1xf32> to vector<8x8xf32>
    %158 = arith.subf %154, %157 : vector<8x8xf32>
    %159 = math.exp %158 : vector<8x8xf32>
    %cst_91 = arith.constant dense<0.000000e+00> : vector<8xf32>
    %160 = vector.multi_reduction <add>, %159, %cst_91 [1] : vector<8x8xf32> to vector<8xf32>
    %161 = vector.shape_cast %160 : vector<8xf32> to vector<8x1xf32>
    %162 = tpu.reciprocal %161 {approx = true} : vector<8x1xf32> -> vector<8x1xf32>
    %163 = vector.broadcast %162 : vector<8x1xf32> to vector<8x8xf32>
    %164 = arith.mulf %159, %163 : vector<8x8xf32>
    %cst_92 = arith.constant dense<0.000000e+00> : vector<8x8xf32>
    %165 = tpu.matmul %164, %151, %cst_92 {dimension_numbers = #tpu.dot_dimension_numbers<[1], [0], [0], [1], [0, 0, 1, 1], [], []>} : vector<8x8xf32>, vector<8x8xf32>, vector<8x8xf32> -> vector<8x8xf32>
    %166 = vector.extract_strided_slice %112 {offsets = [0, 24], sizes = [8, 8], strides = [1, 1]} : vector<8x32xf32> to vector<8x8xf32>
    %167 = vector.extract_strided_slice %113 {offsets = [0, 24], sizes = [8, 8], strides = [1, 1]} : vector<8x32xf32> to vector<8x8xf32>
    %168 = vector.extract_strided_slice %114 {offsets = [0, 24], sizes = [8, 8], strides = [1, 1]} : vector<8x32xf32> to vector<8x8xf32>
    "tpu.trace_start"() <{level = 10 : i32, message = "qd,kd->qk"}> : () -> ()
    %cst_93 = arith.constant dense<0.000000e+00> : vector<8x8xf32>
    %169 = tpu.matmul %166, %167, %cst_93 {dimension_numbers = #tpu.dot_dimension_numbers<[1], [1], [0], [0], [0, 0, 1, 0], [], []>} : vector<8x8xf32>, vector<8x8xf32>, vector<8x8xf32> -> vector<8x8xf32>
    "tpu.trace_stop"() : () -> ()
    %cst_94 = arith.constant 0.353553385 : f32
    %170 = vector.broadcast %cst_94 : f32 to vector<8x8xf32>
    %171 = arith.mulf %169, %170 : vector<8x8xf32>
    %cst_95 = arith.constant dense<0xFF800000> : vector<8xf32>
    %172 = vector.multi_reduction <maximumf>, %171, %cst_95 [1] : vector<8x8xf32> to vector<8xf32>
    %173 = vector.shape_cast %172 : vector<8xf32> to vector<8x1xf32>
    %174 = vector.broadcast %173 : vector<8x1xf32> to vector<8x8xf32>
    %175 = arith.subf %171, %174 : vector<8x8xf32>
    %176 = math.exp %175 : vector<8x8xf32>
    %cst_96 = arith.constant dense<0.000000e+00> : vector<8xf32>
    %177 = vector.multi_reduction <add>, %176, %cst_96 [1] : vector<8x8xf32> to vector<8xf32>
    %178 = vector.shape_cast %177 : vector<8xf32> to vector<8x1xf32>
    %179 = tpu.reciprocal %178 {approx = true} : vector<8x1xf32> -> vector<8x1xf32>
    %180 = vector.broadcast %179 : vector<8x1xf32> to vector<8x8xf32>
    %181 = arith.mulf %176, %180 : vector<8x8xf32>
    %cst_97 = arith.constant dense<0.000000e+00> : vector<8x8xf32>
    %182 = tpu.matmul %181, %168, %cst_97 {dimension_numbers = #tpu.dot_dimension_numbers<[1], [0], [0], [1], [0, 0, 1, 1], [], []>} : vector<8x8xf32>, vector<8x8xf32>, vector<8x8xf32> -> vector<8x8xf32>
    %183 = tpu.concatenate %131, %148, %165, %182 in 1 : vector<8x8xf32>, vector<8x8xf32>, vector<8x8xf32>, vector<8x8xf32> -> vector<8x32xf32>
    %184 = tpu.concatenate %111, %183 in 0 : vector<8x32xf32>, vector<8x32xf32> -> vector<16x32xf32>
    %cst_98 = arith.constant dense<0.000000e+00> : vector<16x32xf32>
    %185 = tpu.matmul %184, %8, %cst_98 {dimension_numbers = #tpu.dot_dimension_numbers<[1], [0], [0], [1], [0, 0, 1, 1], [], []>} : vector<16x32xf32>, vector<32x32xf32>, vector<16x32xf32> -> vector<16x32xf32>
    %186 = vector.broadcast %9 : vector<1x32xf32> to vector<16x32xf32>
    %187 = arith.addf %185, %186 : vector<16x32xf32>
    %188 = arith.addf %30, %187 : vector<16x32xf32>
    %cst_99 = arith.constant dense<0.000000e+00> : vector<16xf32>
    %189 = vector.multi_reduction <add>, %188, %cst_99 [1] : vector<16x32xf32> to vector<16xf32>
    %190 = vector.shape_cast %189 : vector<16xf32> to vector<16x1xf32>
    %cst_100 = arith.constant 3.200000e+01 : f32
    %191 = vector.broadcast %cst_100 : f32 to vector<16x1xf32>
    %192 = arith.divf %190, %191 : vector<16x1xf32>
    %193 = vector.broadcast %192 : vector<16x1xf32> to vector<16x32xf32>
    %194 = arith.subf %188, %193 : vector<16x32xf32>
    %195 = arith.mulf %194, %194 : vector<16x32xf32>
    %cst_101 = arith.constant dense<0.000000e+00> : vector<16xf32>
    %196 = vector.multi_reduction <add>, %195, %cst_101 [1] : vector<16x32xf32> to vector<16xf32>
    %197 = vector.shape_cast %196 : vector<16xf32> to vector<16x1xf32>
    %cst_102 = arith.constant 3.200000e+01 : f32
    %198 = vector.broadcast %cst_102 : f32 to vector<16x1xf32>
    %199 = arith.divf %197, %198 : vector<16x1xf32>
    %200 = vector.broadcast %192 : vector<16x1xf32> to vector<16x32xf32>
    %201 = arith.subf %188, %200 : vector<16x32xf32>
    %cst_103 = arith.constant 9.99999974E-6 : f32
    %202 = vector.broadcast %cst_103 : f32 to vector<16x1xf32>
    %203 = arith.addf %199, %202 : vector<16x1xf32>
    %204 = math.rsqrt %203 : vector<16x1xf32>
    %205 = vector.broadcast %204 : vector<16x1xf32> to vector<16x32xf32>
    %206 = arith.mulf %201, %205 : vector<16x32xf32>
    %207 = vector.broadcast %10 : vector<1x32xf32> to vector<16x32xf32>
    %208 = arith.mulf %206, %207 : vector<16x32xf32>
    %209 = vector.broadcast %11 : vector<1x32xf32> to vector<16x32xf32>
    %210 = arith.addf %208, %209 : vector<16x32xf32>
    %cst_104 = arith.constant dense<0.000000e+00> : vector<16x64xf32>
    %211 = tpu.matmul %210, %12, %cst_104 {dimension_numbers = #tpu.dot_dimension_numbers<[1], [0], [0], [1], [0, 0, 1, 1], [], []>} : vector<16x32xf32>, vector<32x64xf32>, vector<16x64xf32> -> vector<16x64xf32>
    %212 = vector.broadcast %13 : vector<1x64xf32> to vector<16x64xf32>
    %213 = arith.addf %211, %212 : vector<16x64xf32>
    %cst_105 = arith.constant 0.000000e+00 : f32
    %214 = vector.broadcast %cst_105 : f32 to vector<16x64xf32>
    %215 = arith.maximumf %213, %214 : vector<16x64xf32>
    %cst_106 = arith.constant dense<0.000000e+00> : vector<16x32xf32>
    %216 = tpu.matmul %215, %14, %cst_106 {dimension_numbers = #tpu.dot_dimension_numbers<[1], [0], [0], [1], [0, 0, 1, 1], [], []>} : vector<16x64xf32>, vector<64x32xf32>, vector<16x32xf32> -> vector<16x32xf32>
    %217 = vector.broadcast %15 : vector<1x32xf32> to vector<16x32xf32>
    %218 = arith.addf %216, %217 : vector<16x32xf32>
    %219 = arith.addf %210, %218 : vector<16x32xf32>
    %cst_107 = arith.constant dense<0.000000e+00> : vector<16xf32>
    %220 = vector.multi_reduction <add>, %219, %cst_107 [1] : vector<16x32xf32> to vector<16xf32>
    %221 = vector.shape_cast %220 : vector<16xf32> to vector<16x1xf32>
    %cst_108 = arith.constant 3.200000e+01 : f32
    %222 = vector.broadcast %cst_108 : f32 to vector<16x1xf32>
    %223 = arith.divf %221, %222 : vector<16x1xf32>
    %224 = vector.broadcast %223 : vector<16x1xf32> to vector<16x32xf32>
    %225 = arith.subf %219, %224 : vector<16x32xf32>
    %226 = arith.mulf %225, %225 : vector<16x32xf32>
    %cst_109 = arith.constant dense<0.000000e+00> : vector<16xf32>
    %227 = vector.multi_reduction <add>, %226, %cst_109 [1] : vector<16x32xf32> to vector<16xf32>
    %228 = vector.shape_cast %227 : vector<16xf32> to vector<16x1xf32>
    %cst_110 = arith.constant 3.200000e+01 : f32
    %229 = vector.broadcast %cst_110 : f32 to vector<16x1xf32>
    %230 = arith.divf %228, %229 : vector<16x1xf32>
    %231 = vector.broadcast %223 : vector<16x1xf32> to vector<16x32xf32>
    %232 = arith.subf %219, %231 : vector<16x32xf32>
    %cst_111 = arith.constant 9.99999974E-6 : f32
    %233 = vector.broadcast %cst_111 : f32 to vector<16x1xf32>
    %234 = arith.addf %230, %233 : vector<16x1xf32>
    %235 = math.rsqrt %234 : vector<16x1xf32>
    %236 = vector.broadcast %235 : vector<16x1xf32> to vector<16x32xf32>
    %237 = arith.mulf %232, %236 : vector<16x32xf32>
    %238 = vector.broadcast %16 : vector<1x32xf32> to vector<16x32xf32>
    %239 = arith.mulf %237, %238 : vector<16x32xf32>
    %240 = vector.broadcast %17 : vector<1x32xf32> to vector<16x32xf32>
    %241 = arith.addf %239, %240 : vector<16x32xf32>
    %cst_112 = arith.constant dense<0.000000e+00> : vector<16x32xf32>
    %242 = tpu.matmul %241, %18, %cst_112 {dimension_numbers = #tpu.dot_dimension_numbers<[1], [0], [0], [1], [0, 0, 1, 1], [], []>} : vector<16x32xf32>, vector<32x32xf32>, vector<16x32xf32> -> vector<16x32xf32>
    %243 = vector.broadcast %21 : vector<1x32xf32> to vector<16x32xf32>
    %244 = arith.addf %242, %243 : vector<16x32xf32>
    %cst_113 = arith.constant dense<0.000000e+00> : vector<16x32xf32>
    %245 = tpu.matmul %27, %19, %cst_113 {dimension_numbers = #tpu.dot_dimension_numbers<[1], [0], [0], [1], [0, 0, 1, 1], [], []>} : vector<16x32xf32>, vector<32x32xf32>, vector<16x32xf32> -> vector<16x32xf32>
    %246 = vector.broadcast %22 : vector<1x32xf32> to vector<16x32xf32>
    %247 = arith.addf %245, %246 : vector<16x32xf32>
    %cst_114 = arith.constant dense<0.000000e+00> : vector<16x32xf32>
    %248 = tpu.matmul %27, %20, %cst_114 {dimension_numbers = #tpu.dot_dimension_numbers<[1], [0], [0], [1], [0, 0, 1, 1], [], []>} : vector<16x32xf32>, vector<32x32xf32>, vector<16x32xf32> -> vector<16x32xf32>
    %249 = vector.broadcast %23 : vector<1x32xf32> to vector<16x32xf32>
    %250 = arith.addf %248, %249 : vector<16x32xf32>
    %251 = vector.extract_strided_slice %244 {offsets = [0, 0], sizes = [16, 8], strides = [1, 1]} : vector<16x32xf32> to vector<16x8xf32>
    %252 = vector.extract_strided_slice %247 {offsets = [0, 0], sizes = [16, 8], strides = [1, 1]} : vector<16x32xf32> to vector<16x8xf32>
    %253 = vector.extract_strided_slice %250 {offsets = [0, 0], sizes = [16, 8], strides = [1, 1]} : vector<16x32xf32> to vector<16x8xf32>
    "tpu.trace_start"() <{level = 10 : i32, message = "qd,kd->qk"}> : () -> ()
    %cst_115 = arith.constant dense<0.000000e+00> : vector<16x16xf32>
    %254 = tpu.matmul %251, %252, %cst_115 {dimension_numbers = #tpu.dot_dimension_numbers<[1], [1], [0], [0], [0, 0, 1, 0], [], []>} : vector<16x8xf32>, vector<16x8xf32>, vector<16x16xf32> -> vector<16x16xf32>
    "tpu.trace_stop"() : () -> ()
    %cst_116 = arith.constant 0.353553385 : f32
    %255 = vector.broadcast %cst_116 : f32 to vector<16x16xf32>
    %256 = arith.mulf %254, %255 : vector<16x16xf32>
    %cst_117 = arith.constant dense<0xFF800000> : vector<16xf32>
    %257 = vector.multi_reduction <maximumf>, %256, %cst_117 [1] : vector<16x16xf32> to vector<16xf32>
    %258 = vector.shape_cast %257 : vector<16xf32> to vector<16x1xf32>
    %259 = vector.broadcast %258 : vector<16x1xf32> to vector<16x16xf32>
    %260 = arith.subf %256, %259 : vector<16x16xf32>
    %261 = math.exp %260 : vector<16x16xf32>
    %cst_118 = arith.constant dense<0.000000e+00> : vector<16xf32>
    %262 = vector.multi_reduction <add>, %261, %cst_118 [1] : vector<16x16xf32> to vector<16xf32>
    %263 = vector.shape_cast %262 : vector<16xf32> to vector<16x1xf32>
    %264 = tpu.reciprocal %263 {approx = true} : vector<16x1xf32> -> vector<16x1xf32>
    %265 = vector.broadcast %264 : vector<16x1xf32> to vector<16x16xf32>
    %266 = arith.mulf %261, %265 : vector<16x16xf32>
    %cst_119 = arith.constant dense<0.000000e+00> : vector<16x8xf32>
    %267 = tpu.matmul %266, %253, %cst_119 {dimension_numbers = #tpu.dot_dimension_numbers<[1], [0], [0], [1], [0, 0, 1, 1], [], []>} : vector<16x16xf32>, vector<16x8xf32>, vector<16x8xf32> -> vector<16x8xf32>
    %268 = vector.extract_strided_slice %244 {offsets = [0, 8], sizes = [16, 8], strides = [1, 1]} : vector<16x32xf32> to vector<16x8xf32>
    %269 = vector.extract_strided_slice %247 {offsets = [0, 8], sizes = [16, 8], strides = [1, 1]} : vector<16x32xf32> to vector<16x8xf32>
    %270 = vector.extract_strided_slice %250 {offsets = [0, 8], sizes = [16, 8], strides = [1, 1]} : vector<16x32xf32> to vector<16x8xf32>
    "tpu.trace_start"() <{level = 10 : i32, message = "qd,kd->qk"}> : () -> ()
    %cst_120 = arith.constant dense<0.000000e+00> : vector<16x16xf32>
    %271 = tpu.matmul %268, %269, %cst_120 {dimension_numbers = #tpu.dot_dimension_numbers<[1], [1], [0], [0], [0, 0, 1, 0], [], []>} : vector<16x8xf32>, vector<16x8xf32>, vector<16x16xf32> -> vector<16x16xf32>
    "tpu.trace_stop"() : () -> ()
    %cst_121 = arith.constant 0.353553385 : f32
    %272 = vector.broadcast %cst_121 : f32 to vector<16x16xf32>
    %273 = arith.mulf %271, %272 : vector<16x16xf32>
    %cst_122 = arith.constant dense<0xFF800000> : vector<16xf32>
    %274 = vector.multi_reduction <maximumf>, %273, %cst_122 [1] : vector<16x16xf32> to vector<16xf32>
    %275 = vector.shape_cast %274 : vector<16xf32> to vector<16x1xf32>
    %276 = vector.broadcast %275 : vector<16x1xf32> to vector<16x16xf32>
    %277 = arith.subf %273, %276 : vector<16x16xf32>
    %278 = math.exp %277 : vector<16x16xf32>
    %cst_123 = arith.constant dense<0.000000e+00> : vector<16xf32>
    %279 = vector.multi_reduction <add>, %278, %cst_123 [1] : vector<16x16xf32> to vector<16xf32>
    %280 = vector.shape_cast %279 : vector<16xf32> to vector<16x1xf32>
    %281 = tpu.reciprocal %280 {approx = true} : vector<16x1xf32> -> vector<16x1xf32>
    %282 = vector.broadcast %281 : vector<16x1xf32> to vector<16x16xf32>
    %283 = arith.mulf %278, %282 : vector<16x16xf32>
    %cst_124 = arith.constant dense<0.000000e+00> : vector<16x8xf32>
    %284 = tpu.matmul %283, %270, %cst_124 {dimension_numbers = #tpu.dot_dimension_numbers<[1], [0], [0], [1], [0, 0, 1, 1], [], []>} : vector<16x16xf32>, vector<16x8xf32>, vector<16x8xf32> -> vector<16x8xf32>
    %285 = vector.extract_strided_slice %244 {offsets = [0, 16], sizes = [16, 8], strides = [1, 1]} : vector<16x32xf32> to vector<16x8xf32>
    %286 = vector.extract_strided_slice %247 {offsets = [0, 16], sizes = [16, 8], strides = [1, 1]} : vector<16x32xf32> to vector<16x8xf32>
    %287 = vector.extract_strided_slice %250 {offsets = [0, 16], sizes = [16, 8], strides = [1, 1]} : vector<16x32xf32> to vector<16x8xf32>
    "tpu.trace_start"() <{level = 10 : i32, message = "qd,kd->qk"}> : () -> ()
    %cst_125 = arith.constant dense<0.000000e+00> : vector<16x16xf32>
    %288 = tpu.matmul %285, %286, %cst_125 {dimension_numbers = #tpu.dot_dimension_numbers<[1], [1], [0], [0], [0, 0, 1, 0], [], []>} : vector<16x8xf32>, vector<16x8xf32>, vector<16x16xf32> -> vector<16x16xf32>
    "tpu.trace_stop"() : () -> ()
    %cst_126 = arith.constant 0.353553385 : f32
    %289 = vector.broadcast %cst_126 : f32 to vector<16x16xf32>
    %290 = arith.mulf %288, %289 : vector<16x16xf32>
    %cst_127 = arith.constant dense<0xFF800000> : vector<16xf32>
    %291 = vector.multi_reduction <maximumf>, %290, %cst_127 [1] : vector<16x16xf32> to vector<16xf32>
    %292 = vector.shape_cast %291 : vector<16xf32> to vector<16x1xf32>
    %293 = vector.broadcast %292 : vector<16x1xf32> to vector<16x16xf32>
    %294 = arith.subf %290, %293 : vector<16x16xf32>
    %295 = math.exp %294 : vector<16x16xf32>
    %cst_128 = arith.constant dense<0.000000e+00> : vector<16xf32>
    %296 = vector.multi_reduction <add>, %295, %cst_128 [1] : vector<16x16xf32> to vector<16xf32>
    %297 = vector.shape_cast %296 : vector<16xf32> to vector<16x1xf32>
    %298 = tpu.reciprocal %297 {approx = true} : vector<16x1xf32> -> vector<16x1xf32>
    %299 = vector.broadcast %298 : vector<16x1xf32> to vector<16x16xf32>
    %300 = arith.mulf %295, %299 : vector<16x16xf32>
    %cst_129 = arith.constant dense<0.000000e+00> : vector<16x8xf32>
    %301 = tpu.matmul %300, %287, %cst_129 {dimension_numbers = #tpu.dot_dimension_numbers<[1], [0], [0], [1], [0, 0, 1, 1], [], []>} : vector<16x16xf32>, vector<16x8xf32>, vector<16x8xf32> -> vector<16x8xf32>
    %302 = vector.extract_strided_slice %244 {offsets = [0, 24], sizes = [16, 8], strides = [1, 1]} : vector<16x32xf32> to vector<16x8xf32>
    %303 = vector.extract_strided_slice %247 {offsets = [0, 24], sizes = [16, 8], strides = [1, 1]} : vector<16x32xf32> to vector<16x8xf32>
    %304 = vector.extract_strided_slice %250 {offsets = [0, 24], sizes = [16, 8], strides = [1, 1]} : vector<16x32xf32> to vector<16x8xf32>
    "tpu.trace_start"() <{level = 10 : i32, message = "qd,kd->qk"}> : () -> ()
    %cst_130 = arith.constant dense<0.000000e+00> : vector<16x16xf32>
    %305 = tpu.matmul %302, %303, %cst_130 {dimension_numbers = #tpu.dot_dimension_numbers<[1], [1], [0], [0], [0, 0, 1, 0], [], []>} : vector<16x8xf32>, vector<16x8xf32>, vector<16x16xf32> -> vector<16x16xf32>
    "tpu.trace_stop"() : () -> ()
    %cst_131 = arith.constant 0.353553385 : f32
    %306 = vector.broadcast %cst_131 : f32 to vector<16x16xf32>
    %307 = arith.mulf %305, %306 : vector<16x16xf32>
    %cst_132 = arith.constant dense<0xFF800000> : vector<16xf32>
    %308 = vector.multi_reduction <maximumf>, %307, %cst_132 [1] : vector<16x16xf32> to vector<16xf32>
    %309 = vector.shape_cast %308 : vector<16xf32> to vector<16x1xf32>
    %310 = vector.broadcast %309 : vector<16x1xf32> to vector<16x16xf32>
    %311 = arith.subf %307, %310 : vector<16x16xf32>
    %312 = math.exp %311 : vector<16x16xf32>
    %cst_133 = arith.constant dense<0.000000e+00> : vector<16xf32>
    %313 = vector.multi_reduction <add>, %312, %cst_133 [1] : vector<16x16xf32> to vector<16xf32>
    %314 = vector.shape_cast %313 : vector<16xf32> to vector<16x1xf32>
    %315 = tpu.reciprocal %314 {approx = true} : vector<16x1xf32> -> vector<16x1xf32>
    %316 = vector.broadcast %315 : vector<16x1xf32> to vector<16x16xf32>
    %317 = arith.mulf %312, %316 : vector<16x16xf32>
    %cst_134 = arith.constant dense<0.000000e+00> : vector<16x8xf32>
    %318 = tpu.matmul %317, %304, %cst_134 {dimension_numbers = #tpu.dot_dimension_numbers<[1], [0], [0], [1], [0, 0, 1, 1], [], []>} : vector<16x16xf32>, vector<16x8xf32>, vector<16x8xf32> -> vector<16x8xf32>
    %319 = tpu.concatenate %267, %284, %301, %318 in 1 : vector<16x8xf32>, vector<16x8xf32>, vector<16x8xf32>, vector<16x8xf32> -> vector<16x32xf32>
    %cst_135 = arith.constant dense<0.000000e+00> : vector<16x32xf32>
    %320 = tpu.matmul %319, %24, %cst_135 {dimension_numbers = #tpu.dot_dimension_numbers<[1], [0], [0], [1], [0, 0, 1, 1], [], []>} : vector<16x32xf32>, vector<32x32xf32>, vector<16x32xf32> -> vector<16x32xf32>
    %321 = vector.broadcast %25 : vector<1x32xf32> to vector<16x32xf32>
    %322 = arith.addf %320, %321 : vector<16x32xf32>
    %323 = tpu.concatenate %241, %322 in 1 : vector<16x32xf32>, vector<16x32xf32> -> vector<16x64xf32>
    %c0_136 = arith.constant 0 : index
    %c0_137 = arith.constant 0 : index
    %324 = vector.load %arg29[%c0_136, %c0_137] : memref<16x64xf32, #tpu.memory_space<vmem>>, vector<16x64xf32>
    tpu.vector_store %arg29[%c0_136, %c0_137], %323 {strides = array<i32>} : memref<16x64xf32, #tpu.memory_space<vmem>>, vector<16x64xf32>,
    return
  }
  func.func @transform_0(%arg0: i32) -> (i32, i32) {
    %c0_i32 = arith.constant 0 : i32
    %c0_i32_0 = arith.constant 0 : i32
    %c0_i32_1 = arith.constant 0 : i32
    return %c0_i32, %c0_i32_0 : i32, i32
  }
  func.func @transform_1(%arg0: i32) -> (i32, i32) {
    %c0_i32 = arith.constant 0 : i32
    %c0_i32_0 = arith.constant 0 : i32
    %c0_i32_1 = arith.constant 0 : i32
    return %c0_i32, %c0_i32_0 : i32, i32
  }
  func.func @transform_2(%arg0: i32) -> (i32, i32) {
    %c0_i32 = arith.constant 0 : i32
    %c0_i32_0 = arith.constant 0 : i32
    %c0_i32_1 = arith.constant 0 : i32
    return %c0_i32, %c0_i32_0 : i32, i32
  }
  func.func @transform_3(%arg0: i32) -> (i32, i32) {
    %c0_i32 = arith.constant 0 : i32
    %c0_i32_0 = arith.constant 0 : i32
    %c0_i32_1 = arith.constant 0 : i32
    return %c0_i32, %c0_i32_0 : i32, i32
  }
  func.func @transform_4(%arg0: i32) -> (i32, i32) {
    %c0_i32 = arith.constant 0 : i32
    %c0_i32_0 = arith.constant 0 : i32
    %c0_i32_1 = arith.constant 0 : i32
    return %c0_i32, %c0_i32_0 : i32, i32
  }
  func.func @transform_5(%arg0: i32) -> (i32, i32) {
    %c0_i32 = arith.constant 0 : i32
    %c0_i32_0 = arith.constant 0 : i32
    %c0_i32_1 = arith.constant 0 : i32
    return %c0_i32, %c0_i32_0 : i32, i32
  }
  func.func @transform_6(%arg0: i32) -> (i32, i32) {
    %c0_i32 = arith.constant 0 : i32
    %c0_i32_0 = arith.constant 0 : i32
    %c0_i32_1 = arith.constant 0 : i32
    return %c0_i32, %c0_i32_0 : i32, i32
  }
  func.func @transform_7(%arg0: i32) -> (i32, i32) {
    %c0_i32 = arith.constant 0 : i32
    %c0_i32_0 = arith.constant 0 : i32
    %c0_i32_1 = arith.constant 0 : i32
    return %c0_i32, %c0_i32_0 : i32, i32
  }
  func.func @transform_8(%arg0: i32) -> (i32, i32) {
    %c0_i32 = arith.constant 0 : i32
    %c0_i32_0 = arith.constant 0 : i32
    %c0_i32_1 = arith.constant 0 : i32
    return %c0_i32, %c0_i32_0 : i32, i32
  }
  func.func @transform_9(%arg0: i32) -> (i32, i32) {
    %c0_i32 = arith.constant 0 : i32
    %c0_i32_0 = arith.constant 0 : i32
    %c0_i32_1 = arith.constant 0 : i32
    return %c0_i32, %c0_i32_0 : i32, i32
  }
  func.func @transform_10(%arg0: i32) -> (i32, i32) {
    %c0_i32 = arith.constant 0 : i32
    %c0_i32_0 = arith.constant 0 : i32
    %c0_i32_1 = arith.constant 0 : i32
    return %c0_i32, %c0_i32_0 : i32, i32
  }
  func.func @transform_11(%arg0: i32) -> (i32, i32) {
    %c0_i32 = arith.constant 0 : i32
    %c0_i32_0 = arith.constant 0 : i32
    %c0_i32_1 = arith.constant 0 : i32
    return %c0_i32, %c0_i32_0 : i32, i32
  }
  func.func @transform_12(%arg0: i32) -> (i32, i32) {
    %c0_i32 = arith.constant 0 : i32
    %c0_i32_0 = arith.constant 0 : i32
    %c0_i32_1 = arith.constant 0 : i32
    return %c0_i32, %c0_i32_0 : i32, i32
  }
  func.func @transform_13(%arg0: i32) -> (i32, i32) {
    %c0_i32 = arith.constant 0 : i32
    %c0_i32_0 = arith.constant 0 : i32
    %c0_i32_1 = arith.constant 0 : i32
    return %c0_i32, %c0_i32_0 : i32, i32
  }
  func.func @transform_14(%arg0: i32) -> (i32, i32) {
    %c0_i32 = arith.constant 0 : i32
    %c0_i32_0 = arith.constant 0 : i32
    %c0_i32_1 = arith.constant 0 : i32
    return %c0_i32, %c0_i32_0 : i32, i32
  }
  func.func @transform_15(%arg0: i32) -> (i32, i32) {
    %c0_i32 = arith.constant 0 : i32
    %c0_i32_0 = arith.constant 0 : i32
    %c0_i32_1 = arith.constant 0 : i32
    return %c0_i32, %c0_i32_0 : i32, i32
  }
  func.func @transform_16(%arg0: i32) -> (i32, i32) {
    %c0_i32 = arith.constant 0 : i32
    %c0_i32_0 = arith.constant 0 : i32
    %c0_i32_1 = arith.constant 0 : i32
    return %c0_i32, %c0_i32_0 : i32, i32
  }
  func.func @transform_17(%arg0: i32) -> (i32, i32) {
    %c0_i32 = arith.constant 0 : i32
    %c0_i32_0 = arith.constant 0 : i32
    %c0_i32_1 = arith.constant 0 : i32
    return %c0_i32, %c0_i32_0 : i32, i32
  }
  func.func @transform_18(%arg0: i32) -> (i32, i32) {
    %c0_i32 = arith.constant 0 : i32
    %c0_i32_0 = arith.constant 0 : i32
    %c0_i32_1 = arith.constant 0 : i32
    return %c0_i32, %c0_i32_0 : i32, i32
  }
  func.func @transform_19(%arg0: i32) -> (i32, i32) {
    %c0_i32 = arith.constant 0 : i32
    %c0_i32_0 = arith.constant 0 : i32
    %c0_i32_1 = arith.constant 0 : i32
    return %c0_i32, %c0_i32_0 : i32, i32
  }
  func.func @transform_20(%arg0: i32) -> (i32, i32) {
    %c0_i32 = arith.constant 0 : i32
    %c0_i32_0 = arith.constant 0 : i32
    %c0_i32_1 = arith.constant 0 : i32
    return %c0_i32, %c0_i32_0 : i32, i32
  }
  func.func @transform_21(%arg0: i32) -> (i32, i32) {
    %c0_i32 = arith.constant 0 : i32
    %c0_i32_0 = arith.constant 0 : i32
    %c0_i32_1 = arith.constant 0 : i32
    return %c0_i32, %c0_i32_0 : i32, i32
  }
  func.func @transform_22(%arg0: i32) -> (i32, i32) {
    %c0_i32 = arith.constant 0 : i32
    %c0_i32_0 = arith.constant 0 : i32
    %c0_i32_1 = arith.constant 0 : i32
    return %c0_i32, %c0_i32_0 : i32, i32
  }
  func.func @transform_23(%arg0: i32) -> (i32, i32) {
    %c0_i32 = arith.constant 0 : i32
    %c0_i32_0 = arith.constant 0 : i32
    %c0_i32_1 = arith.constant 0 : i32
    return %c0_i32, %c0_i32_0 : i32, i32
  }
  func.func @transform_24(%arg0: i32) -> (i32, i32) {
    %c0_i32 = arith.constant 0 : i32
    %c0_i32_0 = arith.constant 0 : i32
    %c0_i32_1 = arith.constant 0 : i32
    return %c0_i32, %c0_i32_0 : i32, i32
  }
  func.func @transform_25(%arg0: i32) -> (i32, i32) {
    %c0_i32 = arith.constant 0 : i32
    %c0_i32_0 = arith.constant 0 : i32
    %c0_i32_1 = arith.constant 0 : i32
    return %c0_i32, %c0_i32_0 : i32, i32
  }
  func.func @transform_26(%arg0: i32) -> (i32, i32) {
    %c0_i32 = arith.constant 0 : i32
    %c0_i32_0 = arith.constant 0 : i32
    %c0_i32_1 = arith.constant 0 : i32
    return %c0_i32, %c0_i32_0 : i32, i32
  }
  func.func @transform_27(%arg0: i32) -> (i32, i32) {
    %c0_i32 = arith.constant 0 : i32
    %c0_i32_0 = arith.constant 0 : i32
    %c0_i32_1 = arith.constant 0 : i32
    return %c0_i32, %c0_i32_0 : i32, i32
  }
  func.func @transform_28(%arg0: i32) -> (i32, i32) {
    %c0_i32 = arith.constant 0 : i32
    %c0_i32_0 = arith.constant 0 : i32
    %c0_i32_1 = arith.constant 0 : i32
    return %c0_i32, %c0_i32_0 : i32, i32
  }
}

</mosaic_0001>

<llo_original>
// kernel: tpu_custom_call.1
$region0: #{tpu_custom_call.1}
  #allocation0 [shape = 'u32[]', space=smem, size = 0x4, offset = 0x4, fixed_abs, tag = 'smem constant byte address 0x4 - core index']
  #allocation1 [shape = 'u32[144,128]{1,0:T(1,128)}', space=vmem, size = 0x12000, scoped, tag = 'internal scratch']
  %s0 = inlined_call_operand.hbm [shape: f32[16,16], index: 0, kind: input, shape index: {}]
  %s1 = inlined_call_operand.hbm [shape: f32[16,32], index: 1, kind: input, shape index: {}]
  %s2 = inlined_call_operand.hbm [shape: f32[16,32], index: 2, kind: input, shape index: {}]
  %s3 = inlined_call_operand.hbm [shape: f32[1,32], index: 3, kind: input, shape index: {}]
  %s4 = inlined_call_operand.vmem [shape: f32[32,32], index: 4, kind: input, shape index: {}]
  %s5 = inlined_call_operand.vmem [shape: f32[32,32], index: 5, kind: input, shape index: {}]
  %s6 = inlined_call_operand.vmem [shape: f32[32,32], index: 6, kind: input, shape index: {}]
  %s7 = inlined_call_operand.hbm [shape: f32[1,32], index: 7, kind: input, shape index: {}]
  %s8 = inlined_call_operand.hbm [shape: f32[1,32], index: 8, kind: input, shape index: {}]
  %s9 = inlined_call_operand.hbm [shape: f32[1,32], index: 9, kind: input, shape index: {}]
  %s10 = inlined_call_operand.hbm [shape: f32[32,32], index: 10, kind: input, shape index: {}]
  %s11 = inlined_call_operand.hbm [shape: f32[1,32], index: 11, kind: input, shape index: {}]
  %s12 = inlined_call_operand.hbm [shape: f32[1,32], index: 12, kind: input, shape index: {}]
  %s13 = inlined_call_operand.hbm [shape: f32[1,32], index: 13, kind: input, shape index: {}]
  %s14 = inlined_call_operand.hbm [shape: f32[32,64], index: 14, kind: input, shape index: {}]
  %s15 = inlined_call_operand.hbm [shape: f32[1,64], index: 15, kind: input, shape index: {}]
  %s16 = inlined_call_operand.vmem [shape: f32[64,32], index: 16, kind: input, shape index: {}]
  %s17 = inlined_call_operand.hbm [shape: f32[1,32], index: 17, kind: input, shape index: {}]
  %s18 = inlined_call_operand.vmem [shape: f32[1,32], index: 18, kind: input, shape index: {}]
  %s19 = inlined_call_operand.vmem [shape: f32[1,32], index: 19, kind: input, shape index: {}]
  %s20 = inlined_call_operand.vmem [shape: f32[32,32], index: 20, kind: input, shape index: {}]
  %s21 = inlined_call_operand.hbm [shape: f32[32,32], index: 21, kind: input, shape index: {}]
  %s22 = inlined_call_operand.hbm [shape: f32[32,32], index: 22, kind: input, shape index: {}]
  %s23 = inlined_call_operand.hbm [shape: f32[1,32], index: 23, kind: input, shape index: {}]
  %s24 = inlined_call_operand.hbm [shape: f32[1,32], index: 24, kind: input, shape index: {}]
  %s25 = inlined_call_operand.hbm [shape: f32[1,32], index: 25, kind: input, shape index: {}]
  %s26 = inlined_call_operand.vmem [shape: f32[32,32], index: 26, kind: input, shape index: {}]
  %s27 = inlined_call_operand.vmem [shape: f32[1,32], index: 27, kind: input, shape index: {}]
  %s28 = inlined_call_operand.hbm [shape: f32[16,64], index: 28, kind: output, shape index: {}]
  %s29 = sld [smem:[#allocation0]]
  $region198: #{tpu_custom_call.1} parent=0
    _
  %s31 = ssub.s32 1, %s29
  %s32 = scalar_select 0, %s31, %s29
  $region1: #{tpu_custom_call.1} parent=0
    #allocation2 [shape = 'u8[8192]{0}', space=vmem, size = 0x2000, scoped, tag = 'input window, operand 0, single buffered']
    #allocation3 [shape = 's32[1]{0}', space=sflag, size = 0x4, scoped, tag = 'scoped memory for tpu_custom_call.1']
    #allocation4 [shape = 's32[1]{0}', space=sflag, size = 0x4, scoped, tag = 'scoped memory for tpu_custom_call.1']
    #allocation5 [shape = 'u8[8192]{0}', space=vmem, size = 0x2000, scoped, tag = 'input window, operand 1, single buffered']
    #allocation6 [shape = 's32[1]{0}', space=sflag, size = 0x4, scoped, tag = 'scoped memory for tpu_custom_call.1']
    #allocation7 [shape = 'u8[8192]{0}', space=vmem, size = 0x2000, scoped, tag = 'input window, operand 2, single buffered']
    #allocation8 [shape = 'u8[512]{0}', space=vmem, size = 0x400, scoped, tag = 'input window, operand 3, single buffered']
    #allocation9 [shape = 's32[1]{0}', space=sflag, size = 0x4, scoped, tag = 'scoped memory for tpu_custom_call.1']
    #allocation10 [shape = 'u8[512]{0}', space=vmem, size = 0x400, scoped, tag = 'input window, operand 7, single buffered']
    #allocation11 [shape = 'u8[512]{0}', space=vmem, size = 0x400, scoped, tag = 'input window, operand 8, single buffered']
    #allocation12 [shape = 's32[1]{0}', space=sflag, size = 0x4, scoped, tag = 'scoped memory for tpu_custom_call.1']
    #allocation13 [shape = 'u8[512]{0}', space=vmem, size = 0x400, scoped, tag = 'input window, operand 9, single buffered']
    #allocation14 [shape = 'u8[16384]{0}', space=vmem, size = 0x4000, scoped, tag = 'input window, operand 10, single buffered']
    #allocation15 [shape = 's32[1]{0}', space=sflag, size = 0x4, scoped, tag = 'scoped memory for tpu_custom_call.1']
    #allocation16 [shape = 'u8[512]{0}', space=vmem, size = 0x400, scoped, tag = 'input window, operand 11, single buffered']
    #allocation17 [shape = 'u8[512]{0}', space=vmem, size = 0x400, scoped, tag = 'input window, operand 12, single buffered']
    #allocation18 [shape = 's32[1]{0}', space=sflag, size = 0x4, scoped, tag = 'scoped memory for tpu_custom_call.1']
    #allocation19 [shape = 'u8[512]{0}', space=vmem, size = 0x400, scoped, tag = 'input window, operand 13, single buffered']
    #allocation20 [shape = 'u8[16384]{0}', space=vmem, size = 0x4000, scoped, tag = 'input window, operand 14, single buffered']
    #allocation21 [shape = 's32[1]{0}', space=sflag, size = 0x4, scoped, tag = 'scoped memory for tpu_custom_call.1']
    #allocation22 [shape = 'u8[512]{0}', space=vmem, size = 0x400, scoped, tag = 'input window, operand 15, single buffered']
    #allocation23 [shape = 'u8[512]{0}', space=vmem, size = 0x400, scoped, tag = 'input window, operand 17, single buffered']
    #allocation24 [shape = 's32[1]{0}', space=sflag, size = 0x4, scoped, tag = 'scoped memory for tpu_custom_call.1']
    #allocation25 [shape = 'u8[16384]{0}', space=vmem, size = 0x4000, scoped, tag = 'input window, operand 21, single buffered']
    #allocation26 [shape = 'u8[16384]{0}', space=vmem, size = 0x4000, scoped, tag = 'input window, operand 22, single buffered']
    #allocation27 [shape = 's32[1]{0}', space=sflag, size = 0x4, scoped, tag = 'scoped memory for tpu_custom_call.1']
    #allocation28 [shape = 'u8[512]{0}', space=vmem, size = 0x400, scoped, tag = 'input window, operand 23, single buffered']
    #allocation29 [shape = 'u8[512]{0}', space=vmem, size = 0x400, scoped, tag = 'input window, operand 24, single buffered']
    #allocation30 [shape = 's32[1]{0}', space=sflag, size = 0x4, scoped, tag = 'scoped memory for tpu_custom_call.1']
    #allocation31 [shape = 'u8[512]{0}', space=vmem, size = 0x400, scoped, tag = 'input window, operand 25, single buffered']
    #allocation32 [shape = 'u8[8192]{0}', space=vmem, size = 0x2000, scoped, tag = 'output window, operand 0, single buffered']
    %33 = vsyncpa [#allocation3], 0
    %34 = vsyncpa [#allocation6], 0
    %35 = vsyncpa [#allocation9], 0
    %36 = vsyncpa [#allocation12], 0
    %37 = vsyncpa [#allocation15], 0
    %38 = vsyncpa [#allocation18], 0
    %39 = vsyncpa [#allocation21], 0
    %40 = vsyncpa [#allocation24], 0
    %41 = vsyncpa [#allocation27], 0
    %42 = vsyncpa [#allocation30], 0
    %43 = vsyncpa [#allocation4], 0
    // Predicated region
    $region2: #{tpu_custom_call.1} parent=1 // pred_check
      _
    $region3: #{tpu_custom_call.1} parent=1 // pred_check_branch
      %45 = sbr.rel (0) target = $region5
    $region4: #{tpu_custom_call.1} parent=1 // pred_region
      %s47 = ssub.s32 256, 256
      %48 = vsyncadd [#allocation3], %s47
      %s49 = sshll.u32 [#allocation2], 4
      %s50 = int_to_ptr.vmem [resolvable:$true] %s49
      %55 = dma.hbm_to_vmem [thread:$0]  %s0, 256, %s50, [#allocation3], 128, 128, 8
    $region5: #{tpu_custom_call.1} parent=1 // pred_fallthru
      _
    // Predicated region
    $region6: #{tpu_custom_call.1} parent=1 // pred_check
      _
    $region7: #{tpu_custom_call.1} parent=1 // pred_check_branch
      %57 = sbr.rel (0) target = $region9
    $region8: #{tpu_custom_call.1} parent=1 // pred_region
      %s59 = ssub.s32 256, 256
      %60 = vsyncadd [#allocation6], %s59
      %s61 = sshll.u32 [#allocation5], 4
      %s62 = int_to_ptr.vmem [resolvable:$true] %s61
      %67 = dma.hbm_to_vmem [thread:$0]  %s1, 256, %s62, [#allocation6], 128, 128, 8
    $region9: #{tpu_custom_call.1} parent=1 // pred_fallthru
      _
    // Predicated region
    $region10: #{tpu_custom_call.1} parent=1 // pred_check
      _
    $region11: #{tpu_custom_call.1} parent=1 // pred_check_branch
      %69 = sbr.rel (0) target = $region13
    $region12: #{tpu_custom_call.1} parent=1 // pred_region
      %s71 = ssub.s32 256, 256
      %72 = vsyncadd [#allocation6], %s71
      %s73 = sshll.u32 [#allocation7], 4
      %s74 = int_to_ptr.vmem [resolvable:$true] %s73
      %79 = dma.hbm_to_vmem [thread:$0]  %s2, 256, %s74, [#allocation6], 128, 128, 8
    $region13: #{tpu_custom_call.1} parent=1 // pred_fallthru
      _
    // Predicated region
    $region14: #{tpu_custom_call.1} parent=1 // pred_check
      _
    $region15: #{tpu_custom_call.1} parent=1 // pred_check_branch
      %81 = sbr.rel (0) target = $region17
    $region16: #{tpu_custom_call.1} parent=1 // pred_region
      %s83 = ssub.s32 16, 16
      %84 = vsyncadd [#allocation9], %s83
      %s86 = sshll.u32 [#allocation8], 4
      %s87 = int_to_ptr.vmem [resolvable:$true] %s86
      %89 = dma.hbm_to_vmem [thread:$0]  %s3, 16, %s87, [#allocation9]
    $region17: #{tpu_custom_call.1} parent=1 // pred_fallthru
      _
    // Predicated region
    $region18: #{tpu_custom_call.1} parent=1 // pred_check
      _
    $region19: #{tpu_custom_call.1} parent=1 // pred_check_branch
      %91 = sbr.rel (0) target = $region21
    $region20: #{tpu_custom_call.1} parent=1 // pred_region
      _
    $region21: #{tpu_custom_call.1} parent=1 // pred_fallthru
      _
    // Predicated region
    $region22: #{tpu_custom_call.1} parent=1 // pred_check
      _
    $region23: #{tpu_custom_call.1} parent=1 // pred_check_branch
      %93 = sbr.rel (0) target = $region25
    $region24: #{tpu_custom_call.1} parent=1 // pred_region
      _
    $region25: #{tpu_custom_call.1} parent=1 // pred_fallthru
      _
    // Predicated region
    $region26: #{tpu_custom_call.1} parent=1 // pred_check
      _
    $region27: #{tpu_custom_call.1} parent=1 // pred_check_branch
      %95 = sbr.rel (0) target = $region29
    $region28: #{tpu_custom_call.1} parent=1 // pred_region
      _
    $region29: #{tpu_custom_call.1} parent=1 // pred_fallthru
      _
    // Predicated region
    $region30: #{tpu_custom_call.1} parent=1 // pred_check
      _
    $region31: #{tpu_custom_call.1} parent=1 // pred_check_branch
      %97 = sbr.rel (0) target = $region33
    $region32: #{tpu_custom_call.1} parent=1 // pred_region
      %s99 = ssub.s32 16, 16
      %100 = vsyncadd [#allocation9], %s99
      %s102 = sshll.u32 [#allocation10], 4
      %s103 = int_to_ptr.vmem [resolvable:$true] %s102
      %105 = dma.hbm_to_vmem [thread:$0]  %s7, 16, %s103, [#allocation9]
    $region33: #{tpu_custom_call.1} parent=1 // pred_fallthru
      _
    // Predicated region
    $region34: #{tpu_custom_call.1} parent=1 // pred_check
      _
    $region35: #{tpu_custom_call.1} parent=1 // pred_check_branch
      %107 = sbr.rel (0) target = $region37
    $region36: #{tpu_custom_call.1} parent=1 // pred_region
      %s109 = ssub.s32 16, 16
      %110 = vsyncadd [#allocation12], %s109
      %s112 = sshll.u32 [#allocation11], 4
      %s113 = int_to_ptr.vmem [resolvable:$true] %s112
      %115 = dma.hbm_to_vmem [thread:$0]  %s8, 16, %s113, [#allocation12]
    $region37: #{tpu_custom_call.1} parent=1 // pred_fallthru
      _
    // Predicated region
    $region38: #{tpu_custom_call.1} parent=1 // pred_check
      _
    $region39: #{tpu_custom_call.1} parent=1 // pred_check_branch
      %117 = sbr.rel (0) target = $region41
    $region40: #{tpu_custom_call.1} parent=1 // pred_region
      %s119 = ssub.s32 16, 16
      %120 = vsyncadd [#allocation12], %s119
      %s122 = sshll.u32 [#allocation13], 4
      %s123 = int_to_ptr.vmem [resolvable:$true] %s122
      %125 = dma.hbm_to_vmem [thread:$0]  %s9, 16, %s123, [#allocation12]
    $region41: #{tpu_custom_call.1} parent=1 // pred_fallthru
      _
    // Predicated region
    $region42: #{tpu_custom_call.1} parent=1 // pred_check
      _
    $region43: #{tpu_custom_call.1} parent=1 // pred_check_branch
      %127 = sbr.rel (0) target = $region45
    $region44: #{tpu_custom_call.1} parent=1 // pred_region
      %s129 = ssub.s32 512, 512
      %130 = vsyncadd [#allocation15], %s129
      %s131 = sshll.u32 [#allocation14], 4
      %s132 = int_to_ptr.vmem [resolvable:$true] %s131
      %137 = dma.hbm_to_vmem [thread:$0]  %s10, 512, %s132, [#allocation15], 128, 128, 8
    $region45: #{tpu_custom_call.1} parent=1 // pred_fallthru
      _
    // Predicated region
    $region46: #{tpu_custom_call.1} parent=1 // pred_check
      _
    $region47: #{tpu_custom_call.1} parent=1 // pred_check_branch
      %139 = sbr.rel (0) target = $region49
    $region48: #{tpu_custom_call.1} parent=1 // pred_region
      %s141 = ssub.s32 16, 16
      %142 = vsyncadd [#allocation15], %s141
      %s144 = sshll.u32 [#allocation16], 4
      %s145 = int_to_ptr.vmem [resolvable:$true] %s144
      %147 = dma.hbm_to_vmem [thread:$0]  %s11, 16, %s145, [#allocation15]
    $region49: #{tpu_custom_call.1} parent=1 // pred_fallthru
      _
    // Predicated region
    $region50: #{tpu_custom_call.1} parent=1 // pred_check
      _
    $region51: #{tpu_custom_call.1} parent=1 // pred_check_branch
      %149 = sbr.rel (0) target = $region53
    $region52: #{tpu_custom_call.1} parent=1 // pred_region
      %s151 = ssub.s32 16, 16
      %152 = vsyncadd [#allocation18], %s151
      %s154 = sshll.u32 [#allocation17], 4
      %s155 = int_to_ptr.vmem [resolvable:$true] %s154
      %157 = dma.hbm_to_vmem [thread:$0]  %s12, 16, %s155, [#allocation18]
    $region53: #{tpu_custom_call.1} parent=1 // pred_fallthru
      _
    // Predicated region
    $region54: #{tpu_custom_call.1} parent=1 // pred_check
      _
    $region55: #{tpu_custom_call.1} parent=1 // pred_check_branch
      %159 = sbr.rel (0) target = $region57
    $region56: #{tpu_custom_call.1} parent=1 // pred_region
      %s161 = ssub.s32 16, 16
      %162 = vsyncadd [#allocation18], %s161
      %s164 = sshll.u32 [#allocation19], 4
      %s165 = int_to_ptr.vmem [resolvable:$true] %s164
      %167 = dma.hbm_to_vmem [thread:$0]  %s13, 16, %s165, [#allocation18]
    $region57: #{tpu_custom_call.1} parent=1 // pred_fallthru
      _
    // Predicated region
    $region58: #{tpu_custom_call.1} parent=1 // pred_check
      _
    $region59: #{tpu_custom_call.1} parent=1 // pred_check_branch
      %169 = sbr.rel (0) target = $region61
    $region60: #{tpu_custom_call.1} parent=1 // pred_region
      %s171 = ssub.s32 512, 512
      %172 = vsyncadd [#allocation21], %s171
      %s173 = sshll.u32 [#allocation20], 4
      %s174 = int_to_ptr.vmem [resolvable:$true] %s173
      %179 = dma.hbm_to_vmem [thread:$0]  %s14, 512, %s174, [#allocation21], 128, 128, 8
    $region61: #{tpu_custom_call.1} parent=1 // pred_fallthru
      _
    // Predicated region
    $region62: #{tpu_custom_call.1} parent=1 // pred_check
      _
    $region63: #{tpu_custom_call.1} parent=1 // pred_check_branch
      %181 = sbr.rel (0) target = $region65
    $region64: #{tpu_custom_call.1} parent=1 // pred_region
      %s183 = ssub.s32 16, 16
      %184 = vsyncadd [#allocation21], %s183
      %s186 = sshll.u32 [#allocation22], 4
      %s187 = int_to_ptr.vmem [resolvable:$true] %s186
      %189 = dma.hbm_to_vmem [thread:$0]  %s15, 16, %s187, [#allocation21]
    $region65: #{tpu_custom_call.1} parent=1 // pred_fallthru
      _
    // Predicated region
    $region66: #{tpu_custom_call.1} parent=1 // pred_check
      _
    $region67: #{tpu_custom_call.1} parent=1 // pred_check_branch
      %191 = sbr.rel (0) target = $region69
    $region68: #{tpu_custom_call.1} parent=1 // pred_region
      _
    $region69: #{tpu_custom_call.1} parent=1 // pred_fallthru
      _
    // Predicated region
    $region70: #{tpu_custom_call.1} parent=1 // pred_check
      _
    $region71: #{tpu_custom_call.1} parent=1 // pred_check_branch
      %193 = sbr.rel (0) target = $region73
    $region72: #{tpu_custom_call.1} parent=1 // pred_region
      %s195 = ssub.s32 16, 16
      %196 = vsyncadd [#allocation24], %s195
      %s198 = sshll.u32 [#allocation23], 4
      %s199 = int_to_ptr.vmem [resolvable:$true] %s198
      %201 = dma.hbm_to_vmem [thread:$0]  %s17, 16, %s199, [#allocation24]
    $region73: #{tpu_custom_call.1} parent=1 // pred_fallthru
      _
    // Predicated region
    $region74: #{tpu_custom_call.1} parent=1 // pred_check
      _
    $region75: #{tpu_custom_call.1} parent=1 // pred_check_branch
      %203 = sbr.rel (0) target = $region77
    $region76: #{tpu_custom_call.1} parent=1 // pred_region
      _
    $region77: #{tpu_custom_call.1} parent=1 // pred_fallthru
      _
    // Predicated region
    $region78: #{tpu_custom_call.1} parent=1 // pred_check
      _
    $region79: #{tpu_custom_call.1} parent=1 // pred_check_branch
      %205 = sbr.rel (0) target = $region81
    $region80: #{tpu_custom_call.1} parent=1 // pred_region
      _
    $region81: #{tpu_custom_call.1} parent=1 // pred_fallthru
      _
    // Predicated region
    $region82: #{tpu_custom_call.1} parent=1 // pred_check
      _
    $region83: #{tpu_custom_call.1} parent=1 // pred_check_branch
      %207 = sbr.rel (0) target = $region85
    $region84: #{tpu_custom_call.1} parent=1 // pred_region
      _
    $region85: #{tpu_custom_call.1} parent=1 // pred_fallthru
      _
    // Predicated region
    $region86: #{tpu_custom_call.1} parent=1 // pred_check
      _
    $region87: #{tpu_custom_call.1} parent=1 // pred_check_branch
      %209 = sbr.rel (0) target = $region89
    $region88: #{tpu_custom_call.1} parent=1 // pred_region
      %s211 = ssub.s32 512, 512
      %212 = vsyncadd [#allocation24], %s211
      %s213 = sshll.u32 [#allocation25], 4
      %s214 = int_to_ptr.vmem [resolvable:$true] %s213
      %219 = dma.hbm_to_vmem [thread:$0]  %s21, 512, %s214, [#allocation24], 128, 128, 8
    $region89: #{tpu_custom_call.1} parent=1 // pred_fallthru
      _
    // Predicated region
    $region90: #{tpu_custom_call.1} parent=1 // pred_check
      _
    $region91: #{tpu_custom_call.1} parent=1 // pred_check_branch
      %221 = sbr.rel (0) target = $region93
    $region92: #{tpu_custom_call.1} parent=1 // pred_region
      %s223 = ssub.s32 512, 512
      %224 = vsyncadd [#allocation27], %s223
      %s225 = sshll.u32 [#allocation26], 4
      %s226 = int_to_ptr.vmem [resolvable:$true] %s225
      %231 = dma.hbm_to_vmem [thread:$0]  %s22, 512, %s226, [#allocation27], 128, 128, 8
    $region93: #{tpu_custom_call.1} parent=1 // pred_fallthru
      _
    // Predicated region
    $region94: #{tpu_custom_call.1} parent=1 // pred_check
      _
    $region95: #{tpu_custom_call.1} parent=1 // pred_check_branch
      %233 = sbr.rel (0) target = $region97
    $region96: #{tpu_custom_call.1} parent=1 // pred_region
      %s235 = ssub.s32 16, 16
      %236 = vsyncadd [#allocation27], %s235
      %s238 = sshll.u32 [#allocation28], 4
      %s239 = int_to_ptr.vmem [resolvable:$true] %s238
      %241 = dma.hbm_to_vmem [thread:$0]  %s23, 16, %s239, [#allocation27]
    $region97: #{tpu_custom_call.1} parent=1 // pred_fallthru
      _
    // Predicated region
    $region98: #{tpu_custom_call.1} parent=1 // pred_check
      _
    $region99: #{tpu_custom_call.1} parent=1 // pred_check_branch
      %243 = sbr.rel (0) target = $region101
    $region100: #{tpu_custom_call.1} parent=1 // pred_region
      %s245 = ssub.s32 16, 16
      %246 = vsyncadd [#allocation30], %s245
      %s248 = sshll.u32 [#allocation29], 4
      %s249 = int_to_ptr.vmem [resolvable:$true] %s248
      %251 = dma.hbm_to_vmem [thread:$0]  %s24, 16, %s249, [#allocation30]
    $region101: #{tpu_custom_call.1} parent=1 // pred_fallthru
      _
    // Predicated region
    $region102: #{tpu_custom_call.1} parent=1 // pred_check
      _
    $region103: #{tpu_custom_call.1} parent=1 // pred_check_branch
      %253 = sbr.rel (0) target = $region105
    $region104: #{tpu_custom_call.1} parent=1 // pred_region
      %s255 = ssub.s32 16, 16
      %256 = vsyncadd [#allocation30], %s255
      %s258 = sshll.u32 [#allocation31], 4
      %s259 = int_to_ptr.vmem [resolvable:$true] %s258
      %261 = dma.hbm_to_vmem [thread:$0]  %s25, 16, %s259, [#allocation30]
    $region105: #{tpu_custom_call.1} parent=1 // pred_fallthru
      _
    // Predicated region
    $region106: #{tpu_custom_call.1} parent=1 // pred_check
      _
    $region107: #{tpu_custom_call.1} parent=1 // pred_check_branch
      %263 = sbr.rel (0) target = $region109
    $region108: #{tpu_custom_call.1} parent=1 // pred_region
      _
    $region109: #{tpu_custom_call.1} parent=1 // pred_fallthru
      _
    // Predicated region
    $region110: #{tpu_custom_call.1} parent=1 // pred_check
      _
    $region111: #{tpu_custom_call.1} parent=1 // pred_check_branch
      %265 = sbr.rel (0) target = $region113
    $region112: #{tpu_custom_call.1} parent=1 // pred_region
      _
    $region113: #{tpu_custom_call.1} parent=1 // pred_fallthru
      _
    // Predicated region
    $region114: #{tpu_custom_call.1} parent=1 // pred_check
      _
    $region115: #{tpu_custom_call.1} parent=1 // pred_check_branch
      %267 = sbr.rel (0) target = $region117
    $region116: #{tpu_custom_call.1} parent=1 // pred_region
      %268 = dma.done [#allocation3], 256
    $region117: #{tpu_custom_call.1} parent=1 // pred_fallthru
      _
    // Predicated region
    $region118: #{tpu_custom_call.1} parent=1 // pred_check
      _
    $region119: #{tpu_custom_call.1} parent=1 // pred_check_branch
      %270 = sbr.rel (0) target = $region121
    $region120: #{tpu_custom_call.1} parent=1 // pred_region
      %271 = dma.done [#allocation6], 256
    $region121: #{tpu_custom_call.1} parent=1 // pred_fallthru
      _
    // Predicated region
    $region122: #{tpu_custom_call.1} parent=1 // pred_check
      _
    $region123: #{tpu_custom_call.1} parent=1 // pred_check_branch
      %273 = sbr.rel (0) target = $region125
    $region124: #{tpu_custom_call.1} parent=1 // pred_region
      %274 = dma.done [#allocation6], 256
    $region125: #{tpu_custom_call.1} parent=1 // pred_fallthru
      _
    // Predicated region
    $region126: #{tpu_custom_call.1} parent=1 // pred_check
      _
    $region127: #{tpu_custom_call.1} parent=1 // pred_check_branch
      %276 = sbr.rel (0) target = $region129
    $region128: #{tpu_custom_call.1} parent=1 // pred_region
      %277 = dma.done [#allocation9], 16
    $region129: #{tpu_custom_call.1} parent=1 // pred_fallthru
      _
    // Predicated region
    $region130: #{tpu_custom_call.1} parent=1 // pred_check
      _
    $region131: #{tpu_custom_call.1} parent=1 // pred_check_branch
      %279 = sbr.rel (0) target = $region133
    $region132: #{tpu_custom_call.1} parent=1 // pred_region
      %280 = dma.done [#allocation9], 16
    $region133: #{tpu_custom_call.1} parent=1 // pred_fallthru
      _
    // Predicated region
    $region134: #{tpu_custom_call.1} parent=1 // pred_check
      _
    $region135: #{tpu_custom_call.1} parent=1 // pred_check_branch
      %282 = sbr.rel (0) target = $region137
    $region136: #{tpu_custom_call.1} parent=1 // pred_region
      %283 = dma.done [#allocation12], 16
    $region137: #{tpu_custom_call.1} parent=1 // pred_fallthru
      _
    // Predicated region
    $region138: #{tpu_custom_call.1} parent=1 // pred_check
      _
    $region139: #{tpu_custom_call.1} parent=1 // pred_check_branch
      %285 = sbr.rel (0) target = $region141
    $region140: #{tpu_custom_call.1} parent=1 // pred_region
      %286 = dma.done [#allocation12], 16
    $region141: #{tpu_custom_call.1} parent=1 // pred_fallthru
      _
    // Predicated region
    $region142: #{tpu_custom_call.1} parent=1 // pred_check
      _
    $region143: #{tpu_custom_call.1} parent=1 // pred_check_branch
      %288 = sbr.rel (0) target = $region145
    $region144: #{tpu_custom_call.1} parent=1 // pred_region
      %289 = dma.done [#allocation15], 512
    $region145: #{tpu_custom_call.1} parent=1 // pred_fallthru
      _
    // Predicated region
    $region146: #{tpu_custom_call.1} parent=1 // pred_check
      _
    $region147: #{tpu_custom_call.1} parent=1 // pred_check_branch
      %291 = sbr.rel (0) target = $region149
    $region148: #{tpu_custom_call.1} parent=1 // pred_region
      %292 = dma.done [#allocation15], 16
    $region149: #{tpu_custom_call.1} parent=1 // pred_fallthru
      _
    // Predicated region
    $region150: #{tpu_custom_call.1} parent=1 // pred_check
      _
    $region151: #{tpu_custom_call.1} parent=1 // pred_check_branch
      %294 = sbr.rel (0) target = $region153
    $region152: #{tpu_custom_call.1} parent=1 // pred_region
      %295 = dma.done [#allocation18], 16
    $region153: #{tpu_custom_call.1} parent=1 // pred_fallthru
      _
    // Predicated region
    $region154: #{tpu_custom_call.1} parent=1 // pred_check
      _
    $region155: #{tpu_custom_call.1} parent=1 // pred_check_branch
      %297 = sbr.rel (0) target = $region157
    $region156: #{tpu_custom_call.1} parent=1 // pred_region
      %298 = dma.done [#allocation18], 16
    $region157: #{tpu_custom_call.1} parent=1 // pred_fallthru
      _
    // Predicated region
    $region158: #{tpu_custom_call.1} parent=1 // pred_check
      _
    $region159: #{tpu_custom_call.1} parent=1 // pred_check_branch
      %300 = sbr.rel (0) target = $region161
    $region160: #{tpu_custom_call.1} parent=1 // pred_region
      %301 = dma.done [#allocation21], 512
    $region161: #{tpu_custom_call.1} parent=1 // pred_fallthru
      _
    // Predicated region
    $region162: #{tpu_custom_call.1} parent=1 // pred_check
      _
    $region163: #{tpu_custom_call.1} parent=1 // pred_check_branch
      %303 = sbr.rel (0) target = $region165
    $region164: #{tpu_custom_call.1} parent=1 // pred_region
      %304 = dma.done [#allocation21], 16
    $region165: #{tpu_custom_call.1} parent=1 // pred_fallthru
      _
    // Predicated region
    $region166: #{tpu_custom_call.1} parent=1 // pred_check
      _
    $region167: #{tpu_custom_call.1} parent=1 // pred_check_branch
      %306 = sbr.rel (0) target = $region169
    $region168: #{tpu_custom_call.1} parent=1 // pred_region
      %307 = dma.done [#allocation24], 16
    $region169: #{tpu_custom_call.1} parent=1 // pred_fallthru
      _
    // Predicated region
    $region170: #{tpu_custom_call.1} parent=1 // pred_check
      _
    $region171: #{tpu_custom_call.1} parent=1 // pred_check_branch
      %309 = sbr.rel (0) target = $region173
    $region172: #{tpu_custom_call.1} parent=1 // pred_region
      %310 = dma.done [#allocation24], 512
    $region173: #{tpu_custom_call.1} parent=1 // pred_fallthru
      _
    // Predicated region
    $region174: #{tpu_custom_call.1} parent=1 // pred_check
      _
    $region175: #{tpu_custom_call.1} parent=1 // pred_check_branch
      %312 = sbr.rel (0) target = $region177
    $region176: #{tpu_custom_call.1} parent=1 // pred_region
      %313 = dma.done [#allocation27], 512
    $region177: #{tpu_custom_call.1} parent=1 // pred_fallthru
      _
    // Predicated region
    $region178: #{tpu_custom_call.1} parent=1 // pred_check
      _
    $region179: #{tpu_custom_call.1} parent=1 // pred_check_branch
      %315 = sbr.rel (0) target = $region181
    $region180: #{tpu_custom_call.1} parent=1 // pred_region
      %316 = dma.done [#allocation27], 16
    $region181: #{tpu_custom_call.1} parent=1 // pred_fallthru
      _
    // Predicated region
    $region182: #{tpu_custom_call.1} parent=1 // pred_check
      _
    $region183: #{tpu_custom_call.1} parent=1 // pred_check_branch
      %318 = sbr.rel (0) target = $region185
    $region184: #{tpu_custom_call.1} parent=1 // pred_region
      %319 = dma.done [#allocation30], 16
    $region185: #{tpu_custom_call.1} parent=1 // pred_fallthru
      _
    // Predicated region
    $region186: #{tpu_custom_call.1} parent=1 // pred_check
      _
    $region187: #{tpu_custom_call.1} parent=1 // pred_check_branch
      %321 = sbr.rel (0) target = $region189
    $region188: #{tpu_custom_call.1} parent=1 // pred_region
      %322 = dma.done [#allocation30], 16
    $region189: #{tpu_custom_call.1} parent=1 // pred_fallthru
      _
    %v323 = vld [vmem:[#allocation7] sm:$0xff]
    %v324 = vld [vmem:[#allocation7 + $0x8] sm:$0xff]
    %v325 = vld [vmem:[#allocation8] sm:$0x1]
    %v326 = vld [vmem:[%s4] sm:$0xff]
    %v327 = vld [vmem:[%s4 + $0x8] sm:$0xff]
    %v328 = vld [vmem:[%s4 + $0x10] sm:$0xff]
    %v329 = vld [vmem:[%s4 + $0x18] sm:$0xff]
    %v330 = vld [vmem:[%s5] sm:$0xff]
    %v331 = vld [vmem:[%s5 + $0x8] sm:$0xff]
    %v332 = vld [vmem:[%s5 + $0x10] sm:$0xff]
    %v333 = vld [vmem:[%s5 + $0x18] sm:$0xff]
    %v334 = vld [vmem:[%s6] sm:$0xff]
    %v335 = vld [vmem:[%s6 + $0x8] sm:$0xff]
    %v336 = vld [vmem:[%s6 + $0x10] sm:$0xff]
    %v337 = vld [vmem:[%s6 + $0x18] sm:$0xff]
    %v338 = vld [vmem:[#allocation10] sm:$0x1]
    %v339 = vld [vmem:[#allocation11] sm:$0x1]
    %v340 = vld [vmem:[#allocation13] sm:$0x1]
    %v341 = vld [vmem:[#allocation14] sm:$0xff]
    %v342 = vld [vmem:[#allocation14 + $0x8] sm:$0xff]
    %v343 = vld [vmem:[#allocation14 + $0x10] sm:$0xff]
    %v344 = vld [vmem:[#allocation14 + $0x18] sm:$0xff]
    %v345 = vld [vmem:[#allocation16] sm:$0x1]
    %v346 = vld [vmem:[#allocation17] sm:$0x1]
    %v347 = vld [vmem:[#allocation19] sm:$0x1]
    %v348 = vld [vmem:[#allocation20] sm:$0xff]
    %v349 = vld [vmem:[#allocation20 + $0x8] sm:$0xff]
    %v350 = vld [vmem:[#allocation20 + $0x10] sm:$0xff]
    %v351 = vld [vmem:[#allocation20 + $0x18] sm:$0xff]
    %v352 = vld [vmem:[#allocation22] sm:$0x1]
    %v353 = vld [vmem:[%s16] sm:$0xff]
    %v354 = vld [vmem:[%s16 + $0x8] sm:$0xff]
    %v355 = vld [vmem:[%s16 + $0x10] sm:$0xff]
    %v356 = vld [vmem:[%s16 + $0x18] sm:$0xff]
    %v357 = vld [vmem:[%s16 + $0x20] sm:$0xff]
    %v358 = vld [vmem:[%s16 + $0x28] sm:$0xff]
    %v359 = vld [vmem:[%s16 + $0x30] sm:$0xff]
    %v360 = vld [vmem:[%s16 + $0x38] sm:$0xff]
    %v361 = vld [vmem:[#allocation23] sm:$0x1]
    %v362 = vld [vmem:[%s18] sm:$0x1]
    %v363 = vld [vmem:[%s19] sm:$0x1]
    %v364 = vld [vmem:[%s20] sm:$0xff]
    %v365 = vld [vmem:[%s20 + $0x8] sm:$0xff]
    %v366 = vld [vmem:[%s20 + $0x10] sm:$0xff]
    %v367 = vld [vmem:[%s20 + $0x18] sm:$0xff]
    %v368 = vld [vmem:[#allocation25] sm:$0xff]
    %v369 = vld [vmem:[#allocation25 + $0x8] sm:$0xff]
    %v370 = vld [vmem:[#allocation25 + $0x10] sm:$0xff]
    %v371 = vld [vmem:[#allocation25 + $0x18] sm:$0xff]
    %v372 = vld [vmem:[#allocation26] sm:$0xff]
    %v373 = vld [vmem:[#allocation26 + $0x8] sm:$0xff]
    %v374 = vld [vmem:[#allocation26 + $0x10] sm:$0xff]
    %v375 = vld [vmem:[#allocation26 + $0x18] sm:$0xff]
    %v376 = vld [vmem:[#allocation28] sm:$0x1]
    %v377 = vld [vmem:[#allocation29] sm:$0x1]
    %v378 = vld [vmem:[#allocation31] sm:$0x1]
    %v379 = vld [vmem:[%s26] sm:$0xff]
    %v380 = vld [vmem:[%s26 + $0x8] sm:$0xff]
    %v381 = vld [vmem:[%s26 + $0x10] sm:$0xff]
    %v382 = vld [vmem:[%s26 + $0x18] sm:$0xff]
    %v383 = vld [vmem:[%s27] sm:$0x1]
    %v384 = vld [vmem:[#allocation2] sm:$0xff]
    %v385 = vld [vmem:[#allocation2 + $0x8] sm:$0xff]
    %v386 = vld [vmem:[#allocation5] sm:$0xff]
    %v387 = vld [vmem:[#allocation5 + $0x8] sm:$0xff]
    %v389 = vlaneseq
    %v390 = vshrl.u32 %v389, 7
    %v391 = vsub.s32 0, %v390
    %v392 = vrot.slane %v325, %v391
    %vm394 = vcmask 130048
    %v396 = vsel %vm394, %v384, 0
    %v399 = vsel %vm394, %v385, 0
    %401 = vmatprep.subr.mxu0 0.0
    %402 = vmatpush1.msra.mxu0 %v323
    %403 = vmatprep.subr.mxu0 0.0
    %404 = vmatpush1.msra.mxu0 %v324
    %405 = vmatprep.subr.mxu0 0.0
    %406 = vmatpush1.msra.mxu0 0.0
    %407 = vmatprep.subr.mxu0 0.0
    %408 = vmatpush1.msra.mxu0 0.0
    %409 = vmatprep.subr.mxu0 0.0
    %410 = vmatpush1.msra.mxu0 0.0
    %411 = vmatprep.subr.mxu0 0.0
    %412 = vmatpush1.msra.mxu0 0.0
    %413 = vmatprep.subr.mxu0 0.0
    %414 = vmatpush1.msra.mxu0 0.0
    %415 = vmatprep.subr.mxu0 0.0
    %416 = vmatpush1.msra.mxu0 0.0
    %417 = vmatprep.subr.mxu0 0.0
    %418 = vmatpush1.msra.mxu0 0.0
    %419 = vmatprep.subr.mxu0 0.0
    %420 = vmatpush1.msra.mxu0 0.0
    %421 = vmatprep.subr.mxu0 0.0
    %422 = vmatpush1.msra.mxu0 0.0
    %423 = vmatprep.subr.mxu0 0.0
    %424 = vmatpush1.msra.mxu0 0.0
    %425 = vmatprep.subr.mxu0 0.0
    %426 = vmatpush1.msra.mxu0 0.0
    %427 = vmatprep.subr.mxu0 0.0
    %428 = vmatpush1.msra.mxu0 0.0
    %429 = vmatprep.subr.mxu0 0.0
    %430 = vmatpush1.msra.mxu0 0.0
    %431 = vmatprep.subr.mxu0 0.0
    %432 = vmatpush1.msra.mxu0 0.0
    %433 = vmatprep.subr.mxu0 0.0
    %434 = vmatpush1.msra.mxu0 0.0
    %435 = vmatprep.subr.mxu0 0.0
    %436 = vmatpush1.msra.mxu0 0.0
    %437 = vmatprep.subr.mxu0 0.0
    %438 = vmatpush1.msra.mxu0 0.0
    %439 = vmatprep.subr.mxu0 0.0
    %440 = vmatpush1.msra.mxu0 0.0
    %441 = vmatprep.subr.mxu0 0.0
    %442 = vmatpush1.msra.mxu0 0.0
    %443 = vmatprep.subr.mxu0 0.0
    %444 = vmatpush1.msra.mxu0 0.0
    %445 = vmatprep.subr.mxu0 0.0
    %446 = vmatpush1.msra.mxu0 0.0
    %447 = vmatprep.subr.mxu0 0.0
    %448 = vmatpush1.msra.mxu0 0.0
    %449 = vmatprep.subr.mxu0 0.0
    %450 = vmatpush1.msra.mxu0 0.0
    %451 = vmatprep.subr.mxu0 0.0
    %452 = vmatpush1.msra.mxu0 0.0
    %453 = vmatprep.subr.mxu0 0.0
    %454 = vmatpush1.msra.mxu0 0.0
    %455 = vmatprep.subr.mxu0 0.0
    %456 = vmatpush1.msra.mxu0 0.0
    %457 = vmatprep.subr.mxu0 0.0
    %458 = vmatpush1.msra.mxu0 0.0
    %459 = vmatprep.subr.mxu0 0.0
    %460 = vmatpush1.msra.mxu0 0.0
    %461 = vmatprep.subr.mxu0 0.0
    %462 = vmatpush1.msra.mxu0 0.0
    %463 = vmatprep.subr.mxu0 0.0
    %464 = vmatpush1.msra.mxu0 0.0
    %465 = vmatprep.mubr.f32.mxu0 0.0
    %466 = vmatmul.mubr.f32.gmra.mrb[0].mxu0 %v396
    %v467 = vpop.f32.mrb[0].mxu0
    %v468 = vadd.f32 %v392, %v467
    %v469 = vpop.f32.mrb[0].mxu0
    %470 = vmatprep.mubr.f32.mxu0 0.0
    %471 = vmatmul.mubr.f32.gmra.mrb[0].mxu0 %v399
    %v472 = vpop.f32.mrb[0].mxu0
    %v473 = vadd.f32 %v392, %v472
    %v474 = vpop.f32.mrb[0].mxu0
    %475 = vdwg.mxu0
    %v477 = vlaneseq
    %v478 = vshrl.u32 %v477, 7
    %v479 = vsub.s32 0, %v478
    %v480 = vrot.slane %v338, %v479
    %vm482 = vcmask 261120
    %v484 = vsel %vm482, %v468, 0
    %v487 = vsel %vm482, %v473, 0
    %489 = vmatprep.subr.mxu0 0.0
    %490 = vmatpush1.msra.mxu0 %v326
    %491 = vmatprep.subr.mxu0 0.0
    %492 = vmatpush1.msra.mxu0 %v327
    %493 = vmatprep.subr.mxu0 0.0
    %494 = vmatpush1.msra.mxu0 %v328
    %495 = vmatprep.subr.mxu0 0.0
    %496 = vmatpush1.msra.mxu0 %v329
    %497 = vmatprep.subr.mxu0 0.0
    %498 = vmatpush1.msra.mxu0 0.0
    %499 = vmatprep.subr.mxu0 0.0
    %500 = vmatpush1.msra.mxu0 0.0
    %501 = vmatprep.subr.mxu0 0.0
    %502 = vmatpush1.msra.mxu0 0.0
    %503 = vmatprep.subr.mxu0 0.0
    %504 = vmatpush1.msra.mxu0 0.0
    %505 = vmatprep.subr.mxu0 0.0
    %506 = vmatpush1.msra.mxu0 0.0
    %507 = vmatprep.subr.mxu0 0.0
    %508 = vmatpush1.msra.mxu0 0.0
    %509 = vmatprep.subr.mxu0 0.0
    %510 = vmatpush1.msra.mxu0 0.0
    %511 = vmatprep.subr.mxu0 0.0
    %512 = vmatpush1.msra.mxu0 0.0
    %513 = vmatprep.subr.mxu0 0.0
    %514 = vmatpush1.msra.mxu0 0.0
    %515 = vmatprep.subr.mxu0 0.0
    %516 = vmatpush1.msra.mxu0 0.0
    %517 = vmatprep.subr.mxu0 0.0
    %518 = vmatpush1.msra.mxu0 0.0
    %519 = vmatprep.subr.mxu0 0.0
    %520 = vmatpush1.msra.mxu0 0.0
    %521 = vmatprep.subr.mxu0 0.0
    %522 = vmatpush1.msra.mxu0 0.0
    %523 = vmatprep.subr.mxu0 0.0
    %524 = vmatpush1.msra.mxu0 0.0
    %525 = vmatprep.subr.mxu0 0.0
    %526 = vmatpush1.msra.mxu0 0.0
    %527 = vmatprep.subr.mxu0 0.0
    %528 = vmatpush1.msra.mxu0 0.0
    %529 = vmatprep.subr.mxu0 0.0
    %530 = vmatpush1.msra.mxu0 0.0
    %531 = vmatprep.subr.mxu0 0.0
    %532 = vmatpush1.msra.mxu0 0.0
    %533 = vmatprep.subr.mxu0 0.0
    %534 = vmatpush1.msra.mxu0 0.0
    %535 = vmatprep.subr.mxu0 0.0
    %536 = vmatpush1.msra.mxu0 0.0
    %537 = vmatprep.subr.mxu0 0.0
    %538 = vmatpush1.msra.mxu0 0.0
    %539 = vmatprep.subr.mxu0 0.0
    %540 = vmatpush1.msra.mxu0 0.0
    %541 = vmatprep.subr.mxu0 0.0
    %542 = vmatpush1.msra.mxu0 0.0
    %543 = vmatprep.subr.mxu0 0.0
    %544 = vmatpush1.msra.mxu0 0.0
    %545 = vmatprep.subr.mxu0 0.0
    %546 = vmatpush1.msra.mxu0 0.0
    %547 = vmatprep.subr.mxu0 0.0
    %548 = vmatpush1.msra.mxu0 0.0
    %549 = vmatprep.subr.mxu0 0.0
    %550 = vmatpush1.msra.mxu0 0.0
    %551 = vmatprep.subr.mxu0 0.0
    %552 = vmatpush1.msra.mxu0 0.0
    %553 = vmatprep.mubr.f32.mxu0 0.0
    %554 = vmatmul.mubr.f32.gmra.mrb[0].mxu0 %v484
    %v555 = vpop.f32.mrb[0].mxu0
    %v556 = vadd.f32 %v480, %v555
    %v557 = vpop.f32.mrb[0].mxu0
    %558 = vmatprep.mubr.f32.mxu0 0.0
    %559 = vmatmul.mubr.f32.gmra.mrb[0].mxu0 %v487
    %v560 = vpop.f32.mrb[0].mxu0
    %v561 = vadd.f32 %v480, %v560
    %v562 = vpop.f32.mrb[0].mxu0
    %563 = vdwg.mxu0
    %v565 = vlaneseq
    %v566 = vshrl.u32 %v565, 7
    %v567 = vsub.s32 0, %v566
    %v568 = vrot.slane %v339, %v567
    %570 = vmatprep.subr.mxu0 0.0
    %571 = vmatpush1.msra.mxu0 %v330
    %572 = vmatprep.subr.mxu0 0.0
    %573 = vmatpush1.msra.mxu0 %v331
    %574 = vmatprep.subr.mxu0 0.0
    %575 = vmatpush1.msra.mxu0 %v332
    %576 = vmatprep.subr.mxu0 0.0
    %577 = vmatpush1.msra.mxu0 %v333
    %578 = vmatprep.subr.mxu0 0.0
    %579 = vmatpush1.msra.mxu0 0.0
    %580 = vmatprep.subr.mxu0 0.0
    %581 = vmatpush1.msra.mxu0 0.0
    %582 = vmatprep.subr.mxu0 0.0
    %583 = vmatpush1.msra.mxu0 0.0
    %584 = vmatprep.subr.mxu0 0.0
    %585 = vmatpush1.msra.mxu0 0.0
    %586 = vmatprep.subr.mxu0 0.0
    %587 = vmatpush1.msra.mxu0 0.0
    %588 = vmatprep.subr.mxu0 0.0
    %589 = vmatpush1.msra.mxu0 0.0
    %590 = vmatprep.subr.mxu0 0.0
    %591 = vmatpush1.msra.mxu0 0.0
    %592 = vmatprep.subr.mxu0 0.0
    %593 = vmatpush1.msra.mxu0 0.0
    %594 = vmatprep.subr.mxu0 0.0
    %595 = vmatpush1.msra.mxu0 0.0
    %596 = vmatprep.subr.mxu0 0.0
    %597 = vmatpush1.msra.mxu0 0.0
    %598 = vmatprep.subr.mxu0 0.0
    %599 = vmatpush1.msra.mxu0 0.0
    %600 = vmatprep.subr.mxu0 0.0
    %601 = vmatpush1.msra.mxu0 0.0
    %602 = vmatprep.subr.mxu0 0.0
    %603 = vmatpush1.msra.mxu0 0.0
    %604 = vmatprep.subr.mxu0 0.0
    %605 = vmatpush1.msra.mxu0 0.0
    %606 = vmatprep.subr.mxu0 0.0
    %607 = vmatpush1.msra.mxu0 0.0
    %608 = vmatprep.subr.mxu0 0.0
    %609 = vmatpush1.msra.mxu0 0.0
    %610 = vmatprep.subr.mxu0 0.0
    %611 = vmatpush1.msra.mxu0 0.0
    %612 = vmatprep.subr.mxu0 0.0
    %613 = vmatpush1.msra.mxu0 0.0
    %614 = vmatprep.subr.mxu0 0.0
    %615 = vmatpush1.msra.mxu0 0.0
    %616 = vmatprep.subr.mxu0 0.0
    %617 = vmatpush1.msra.mxu0 0.0
    %618 = vmatprep.subr.mxu0 0.0
    %619 = vmatpush1.msra.mxu0 0.0
    %620 = vmatprep.subr.mxu0 0.0
    %621 = vmatpush1.msra.mxu0 0.0
    %622 = vmatprep.subr.mxu0 0.0
    %623 = vmatpush1.msra.mxu0 0.0
    %624 = vmatprep.subr.mxu0 0.0
    %625 = vmatpush1.msra.mxu0 0.0
    %626 = vmatprep.subr.mxu0 0.0
    %627 = vmatpush1.msra.mxu0 0.0
    %628 = vmatprep.subr.mxu0 0.0
    %629 = vmatpush1.msra.mxu0 0.0
    %630 = vmatprep.subr.mxu0 0.0
    %631 = vmatpush1.msra.mxu0 0.0
    %632 = vmatprep.subr.mxu0 0.0
    %633 = vmatpush1.msra.mxu0 0.0
    %634 = vmatprep.mubr.f32.mxu0 0.0
    %635 = vmatmul.mubr.f32.gmra.mrb[0].mxu0 %v484
    %v636 = vpop.f32.mrb[0].mxu0
    %v637 = vadd.f32 %v568, %v636
    %v638 = vpop.f32.mrb[0].mxu0
    %639 = vmatprep.mubr.f32.mxu0 0.0
    %640 = vmatmul.mubr.f32.gmra.mrb[0].mxu0 %v487
    %v641 = vpop.f32.mrb[0].mxu0
    %v642 = vadd.f32 %v568, %v641
    %v643 = vpop.f32.mrb[0].mxu0
    %644 = vdwg.mxu0
    %v646 = vlaneseq
    %v647 = vshrl.u32 %v646, 7
    %v648 = vsub.s32 0, %v647
    %v649 = vrot.slane %v340, %v648
    %651 = vmatprep.subr.mxu0 0.0
    %652 = vmatpush1.msra.mxu0 %v334
    %653 = vmatprep.subr.mxu0 0.0
    %654 = vmatpush1.msra.mxu0 %v335
    %655 = vmatprep.subr.mxu0 0.0
    %656 = vmatpush1.msra.mxu0 %v336
    %657 = vmatprep.subr.mxu0 0.0
    %658 = vmatpush1.msra.mxu0 %v337
    %659 = vmatprep.subr.mxu0 0.0
    %660 = vmatpush1.msra.mxu0 0.0
    %661 = vmatprep.subr.mxu0 0.0
    %662 = vmatpush1.msra.mxu0 0.0
    %663 = vmatprep.subr.mxu0 0.0
    %664 = vmatpush1.msra.mxu0 0.0
    %665 = vmatprep.subr.mxu0 0.0
    %666 = vmatpush1.msra.mxu0 0.0
    %667 = vmatprep.subr.mxu0 0.0
    %668 = vmatpush1.msra.mxu0 0.0
    %669 = vmatprep.subr.mxu0 0.0
    %670 = vmatpush1.msra.mxu0 0.0
    %671 = vmatprep.subr.mxu0 0.0
    %672 = vmatpush1.msra.mxu0 0.0
    %673 = vmatprep.subr.mxu0 0.0
    %674 = vmatpush1.msra.mxu0 0.0
    %675 = vmatprep.subr.mxu0 0.0
    %676 = vmatpush1.msra.mxu0 0.0
    %677 = vmatprep.subr.mxu0 0.0
    %678 = vmatpush1.msra.mxu0 0.0
    %679 = vmatprep.subr.mxu0 0.0
    %680 = vmatpush1.msra.mxu0 0.0
    %681 = vmatprep.subr.mxu0 0.0
    %682 = vmatpush1.msra.mxu0 0.0
    %683 = vmatprep.subr.mxu0 0.0
    %684 = vmatpush1.msra.mxu0 0.0
    %685 = vmatprep.subr.mxu0 0.0
    %686 = vmatpush1.msra.mxu0 0.0
    %687 = vmatprep.subr.mxu0 0.0
    %688 = vmatpush1.msra.mxu0 0.0
    %689 = vmatprep.subr.mxu0 0.0
    %690 = vmatpush1.msra.mxu0 0.0
    %691 = vmatprep.subr.mxu0 0.0
    %692 = vmatpush1.msra.mxu0 0.0
    %693 = vmatprep.subr.mxu0 0.0
    %694 = vmatpush1.msra.mxu0 0.0
    %695 = vmatprep.subr.mxu0 0.0
    %696 = vmatpush1.msra.mxu0 0.0
    %697 = vmatprep.subr.mxu0 0.0
    %698 = vmatpush1.msra.mxu0 0.0
    %699 = vmatprep.subr.mxu0 0.0
    %700 = vmatpush1.msra.mxu0 0.0
    %701 = vmatprep.subr.mxu0 0.0
    %702 = vmatpush1.msra.mxu0 0.0
    %703 = vmatprep.subr.mxu0 0.0
    %704 = vmatpush1.msra.mxu0 0.0
    %705 = vmatprep.subr.mxu0 0.0
    %706 = vmatpush1.msra.mxu0 0.0
    %707 = vmatprep.subr.mxu0 0.0
    %708 = vmatpush1.msra.mxu0 0.0
    %709 = vmatprep.subr.mxu0 0.0
    %710 = vmatpush1.msra.mxu0 0.0
    %711 = vmatprep.subr.mxu0 0.0
    %712 = vmatpush1.msra.mxu0 0.0
    %713 = vmatprep.subr.mxu0 0.0
    %714 = vmatpush1.msra.mxu0 0.0
    %715 = vmatprep.mubr.f32.mxu0 0.0
    %716 = vmatmul.mubr.f32.gmra.mrb[0].mxu0 %v484
    %v717 = vpop.f32.mrb[0].mxu0
    %v718 = vadd.f32 %v649, %v717
    %v719 = vpop.f32.mrb[0].mxu0
    %720 = vmatprep.mubr.f32.mxu0 0.0
    %721 = vmatmul.mubr.f32.gmra.mrb[0].mxu0 %v487
    %v722 = vpop.f32.mrb[0].mxu0
    %v723 = vadd.f32 %v649, %v722
    %v724 = vpop.f32.mrb[0].mxu0
    %725 = vdwg.mxu0
    %vm726 = vcmask 64512
    %v728 = vsel %vm726, %v556, 0
    %v731 = vsel %vm726, %v637, 0
    %733 = vmatprep.subr.mxu0 0.0
    %734 = vmatpush1.xpose.msra.mxu0 %v731
    %735 = vmatprep.subr.mxu0 0.0
    %736 = vmatpush1.xpose.msra.mxu0 0.0
    %737 = vmatprep.subr.mxu0 0.0
    %738 = vmatpush1.xpose.msra.mxu0 0.0
    %739 = vmatprep.subr.mxu0 0.0
    %740 = vmatpush1.xpose.msra.mxu0 0.0
    %741 = vmatprep.subr.mxu0 0.0
    %742 = vmatpush1.xpose.msra.mxu0 0.0
    %743 = vmatprep.subr.mxu0 0.0
    %744 = vmatpush1.xpose.msra.mxu0 0.0
    %745 = vmatprep.subr.mxu0 0.0
    %746 = vmatpush1.xpose.msra.mxu0 0.0
    %747 = vmatprep.subr.mxu0 0.0
    %748 = vmatpush1.xpose.msra.mxu0 0.0
    %749 = vmatprep.subr.mxu0 0.0
    %750 = vmatpush1.xpose.msra.mxu0 0.0
    %751 = vmatprep.subr.mxu0 0.0
    %752 = vmatpush1.xpose.msra.mxu0 0.0
    %753 = vmatprep.subr.mxu0 0.0
    %754 = vmatpush1.xpose.msra.mxu0 0.0
    %755 = vmatprep.subr.mxu0 0.0
    %756 = vmatpush1.xpose.msra.mxu0 0.0
    %757 = vmatprep.subr.mxu0 0.0
    %758 = vmatpush1.xpose.msra.mxu0 0.0
    %759 = vmatprep.subr.mxu0 0.0
    %760 = vmatpush1.xpose.msra.mxu0 0.0
    %761 = vmatprep.subr.mxu0 0.0
    %762 = vmatpush1.xpose.msra.mxu0 0.0
    %763 = vmatprep.subr.mxu0 0.0
    %764 = vmatpush1.xpose.msra.mxu0 0.0
    %765 = vmatprep.subr.mxu0 0.0
    %766 = vmatpush1.xpose.msra.mxu0 0.0
    %767 = vmatprep.subr.mxu0 0.0
    %768 = vmatpush1.xpose.msra.mxu0 0.0
    %769 = vmatprep.subr.mxu0 0.0
    %770 = vmatpush1.xpose.msra.mxu0 0.0
    %771 = vmatprep.subr.mxu0 0.0
    %772 = vmatpush1.xpose.msra.mxu0 0.0
    %773 = vmatprep.subr.mxu0 0.0
    %774 = vmatpush1.xpose.msra.mxu0 0.0
    %775 = vmatprep.subr.mxu0 0.0
    %776 = vmatpush1.xpose.msra.mxu0 0.0
    %777 = vmatprep.subr.mxu0 0.0
    %778 = vmatpush1.xpose.msra.mxu0 0.0
    %779 = vmatprep.subr.mxu0 0.0
    %780 = vmatpush1.xpose.msra.mxu0 0.0
    %781 = vmatprep.subr.mxu0 0.0
    %782 = vmatpush1.xpose.msra.mxu0 0.0
    %783 = vmatprep.subr.mxu0 0.0
    %784 = vmatpush1.xpose.msra.mxu0 0.0
    %785 = vmatprep.subr.mxu0 0.0
    %786 = vmatpush1.xpose.msra.mxu0 0.0
    %787 = vmatprep.subr.mxu0 0.0
    %788 = vmatpush1.xpose.msra.mxu0 0.0
    %789 = vmatprep.subr.mxu0 0.0
    %790 = vmatpush1.xpose.msra.mxu0 0.0
    %791 = vmatprep.subr.mxu0 0.0
    %792 = vmatpush1.xpose.msra.mxu0 0.0
    %793 = vmatprep.subr.mxu0 0.0
    %794 = vmatpush1.xpose.msra.mxu0 0.0
    %795 = vmatprep.subr.mxu0 0.0
    %796 = vmatpush1.xpose.msra.mxu0 0.0
    %797 = vmatprep.mubr.f32.mxu0 0.0
    %798 = vmatmul.mubr.f32.gmra.mrb[0].mxu0 %v728
    %v799 = vpop.f32.mrb[0].mxu0
    %v800 = vadd.f32 0.0, %v799
    %v801 = vpop.f32.mrb[0].mxu0
    %802 = vdwg.mxu0
    %v803 = vmul.f32 %v800, 0.35355338
    %v804 = vsel %vm726, %v803, -inf
    %805 = vmax.xlane.f32.xlu0 %v804
    %v806 = vpop.xlane.xlu0 %805
    %v807 = vsub.f32 %v803, %v806
    %v808 = vmul.f32 %v807, 1.442695
    %v809 = vpow.pop %v808
    %v810 = vsel %vm726, %v809, 0.0
    %811 = vadd.xlane.f32.xlu0 %v810
    %v812 = vpop.xlane.xlu0 %811
    %v813 = vrcp.pop %v812
    %v814 = vmul.f32 %v809, %v813
    %v816 = vsel %vm726, %v814, 0
    %818 = vmatprep.subr.mxu0 0.0
    %819 = vmatpush1.msra.mxu0 %v718
    %820 = vmatprep.subr.mxu0 0.0
    %821 = vmatpush1.msra.mxu0 0.0
    %822 = vmatprep.subr.mxu0 0.0
    %823 = vmatpush1.msra.mxu0 0.0
    %824 = vmatprep.subr.mxu0 0.0
    %825 = vmatpush1.msra.mxu0 0.0
    %826 = vmatprep.subr.mxu0 0.0
    %827 = vmatpush1.msra.mxu0 0.0
    %828 = vmatprep.subr.mxu0 0.0
    %829 = vmatpush1.msra.mxu0 0.0
    %830 = vmatprep.subr.mxu0 0.0
    %831 = vmatpush1.msra.mxu0 0.0
    %832 = vmatprep.subr.mxu0 0.0
    %833 = vmatpush1.msra.mxu0 0.0
    %834 = vmatprep.subr.mxu0 0.0
    %835 = vmatpush1.msra.mxu0 0.0
    %836 = vmatprep.subr.mxu0 0.0
    %837 = vmatpush1.msra.mxu0 0.0
    %838 = vmatprep.subr.mxu0 0.0
    %839 = vmatpush1.msra.mxu0 0.0
    %840 = vmatprep.subr.mxu0 0.0
    %841 = vmatpush1.msra.mxu0 0.0
    %842 = vmatprep.subr.mxu0 0.0
    %843 = vmatpush1.msra.mxu0 0.0
    %844 = vmatprep.subr.mxu0 0.0
    %845 = vmatpush1.msra.mxu0 0.0
    %846 = vmatprep.subr.mxu0 0.0
    %847 = vmatpush1.msra.mxu0 0.0
    %848 = vmatprep.subr.mxu0 0.0
    %849 = vmatpush1.msra.mxu0 0.0
    %850 = vmatprep.subr.mxu0 0.0
    %851 = vmatpush1.msra.mxu0 0.0
    %852 = vmatprep.subr.mxu0 0.0
    %853 = vmatpush1.msra.mxu0 0.0
    %854 = vmatprep.subr.mxu0 0.0
    %855 = vmatpush1.msra.mxu0 0.0
    %856 = vmatprep.subr.mxu0 0.0
    %857 = vmatpush1.msra.mxu0 0.0
    %858 = vmatprep.subr.mxu0 0.0
    %859 = vmatpush1.msra.mxu0 0.0
    %860 = vmatprep.subr.mxu0 0.0
    %861 = vmatpush1.msra.mxu0 0.0
    %862 = vmatprep.subr.mxu0 0.0
    %863 = vmatpush1.msra.mxu0 0.0
    %864 = vmatprep.subr.mxu0 0.0
    %865 = vmatpush1.msra.mxu0 0.0
    %866 = vmatprep.subr.mxu0 0.0
    %867 = vmatpush1.msra.mxu0 0.0
    %868 = vmatprep.subr.mxu0 0.0
    %869 = vmatpush1.msra.mxu0 0.0
    %870 = vmatprep.subr.mxu0 0.0
    %871 = vmatpush1.msra.mxu0 0.0
    %872 = vmatprep.subr.mxu0 0.0
    %873 = vmatpush1.msra.mxu0 0.0
    %874 = vmatprep.subr.mxu0 0.0
    %875 = vmatpush1.msra.mxu0 0.0
    %876 = vmatprep.subr.mxu0 0.0
    %877 = vmatpush1.msra.mxu0 0.0
    %878 = vmatprep.subr.mxu0 0.0
    %879 = vmatpush1.msra.mxu0 0.0
    %880 = vmatprep.subr.mxu0 0.0
    %881 = vmatpush1.msra.mxu0 0.0
    %882 = vmatprep.mubr.f32.mxu0 0.0
    %883 = vmatmul.mubr.f32.gmra.mrb[0].mxu0 %v816
    %v884 = vpop.f32.mrb[0].mxu0
    %v885 = vadd.f32 0.0, %v884
    %v886 = vpop.f32.mrb[0].mxu0
    %887 = vdwg.mxu0
    %888 = vrot.lane.b32.xlu0 %v556, 120
    %v889 = vpop.permute.xlu0 %888
    %890 = vrot.lane.b32.xlu0 %v637, 120
    %v891 = vpop.permute.xlu0 %890
    %v892 = vsel %vm726, %v889, 0
    %v894 = vsel %vm726, %v891, 0
    %896 = vmatprep.subr.mxu0 0.0
    %897 = vmatpush1.xpose.msra.mxu0 %v894
    %898 = vmatprep.subr.mxu0 0.0
    %899 = vmatpush1.xpose.msra.mxu0 0.0
    %900 = vmatprep.subr.mxu0 0.0
    %901 = vmatpush1.xpose.msra.mxu0 0.0
    %902 = vmatprep.subr.mxu0 0.0
    %903 = vmatpush1.xpose.msra.mxu0 0.0
    %904 = vmatprep.subr.mxu0 0.0
    %905 = vmatpush1.xpose.msra.mxu0 0.0
    %906 = vmatprep.subr.mxu0 0.0
    %907 = vmatpush1.xpose.msra.mxu0 0.0
    %908 = vmatprep.subr.mxu0 0.0
    %909 = vmatpush1.xpose.msra.mxu0 0.0
    %910 = vmatprep.subr.mxu0 0.0
    %911 = vmatpush1.xpose.msra.mxu0 0.0
    %912 = vmatprep.subr.mxu0 0.0
    %913 = vmatpush1.xpose.msra.mxu0 0.0
    %914 = vmatprep.subr.mxu0 0.0
    %915 = vmatpush1.xpose.msra.mxu0 0.0
    %916 = vmatprep.subr.mxu0 0.0
    %917 = vmatpush1.xpose.msra.mxu0 0.0
    %918 = vmatprep.subr.mxu0 0.0
    %919 = vmatpush1.xpose.msra.mxu0 0.0
    %920 = vmatprep.subr.mxu0 0.0
    %921 = vmatpush1.xpose.msra.mxu0 0.0
    %922 = vmatprep.subr.mxu0 0.0
    %923 = vmatpush1.xpose.msra.mxu0 0.0
    %924 = vmatprep.subr.mxu0 0.0
    %925 = vmatpush1.xpose.msra.mxu0 0.0
    %926 = vmatprep.subr.mxu0 0.0
    %927 = vmatpush1.xpose.msra.mxu0 0.0
    %928 = vmatprep.subr.mxu0 0.0
    %929 = vmatpush1.xpose.msra.mxu0 0.0
    %930 = vmatprep.subr.mxu0 0.0
    %931 = vmatpush1.xpose.msra.mxu0 0.0
    %932 = vmatprep.subr.mxu0 0.0
    %933 = vmatpush1.xpose.msra.mxu0 0.0
    %934 = vmatprep.subr.mxu0 0.0
    %935 = vmatpush1.xpose.msra.mxu0 0.0
    %936 = vmatprep.subr.mxu0 0.0
    %937 = vmatpush1.xpose.msra.mxu0 0.0
    %938 = vmatprep.subr.mxu0 0.0
    %939 = vmatpush1.xpose.msra.mxu0 0.0
    %940 = vmatprep.subr.mxu0 0.0
    %941 = vmatpush1.xpose.msra.mxu0 0.0
    %942 = vmatprep.subr.mxu0 0.0
    %943 = vmatpush1.xpose.msra.mxu0 0.0
    %944 = vmatprep.subr.mxu0 0.0
    %945 = vmatpush1.xpose.msra.mxu0 0.0
    %946 = vmatprep.subr.mxu0 0.0
    %947 = vmatpush1.xpose.msra.mxu0 0.0
    %948 = vmatprep.subr.mxu0 0.0
    %949 = vmatpush1.xpose.msra.mxu0 0.0
    %950 = vmatprep.subr.mxu0 0.0
    %951 = vmatpush1.xpose.msra.mxu0 0.0
    %952 = vmatprep.subr.mxu0 0.0
    %953 = vmatpush1.xpose.msra.mxu0 0.0
    %954 = vmatprep.subr.mxu0 0.0
    %955 = vmatpush1.xpose.msra.mxu0 0.0
    %956 = vmatprep.subr.mxu0 0.0
    %957 = vmatpush1.xpose.msra.mxu0 0.0
    %958 = vmatprep.subr.mxu0 0.0
    %959 = vmatpush1.xpose.msra.mxu0 0.0
    %960 = vmatprep.mubr.f32.mxu0 0.0
    %961 = vmatmul.mubr.f32.gmra.mrb[0].mxu0 %v892
    %v962 = vpop.f32.mrb[0].mxu0
    %v963 = vadd.f32 0.0, %v962
    %v964 = vpop.f32.mrb[0].mxu0
    %965 = vdwg.mxu0
    %v966 = vmul.f32 %v963, 0.35355338
    %v967 = vsel %vm726, %v966, -inf
    %968 = vmax.xlane.f32.xlu0 %v967
    %v969 = vpop.xlane.xlu0 %968
    %v970 = vsub.f32 %v966, %v969
    %v971 = vmul.f32 %v970, 1.442695
    %v972 = vpow.pop %v971
    %v973 = vsel %vm726, %v972, 0.0
    %974 = vadd.xlane.f32.xlu0 %v973
    %v975 = vpop.xlane.xlu0 %974
    %v976 = vrcp.pop %v975
    %v977 = vmul.f32 %v972, %v976
    %979 = vrot.lane.b32.xlu0 %v718, 120
    %v980 = vpop.permute.xlu0 %979
    %v983 = vsel %vm726, %v977, 0
    %985 = vmatprep.subr.mxu0 0.0
    %986 = vmatpush1.msra.mxu0 %v980
    %987 = vmatprep.subr.mxu0 0.0
    %988 = vmatpush1.msra.mxu0 0.0
    %989 = vmatprep.subr.mxu0 0.0
    %990 = vmatpush1.msra.mxu0 0.0
    %991 = vmatprep.subr.mxu0 0.0
    %992 = vmatpush1.msra.mxu0 0.0
    %993 = vmatprep.subr.mxu0 0.0
    %994 = vmatpush1.msra.mxu0 0.0
    %995 = vmatprep.subr.mxu0 0.0
    %996 = vmatpush1.msra.mxu0 0.0
    %997 = vmatprep.subr.mxu0 0.0
    %998 = vmatpush1.msra.mxu0 0.0
    %999 = vmatprep.subr.mxu0 0.0
    %1000 = vmatpush1.msra.mxu0 0.0
    %1001 = vmatprep.subr.mxu0 0.0
    %1002 = vmatpush1.msra.mxu0 0.0
    %1003 = vmatprep.subr.mxu0 0.0
    %1004 = vmatpush1.msra.mxu0 0.0
    %1005 = vmatprep.subr.mxu0 0.0
    %1006 = vmatpush1.msra.mxu0 0.0
    %1007 = vmatprep.subr.mxu0 0.0
    %1008 = vmatpush1.msra.mxu0 0.0
    %1009 = vmatprep.subr.mxu0 0.0
    %1010 = vmatpush1.msra.mxu0 0.0
    %1011 = vmatprep.subr.mxu0 0.0
    %1012 = vmatpush1.msra.mxu0 0.0
    %1013 = vmatprep.subr.mxu0 0.0
    %1014 = vmatpush1.msra.mxu0 0.0
    %1015 = vmatprep.subr.mxu0 0.0
    %1016 = vmatpush1.msra.mxu0 0.0
    %1017 = vmatprep.subr.mxu0 0.0
    %1018 = vmatpush1.msra.mxu0 0.0
    %1019 = vmatprep.subr.mxu0 0.0
    %1020 = vmatpush1.msra.mxu0 0.0
    %1021 = vmatprep.subr.mxu0 0.0
    %1022 = vmatpush1.msra.mxu0 0.0
    %1023 = vmatprep.subr.mxu0 0.0
    %1024 = vmatpush1.msra.mxu0 0.0
    %1025 = vmatprep.subr.mxu0 0.0
    %1026 = vmatpush1.msra.mxu0 0.0
    %1027 = vmatprep.subr.mxu0 0.0
    %1028 = vmatpush1.msra.mxu0 0.0
    %1029 = vmatprep.subr.mxu0 0.0
    %1030 = vmatpush1.msra.mxu0 0.0
    %1031 = vmatprep.subr.mxu0 0.0
    %1032 = vmatpush1.msra.mxu0 0.0
    %1033 = vmatprep.subr.mxu0 0.0
    %1034 = vmatpush1.msra.mxu0 0.0
    %1035 = vmatprep.subr.mxu0 0.0
    %1036 = vmatpush1.msra.mxu0 0.0
    %1037 = vmatprep.subr.mxu0 0.0
    %1038 = vmatpush1.msra.mxu0 0.0
    %1039 = vmatprep.subr.mxu0 0.0
    %1040 = vmatpush1.msra.mxu0 0.0
    %1041 = vmatprep.subr.mxu0 0.0
    %1042 = vmatpush1.msra.mxu0 0.0
    %1043 = vmatprep.subr.mxu0 0.0
    %1044 = vmatpush1.msra.mxu0 0.0
    %1045 = vmatprep.subr.mxu0 0.0
    %1046 = vmatpush1.msra.mxu0 0.0
    %1047 = vmatprep.subr.mxu0 0.0
    %1048 = vmatpush1.msra.mxu0 0.0
    %1049 = vmatprep.mubr.f32.mxu0 0.0
    %1050 = vmatmul.mubr.f32.gmra.mrb[0].mxu0 %v983
    %v1051 = vpop.f32.mrb[0].mxu0
    %v1052 = vadd.f32 0.0, %v1051
    %v1053 = vpop.f32.mrb[0].mxu0
    %1054 = vdwg.mxu0
    %1055 = vrot.lane.b32.xlu0 %v556, 112
    %v1056 = vpop.permute.xlu0 %1055
    %1057 = vrot.lane.b32.xlu0 %v637, 112
    %v1058 = vpop.permute.xlu0 %1057
    %v1059 = vsel %vm726, %v1056, 0
    %v1061 = vsel %vm726, %v1058, 0
    %1063 = vmatprep.subr.mxu0 0.0
    %1064 = vmatpush1.xpose.msra.mxu0 %v1061
    %1065 = vmatprep.subr.mxu0 0.0
    %1066 = vmatpush1.xpose.msra.mxu0 0.0
    %1067 = vmatprep.subr.mxu0 0.0
    %1068 = vmatpush1.xpose.msra.mxu0 0.0
    %1069 = vmatprep.subr.mxu0 0.0
    %1070 = vmatpush1.xpose.msra.mxu0 0.0
    %1071 = vmatprep.subr.mxu0 0.0
    %1072 = vmatpush1.xpose.msra.mxu0 0.0
    %1073 = vmatprep.subr.mxu0 0.0
    %1074 = vmatpush1.xpose.msra.mxu0 0.0
    %1075 = vmatprep.subr.mxu0 0.0
    %1076 = vmatpush1.xpose.msra.mxu0 0.0
    %1077 = vmatprep.subr.mxu0 0.0
    %1078 = vmatpush1.xpose.msra.mxu0 0.0
    %1079 = vmatprep.subr.mxu0 0.0
    %1080 = vmatpush1.xpose.msra.mxu0 0.0
    %1081 = vmatprep.subr.mxu0 0.0
    %1082 = vmatpush1.xpose.msra.mxu0 0.0
    %1083 = vmatprep.subr.mxu0 0.0
    %1084 = vmatpush1.xpose.msra.mxu0 0.0
    %1085 = vmatprep.subr.mxu0 0.0
    %1086 = vmatpush1.xpose.msra.mxu0 0.0
    %1087 = vmatprep.subr.mxu0 0.0
    %1088 = vmatpush1.xpose.msra.mxu0 0.0
    %1089 = vmatprep.subr.mxu0 0.0
    %1090 = vmatpush1.xpose.msra.mxu0 0.0
    %1091 = vmatprep.subr.mxu0 0.0
    %1092 = vmatpush1.xpose.msra.mxu0 0.0
    %1093 = vmatprep.subr.mxu0 0.0
    %1094 = vmatpush1.xpose.msra.mxu0 0.0
    %1095 = vmatprep.subr.mxu0 0.0
    %1096 = vmatpush1.xpose.msra.mxu0 0.0
    %1097 = vmatprep.subr.mxu0 0.0
    %1098 = vmatpush1.xpose.msra.mxu0 0.0
    %1099 = vmatprep.subr.mxu0 0.0
    %1100 = vmatpush1.xpose.msra.mxu0 0.0
    %1101 = vmatprep.subr.mxu0 0.0
    %1102 = vmatpush1.xpose.msra.mxu0 0.0
    %1103 = vmatprep.subr.mxu0 0.0
    %1104 = vmatpush1.xpose.msra.mxu0 0.0
    %1105 = vmatprep.subr.mxu0 0.0
    %1106 = vmatpush1.xpose.msra.mxu0 0.0
    %1107 = vmatprep.subr.mxu0 0.0
    %1108 = vmatpush1.xpose.msra.mxu0 0.0
    %1109 = vmatprep.subr.mxu0 0.0
    %1110 = vmatpush1.xpose.msra.mxu0 0.0
    %1111 = vmatprep.subr.mxu0 0.0
    %1112 = vmatpush1.xpose.msra.mxu0 0.0
    %1113 = vmatprep.subr.mxu0 0.0
    %1114 = vmatpush1.xpose.msra.mxu0 0.0
    %1115 = vmatprep.subr.mxu0 0.0
    %1116 = vmatpush1.xpose.msra.mxu0 0.0
    %1117 = vmatprep.subr.mxu0 0.0
    %1118 = vmatpush1.xpose.msra.mxu0 0.0
    %1119 = vmatprep.subr.mxu0 0.0
    %1120 = vmatpush1.xpose.msra.mxu0 0.0
    %1121 = vmatprep.subr.mxu0 0.0
    %1122 = vmatpush1.xpose.msra.mxu0 0.0
    %1123 = vmatprep.subr.mxu0 0.0
    %1124 = vmatpush1.xpose.msra.mxu0 0.0
    %1125 = vmatprep.subr.mxu0 0.0
    %1126 = vmatpush1.xpose.msra.mxu0 0.0
    %1127 = vmatprep.mubr.f32.mxu0 0.0
    %1128 = vmatmul.mubr.f32.gmra.mrb[0].mxu0 %v1059
    %v1129 = vpop.f32.mrb[0].mxu0
    %v1130 = vadd.f32 0.0, %v1129
    %v1131 = vpop.f32.mrb[0].mxu0
    %1132 = vdwg.mxu0
    %v1133 = vmul.f32 %v1130, 0.35355338
    %v1134 = vsel %vm726, %v1133, -inf
    %1135 = vmax.xlane.f32.xlu0 %v1134
    %v1136 = vpop.xlane.xlu0 %1135
    %v1137 = vsub.f32 %v1133, %v1136
    %v1138 = vmul.f32 %v1137, 1.442695
    %v1139 = vpow.pop %v1138
    %v1140 = vsel %vm726, %v1139, 0.0
    %1141 = vadd.xlane.f32.xlu0 %v1140
    %v1142 = vpop.xlane.xlu0 %1141
    %v1143 = vrcp.pop %v1142
    %v1144 = vmul.f32 %v1139, %v1143
    %1145 = vrot.lane.b32.xlu0 %v718, 112
    %v1146 = vpop.permute.xlu0 %1145
    %v1149 = vsel %vm726, %v1144, 0
    %1151 = vmatprep.subr.mxu0 0.0
    %1152 = vmatpush1.msra.mxu0 %v1146
    %1153 = vmatprep.subr.mxu0 0.0
    %1154 = vmatpush1.msra.mxu0 0.0
    %1155 = vmatprep.subr.mxu0 0.0
    %1156 = vmatpush1.msra.mxu0 0.0
    %1157 = vmatprep.subr.mxu0 0.0
    %1158 = vmatpush1.msra.mxu0 0.0
    %1159 = vmatprep.subr.mxu0 0.0
    %1160 = vmatpush1.msra.mxu0 0.0
    %1161 = vmatprep.subr.mxu0 0.0
    %1162 = vmatpush1.msra.mxu0 0.0
    %1163 = vmatprep.subr.mxu0 0.0
    %1164 = vmatpush1.msra.mxu0 0.0
    %1165 = vmatprep.subr.mxu0 0.0
    %1166 = vmatpush1.msra.mxu0 0.0
    %1167 = vmatprep.subr.mxu0 0.0
    %1168 = vmatpush1.msra.mxu0 0.0
    %1169 = vmatprep.subr.mxu0 0.0
    %1170 = vmatpush1.msra.mxu0 0.0
    %1171 = vmatprep.subr.mxu0 0.0
    %1172 = vmatpush1.msra.mxu0 0.0
    %1173 = vmatprep.subr.mxu0 0.0
    %1174 = vmatpush1.msra.mxu0 0.0
    %1175 = vmatprep.subr.mxu0 0.0
    %1176 = vmatpush1.msra.mxu0 0.0
    %1177 = vmatprep.subr.mxu0 0.0
    %1178 = vmatpush1.msra.mxu0 0.0
    %1179 = vmatprep.subr.mxu0 0.0
    %1180 = vmatpush1.msra.mxu0 0.0
    %1181 = vmatprep.subr.mxu0 0.0
    %1182 = vmatpush1.msra.mxu0 0.0
    %1183 = vmatprep.subr.mxu0 0.0
    %1184 = vmatpush1.msra.mxu0 0.0
    %1185 = vmatprep.subr.mxu0 0.0
    %1186 = vmatpush1.msra.mxu0 0.0
    %1187 = vmatprep.subr.mxu0 0.0
    %1188 = vmatpush1.msra.mxu0 0.0
    %1189 = vmatprep.subr.mxu0 0.0
    %1190 = vmatpush1.msra.mxu0 0.0
    %1191 = vmatprep.subr.mxu0 0.0
    %1192 = vmatpush1.msra.mxu0 0.0
    %1193 = vmatprep.subr.mxu0 0.0
    %1194 = vmatpush1.msra.mxu0 0.0
    %1195 = vmatprep.subr.mxu0 0.0
    %1196 = vmatpush1.msra.mxu0 0.0
    %1197 = vmatprep.subr.mxu0 0.0
    %1198 = vmatpush1.msra.mxu0 0.0
    %1199 = vmatprep.subr.mxu0 0.0
    %1200 = vmatpush1.msra.mxu0 0.0
    %1201 = vmatprep.subr.mxu0 0.0
    %1202 = vmatpush1.msra.mxu0 0.0
    %1203 = vmatprep.subr.mxu0 0.0
    %1204 = vmatpush1.msra.mxu0 0.0
    %1205 = vmatprep.subr.mxu0 0.0
    %1206 = vmatpush1.msra.mxu0 0.0
    %1207 = vmatprep.subr.mxu0 0.0
    %1208 = vmatpush1.msra.mxu0 0.0
    %1209 = vmatprep.subr.mxu0 0.0
    %1210 = vmatpush1.msra.mxu0 0.0
    %1211 = vmatprep.subr.mxu0 0.0
    %1212 = vmatpush1.msra.mxu0 0.0
    %1213 = vmatprep.subr.mxu0 0.0
    %1214 = vmatpush1.msra.mxu0 0.0
    %1215 = vmatprep.mubr.f32.mxu0 0.0
    %1216 = vmatmul.mubr.f32.gmra.mrb[0].mxu0 %v1149
    %v1217 = vpop.f32.mrb[0].mxu0
    %v1218 = vadd.f32 0.0, %v1217
    %v1219 = vpop.f32.mrb[0].mxu0
    %1220 = vdwg.mxu0
    %1221 = vrot.lane.b32.xlu0 %v556, 104
    %v1222 = vpop.permute.xlu0 %1221
    %1223 = vrot.lane.b32.xlu0 %v637, 104
    %v1224 = vpop.permute.xlu0 %1223
    %v1225 = vsel %vm726, %v1222, 0
    %v1227 = vsel %vm726, %v1224, 0
    %1229 = vmatprep.subr.mxu0 0.0
    %1230 = vmatpush1.xpose.msra.mxu0 %v1227
    %1231 = vmatprep.subr.mxu0 0.0
    %1232 = vmatpush1.xpose.msra.mxu0 0.0
    %1233 = vmatprep.subr.mxu0 0.0
    %1234 = vmatpush1.xpose.msra.mxu0 0.0
    %1235 = vmatprep.subr.mxu0 0.0
    %1236 = vmatpush1.xpose.msra.mxu0 0.0
    %1237 = vmatprep.subr.mxu0 0.0
    %1238 = vmatpush1.xpose.msra.mxu0 0.0
    %1239 = vmatprep.subr.mxu0 0.0
    %1240 = vmatpush1.xpose.msra.mxu0 0.0
    %1241 = vmatprep.subr.mxu0 0.0
    %1242 = vmatpush1.xpose.msra.mxu0 0.0
    %1243 = vmatprep.subr.mxu0 0.0
    %1244 = vmatpush1.xpose.msra.mxu0 0.0
    %1245 = vmatprep.subr.mxu0 0.0
    %1246 = vmatpush1.xpose.msra.mxu0 0.0
    %1247 = vmatprep.subr.mxu0 0.0
    %1248 = vmatpush1.xpose.msra.mxu0 0.0
    %1249 = vmatprep.subr.mxu0 0.0
    %1250 = vmatpush1.xpose.msra.mxu0 0.0
    %1251 = vmatprep.subr.mxu0 0.0
    %1252 = vmatpush1.xpose.msra.mxu0 0.0
    %1253 = vmatprep.subr.mxu0 0.0
    %1254 = vmatpush1.xpose.msra.mxu0 0.0
    %1255 = vmatprep.subr.mxu0 0.0
    %1256 = vmatpush1.xpose.msra.mxu0 0.0
    %1257 = vmatprep.subr.mxu0 0.0
    %1258 = vmatpush1.xpose.msra.mxu0 0.0
    %1259 = vmatprep.subr.mxu0 0.0
    %1260 = vmatpush1.xpose.msra.mxu0 0.0
    %1261 = vmatprep.subr.mxu0 0.0
    %1262 = vmatpush1.xpose.msra.mxu0 0.0
    %1263 = vmatprep.subr.mxu0 0.0
    %1264 = vmatpush1.xpose.msra.mxu0 0.0
    %1265 = vmatprep.subr.mxu0 0.0
    %1266 = vmatpush1.xpose.msra.mxu0 0.0
    %1267 = vmatprep.subr.mxu0 0.0
    %1268 = vmatpush1.xpose.msra.mxu0 0.0
    %1269 = vmatprep.subr.mxu0 0.0
    %1270 = vmatpush1.xpose.msra.mxu0 0.0
    %1271 = vmatprep.subr.mxu0 0.0
    %1272 = vmatpush1.xpose.msra.mxu0 0.0
    %1273 = vmatprep.subr.mxu0 0.0
    %1274 = vmatpush1.xpose.msra.mxu0 0.0
    %1275 = vmatprep.subr.mxu0 0.0
    %1276 = vmatpush1.xpose.msra.mxu0 0.0
    %1277 = vmatprep.subr.mxu0 0.0
    %1278 = vmatpush1.xpose.msra.mxu0 0.0
    %1279 = vmatprep.subr.mxu0 0.0
    %1280 = vmatpush1.xpose.msra.mxu0 0.0
    %1281 = vmatprep.subr.mxu0 0.0
    %1282 = vmatpush1.xpose.msra.mxu0 0.0
    %1283 = vmatprep.subr.mxu0 0.0
    %1284 = vmatpush1.xpose.msra.mxu0 0.0
    %1285 = vmatprep.subr.mxu0 0.0
    %1286 = vmatpush1.xpose.msra.mxu0 0.0
    %1287 = vmatprep.subr.mxu0 0.0
    %1288 = vmatpush1.xpose.msra.mxu0 0.0
    %1289 = vmatprep.subr.mxu0 0.0
    %1290 = vmatpush1.xpose.msra.mxu0 0.0
    %1291 = vmatprep.subr.mxu0 0.0
    %1292 = vmatpush1.xpose.msra.mxu0 0.0
    %1293 = vmatprep.mubr.f32.mxu0 0.0
    %1294 = vmatmul.mubr.f32.gmra.mrb[0].mxu0 %v1225
    %v1295 = vpop.f32.mrb[0].mxu0
    %v1296 = vadd.f32 0.0, %v1295
    %v1297 = vpop.f32.mrb[0].mxu0
    %1298 = vdwg.mxu0
    %v1299 = vmul.f32 %v1296, 0.35355338
    %v1300 = vsel %vm726, %v1299, -inf
    %1301 = vmax.xlane.f32.xlu0 %v1300
    %v1302 = vpop.xlane.xlu0 %1301
    %v1303 = vsub.f32 %v1299, %v1302
    %v1304 = vmul.f32 %v1303, 1.442695
    %v1305 = vpow.pop %v1304
    %v1306 = vsel %vm726, %v1305, 0.0
    %1307 = vadd.xlane.f32.xlu0 %v1306
    %v1308 = vpop.xlane.xlu0 %1307
    %v1309 = vrcp.pop %v1308
    %v1310 = vmul.f32 %v1305, %v1309
    %1311 = vrot.lane.b32.xlu0 %v718, 104
    %v1312 = vpop.permute.xlu0 %1311
    %v1315 = vsel %vm726, %v1310, 0
    %1317 = vmatprep.subr.mxu0 0.0
    %1318 = vmatpush1.msra.mxu0 %v1312
    %1319 = vmatprep.subr.mxu0 0.0
    %1320 = vmatpush1.msra.mxu0 0.0
    %1321 = vmatprep.subr.mxu0 0.0
    %1322 = vmatpush1.msra.mxu0 0.0
    %1323 = vmatprep.subr.mxu0 0.0
    %1324 = vmatpush1.msra.mxu0 0.0
    %1325 = vmatprep.subr.mxu0 0.0
    %1326 = vmatpush1.msra.mxu0 0.0
    %1327 = vmatprep.subr.mxu0 0.0
    %1328 = vmatpush1.msra.mxu0 0.0
    %1329 = vmatprep.subr.mxu0 0.0
    %1330 = vmatpush1.msra.mxu0 0.0
    %1331 = vmatprep.subr.mxu0 0.0
    %1332 = vmatpush1.msra.mxu0 0.0
    %1333 = vmatprep.subr.mxu0 0.0
    %1334 = vmatpush1.msra.mxu0 0.0
    %1335 = vmatprep.subr.mxu0 0.0
    %1336 = vmatpush1.msra.mxu0 0.0
    %1337 = vmatprep.subr.mxu0 0.0
    %1338 = vmatpush1.msra.mxu0 0.0
    %1339 = vmatprep.subr.mxu0 0.0
    %1340 = vmatpush1.msra.mxu0 0.0
    %1341 = vmatprep.subr.mxu0 0.0
    %1342 = vmatpush1.msra.mxu0 0.0
    %1343 = vmatprep.subr.mxu0 0.0
    %1344 = vmatpush1.msra.mxu0 0.0
    %1345 = vmatprep.subr.mxu0 0.0
    %1346 = vmatpush1.msra.mxu0 0.0
    %1347 = vmatprep.subr.mxu0 0.0
    %1348 = vmatpush1.msra.mxu0 0.0
    %1349 = vmatprep.subr.mxu0 0.0
    %1350 = vmatpush1.msra.mxu0 0.0
    %1351 = vmatprep.subr.mxu0 0.0
    %1352 = vmatpush1.msra.mxu0 0.0
    %1353 = vmatprep.subr.mxu0 0.0
    %1354 = vmatpush1.msra.mxu0 0.0
    %1355 = vmatprep.subr.mxu0 0.0
    %1356 = vmatpush1.msra.mxu0 0.0
    %1357 = vmatprep.subr.mxu0 0.0
    %1358 = vmatpush1.msra.mxu0 0.0
    %1359 = vmatprep.subr.mxu0 0.0
    %1360 = vmatpush1.msra.mxu0 0.0
    %1361 = vmatprep.subr.mxu0 0.0
    %1362 = vmatpush1.msra.mxu0 0.0
    %1363 = vmatprep.subr.mxu0 0.0
    %1364 = vmatpush1.msra.mxu0 0.0
    %1365 = vmatprep.subr.mxu0 0.0
    %1366 = vmatpush1.msra.mxu0 0.0
    %1367 = vmatprep.subr.mxu0 0.0
    %1368 = vmatpush1.msra.mxu0 0.0
    %1369 = vmatprep.subr.mxu0 0.0
    %1370 = vmatpush1.msra.mxu0 0.0
    %1371 = vmatprep.subr.mxu0 0.0
    %1372 = vmatpush1.msra.mxu0 0.0
    %1373 = vmatprep.subr.mxu0 0.0
    %1374 = vmatpush1.msra.mxu0 0.0
    %1375 = vmatprep.subr.mxu0 0.0
    %1376 = vmatpush1.msra.mxu0 0.0
    %1377 = vmatprep.subr.mxu0 0.0
    %1378 = vmatpush1.msra.mxu0 0.0
    %1379 = vmatprep.subr.mxu0 0.0
    %1380 = vmatpush1.msra.mxu0 0.0
    %1381 = vmatprep.mubr.f32.mxu0 0.0
    %1382 = vmatmul.mubr.f32.gmra.mrb[0].mxu0 %v1315
    %v1383 = vpop.f32.mrb[0].mxu0
    %v1384 = vadd.f32 0.0, %v1383
    %v1385 = vpop.f32.mrb[0].mxu0
    %1386 = vdwg.mxu0
    %1388 = vrot.lane.b32.xlu0 %v1052, 8
    %v1389 = vpop.permute.xlu0 %1388
    %1392 = vrot.lane.b32.xlu0 %v1218, 16
    %v1393 = vpop.permute.xlu0 %1392
    %1396 = vrot.lane.b32.xlu0 %v1384, 24
    %v1397 = vpop.permute.xlu0 %1396
    %v1399 = vsel %vm726, %v885, %v1389
    %v1400 = vsel %vm394, %v1399, %v1393
    %vm1401 = vcmask 195584
    %v1402 = vsel %vm1401, %v1400, %v1397
    %v1404 = vsel %vm726, %v561, 0
    %v1407 = vsel %vm726, %v642, 0
    %1409 = vmatprep.subr.mxu0 0.0
    %1410 = vmatpush1.xpose.msra.mxu0 %v1407
    %1411 = vmatprep.subr.mxu0 0.0
    %1412 = vmatpush1.xpose.msra.mxu0 0.0
    %1413 = vmatprep.subr.mxu0 0.0
    %1414 = vmatpush1.xpose.msra.mxu0 0.0
    %1415 = vmatprep.subr.mxu0 0.0
    %1416 = vmatpush1.xpose.msra.mxu0 0.0
    %1417 = vmatprep.subr.mxu0 0.0
    %1418 = vmatpush1.xpose.msra.mxu0 0.0
    %1419 = vmatprep.subr.mxu0 0.0
    %1420 = vmatpush1.xpose.msra.mxu0 0.0
    %1421 = vmatprep.subr.mxu0 0.0
    %1422 = vmatpush1.xpose.msra.mxu0 0.0
    %1423 = vmatprep.subr.mxu0 0.0
    %1424 = vmatpush1.xpose.msra.mxu0 0.0
    %1425 = vmatprep.subr.mxu0 0.0
    %1426 = vmatpush1.xpose.msra.mxu0 0.0
    %1427 = vmatprep.subr.mxu0 0.0
    %1428 = vmatpush1.xpose.msra.mxu0 0.0
    %1429 = vmatprep.subr.mxu0 0.0
    %1430 = vmatpush1.xpose.msra.mxu0 0.0
    %1431 = vmatprep.subr.mxu0 0.0
    %1432 = vmatpush1.xpose.msra.mxu0 0.0
    %1433 = vmatprep.subr.mxu0 0.0
    %1434 = vmatpush1.xpose.msra.mxu0 0.0
    %1435 = vmatprep.subr.mxu0 0.0
    %1436 = vmatpush1.xpose.msra.mxu0 0.0
    %1437 = vmatprep.subr.mxu0 0.0
    %1438 = vmatpush1.xpose.msra.mxu0 0.0
    %1439 = vmatprep.subr.mxu0 0.0
    %1440 = vmatpush1.xpose.msra.mxu0 0.0
    %1441 = vmatprep.subr.mxu0 0.0
    %1442 = vmatpush1.xpose.msra.mxu0 0.0
    %1443 = vmatprep.subr.mxu0 0.0
    %1444 = vmatpush1.xpose.msra.mxu0 0.0
    %1445 = vmatprep.subr.mxu0 0.0
    %1446 = vmatpush1.xpose.msra.mxu0 0.0
    %1447 = vmatprep.subr.mxu0 0.0
    %1448 = vmatpush1.xpose.msra.mxu0 0.0
    %1449 = vmatprep.subr.mxu0 0.0
    %1450 = vmatpush1.xpose.msra.mxu0 0.0
    %1451 = vmatprep.subr.mxu0 0.0
    %1452 = vmatpush1.xpose.msra.mxu0 0.0
    %1453 = vmatprep.subr.mxu0 0.0
    %1454 = vmatpush1.xpose.msra.mxu0 0.0
    %1455 = vmatprep.subr.mxu0 0.0
    %1456 = vmatpush1.xpose.msra.mxu0 0.0
    %1457 = vmatprep.subr.mxu0 0.0
    %1458 = vmatpush1.xpose.msra.mxu0 0.0
    %1459 = vmatprep.subr.mxu0 0.0
    %1460 = vmatpush1.xpose.msra.mxu0 0.0
    %1461 = vmatprep.subr.mxu0 0.0
    %1462 = vmatpush1.xpose.msra.mxu0 0.0
    %1463 = vmatprep.subr.mxu0 0.0
    %1464 = vmatpush1.xpose.msra.mxu0 0.0
    %1465 = vmatprep.subr.mxu0 0.0
    %1466 = vmatpush1.xpose.msra.mxu0 0.0
    %1467 = vmatprep.subr.mxu0 0.0
    %1468 = vmatpush1.xpose.msra.mxu0 0.0
    %1469 = vmatprep.subr.mxu0 0.0
    %1470 = vmatpush1.xpose.msra.mxu0 0.0
    %1471 = vmatprep.subr.mxu0 0.0
    %1472 = vmatpush1.xpose.msra.mxu0 0.0
    %1473 = vmatprep.mubr.f32.mxu0 0.0
    %1474 = vmatmul.mubr.f32.gmra.mrb[0].mxu0 %v1404
    %v1475 = vpop.f32.mrb[0].mxu0
    %v1476 = vadd.f32 0.0, %v1475
    %v1477 = vpop.f32.mrb[0].mxu0
    %1478 = vdwg.mxu0
    %v1479 = vmul.f32 %v1476, 0.35355338
    %v1480 = vsel %vm726, %v1479, -inf
    %1481 = vmax.xlane.f32.xlu0 %v1480
    %v1482 = vpop.xlane.xlu0 %1481
    %v1483 = vsub.f32 %v1479, %v1482
    %v1484 = vmul.f32 %v1483, 1.442695
    %v1485 = vpow.pop %v1484
    %v1486 = vsel %vm726, %v1485, 0.0
    %1487 = vadd.xlane.f32.xlu0 %v1486
    %v1488 = vpop.xlane.xlu0 %1487
    %v1489 = vrcp.pop %v1488
    %v1490 = vmul.f32 %v1485, %v1489
    %v1492 = vsel %vm726, %v1490, 0
    %1494 = vmatprep.subr.mxu0 0.0
    %1495 = vmatpush1.msra.mxu0 %v723
    %1496 = vmatprep.subr.mxu0 0.0
    %1497 = vmatpush1.msra.mxu0 0.0
    %1498 = vmatprep.subr.mxu0 0.0
    %1499 = vmatpush1.msra.mxu0 0.0
    %1500 = vmatprep.subr.mxu0 0.0
    %1501 = vmatpush1.msra.mxu0 0.0
    %1502 = vmatprep.subr.mxu0 0.0
    %1503 = vmatpush1.msra.mxu0 0.0
    %1504 = vmatprep.subr.mxu0 0.0
    %1505 = vmatpush1.msra.mxu0 0.0
    %1506 = vmatprep.subr.mxu0 0.0
    %1507 = vmatpush1.msra.mxu0 0.0
    %1508 = vmatprep.subr.mxu0 0.0
    %1509 = vmatpush1.msra.mxu0 0.0
    %1510 = vmatprep.subr.mxu0 0.0
    %1511 = vmatpush1.msra.mxu0 0.0
    %1512 = vmatprep.subr.mxu0 0.0
    %1513 = vmatpush1.msra.mxu0 0.0
    %1514 = vmatprep.subr.mxu0 0.0
    %1515 = vmatpush1.msra.mxu0 0.0
    %1516 = vmatprep.subr.mxu0 0.0
    %1517 = vmatpush1.msra.mxu0 0.0
    %1518 = vmatprep.subr.mxu0 0.0
    %1519 = vmatpush1.msra.mxu0 0.0
    %1520 = vmatprep.subr.mxu0 0.0
    %1521 = vmatpush1.msra.mxu0 0.0
    %1522 = vmatprep.subr.mxu0 0.0
    %1523 = vmatpush1.msra.mxu0 0.0
    %1524 = vmatprep.subr.mxu0 0.0
    %1525 = vmatpush1.msra.mxu0 0.0
    %1526 = vmatprep.subr.mxu0 0.0
    %1527 = vmatpush1.msra.mxu0 0.0
    %1528 = vmatprep.subr.mxu0 0.0
    %1529 = vmatpush1.msra.mxu0 0.0
    %1530 = vmatprep.subr.mxu0 0.0
    %1531 = vmatpush1.msra.mxu0 0.0
    %1532 = vmatprep.subr.mxu0 0.0
    %1533 = vmatpush1.msra.mxu0 0.0
    %1534 = vmatprep.subr.mxu0 0.0
    %1535 = vmatpush1.msra.mxu0 0.0
    %1536 = vmatprep.subr.mxu0 0.0
    %1537 = vmatpush1.msra.mxu0 0.0
    %1538 = vmatprep.subr.mxu0 0.0
    %1539 = vmatpush1.msra.mxu0 0.0
    %1540 = vmatprep.subr.mxu0 0.0
    %1541 = vmatpush1.msra.mxu0 0.0
    %1542 = vmatprep.subr.mxu0 0.0
    %1543 = vmatpush1.msra.mxu0 0.0
    %1544 = vmatprep.subr.mxu0 0.0
    %1545 = vmatpush1.msra.mxu0 0.0
    %1546 = vmatprep.subr.mxu0 0.0
    %1547 = vmatpush1.msra.mxu0 0.0
    %1548 = vmatprep.subr.mxu0 0.0
    %1549 = vmatpush1.msra.mxu0 0.0
    %1550 = vmatprep.subr.mxu0 0.0
    %1551 = vmatpush1.msra.mxu0 0.0
    %1552 = vmatprep.subr.mxu0 0.0
    %1553 = vmatpush1.msra.mxu0 0.0
    %1554 = vmatprep.subr.mxu0 0.0
    %1555 = vmatpush1.msra.mxu0 0.0
    %1556 = vmatprep.subr.mxu0 0.0
    %1557 = vmatpush1.msra.mxu0 0.0
    %1558 = vmatprep.mubr.f32.mxu0 0.0
    %1559 = vmatmul.mubr.f32.gmra.mrb[0].mxu0 %v1492
    %v1560 = vpop.f32.mrb[0].mxu0
    %v1561 = vadd.f32 0.0, %v1560
    %v1562 = vpop.f32.mrb[0].mxu0
    %1563 = vdwg.mxu0
    %1564 = vrot.lane.b32.xlu0 %v561, 120
    %v1565 = vpop.permute.xlu0 %1564
    %1566 = vrot.lane.b32.xlu0 %v642, 120
    %v1567 = vpop.permute.xlu0 %1566
    %v1568 = vsel %vm726, %v1565, 0
    %v1570 = vsel %vm726, %v1567, 0
    %1572 = vmatprep.subr.mxu0 0.0
    %1573 = vmatpush1.xpose.msra.mxu0 %v1570
    %1574 = vmatprep.subr.mxu0 0.0
    %1575 = vmatpush1.xpose.msra.mxu0 0.0
    %1576 = vmatprep.subr.mxu0 0.0
    %1577 = vmatpush1.xpose.msra.mxu0 0.0
    %1578 = vmatprep.subr.mxu0 0.0
    %1579 = vmatpush1.xpose.msra.mxu0 0.0
    %1580 = vmatprep.subr.mxu0 0.0
    %1581 = vmatpush1.xpose.msra.mxu0 0.0
    %1582 = vmatprep.subr.mxu0 0.0
    %1583 = vmatpush1.xpose.msra.mxu0 0.0
    %1584 = vmatprep.subr.mxu0 0.0
    %1585 = vmatpush1.xpose.msra.mxu0 0.0
    %1586 = vmatprep.subr.mxu0 0.0
    %1587 = vmatpush1.xpose.msra.mxu0 0.0
    %1588 = vmatprep.subr.mxu0 0.0
    %1589 = vmatpush1.xpose.msra.mxu0 0.0
    %1590 = vmatprep.subr.mxu0 0.0
    %1591 = vmatpush1.xpose.msra.mxu0 0.0
    %1592 = vmatprep.subr.mxu0 0.0
    %1593 = vmatpush1.xpose.msra.mxu0 0.0
    %1594 = vmatprep.subr.mxu0 0.0
    %1595 = vmatpush1.xpose.msra.mxu0 0.0
    %1596 = vmatprep.subr.mxu0 0.0
    %1597 = vmatpush1.xpose.msra.mxu0 0.0
    %1598 = vmatprep.subr.mxu0 0.0
    %1599 = vmatpush1.xpose.msra.mxu0 0.0
    %1600 = vmatprep.subr.mxu0 0.0
    %1601 = vmatpush1.xpose.msra.mxu0 0.0
    %1602 = vmatprep.subr.mxu0 0.0
    %1603 = vmatpush1.xpose.msra.mxu0 0.0
    %1604 = vmatprep.subr.mxu0 0.0
    %1605 = vmatpush1.xpose.msra.mxu0 0.0
    %1606 = vmatprep.subr.mxu0 0.0
    %1607 = vmatpush1.xpose.msra.mxu0 0.0
    %1608 = vmatprep.subr.mxu0 0.0
    %1609 = vmatpush1.xpose.msra.mxu0 0.0
    %1610 = vmatprep.subr.mxu0 0.0
    %1611 = vmatpush1.xpose.msra.mxu0 0.0
    %1612 = vmatprep.subr.mxu0 0.0
    %1613 = vmatpush1.xpose.msra.mxu0 0.0
    %1614 = vmatprep.subr.mxu0 0.0
    %1615 = vmatpush1.xpose.msra.mxu0 0.0
    %1616 = vmatprep.subr.mxu0 0.0
    %1617 = vmatpush1.xpose.msra.mxu0 0.0
    %1618 = vmatprep.subr.mxu0 0.0
    %1619 = vmatpush1.xpose.msra.mxu0 0.0
    %1620 = vmatprep.subr.mxu0 0.0
    %1621 = vmatpush1.xpose.msra.mxu0 0.0
    %1622 = vmatprep.subr.mxu0 0.0
    %1623 = vmatpush1.xpose.msra.mxu0 0.0
    %1624 = vmatprep.subr.mxu0 0.0
    %1625 = vmatpush1.xpose.msra.mxu0 0.0
    %1626 = vmatprep.subr.mxu0 0.0
    %1627 = vmatpush1.xpose.msra.mxu0 0.0
    %1628 = vmatprep.subr.mxu0 0.0
    %1629 = vmatpush1.xpose.msra.mxu0 0.0
    %1630 = vmatprep.subr.mxu0 0.0
    %1631 = vmatpush1.xpose.msra.mxu0 0.0
    %1632 = vmatprep.subr.mxu0 0.0
    %1633 = vmatpush1.xpose.msra.mxu0 0.0
    %1634 = vmatprep.subr.mxu0 0.0
    %1635 = vmatpush1.xpose.msra.mxu0 0.0
    %1636 = vmatprep.mubr.f32.mxu0 0.0
    %1637 = vmatmul.mubr.f32.gmra.mrb[0].mxu0 %v1568
    %v1638 = vpop.f32.mrb[0].mxu0
    %v1639 = vadd.f32 0.0, %v1638
    %v1640 = vpop.f32.mrb[0].mxu0
    %1641 = vdwg.mxu0
    %v1642 = vmul.f32 %v1639, 0.35355338
    %v1643 = vsel %vm726, %v1642, -inf
    %1644 = vmax.xlane.f32.xlu0 %v1643
    %v1645 = vpop.xlane.xlu0 %1644
    %v1646 = vsub.f32 %v1642, %v1645
    %v1647 = vmul.f32 %v1646, 1.442695
    %v1648 = vpow.pop %v1647
    %v1649 = vsel %vm726, %v1648, 0.0
    %1650 = vadd.xlane.f32.xlu0 %v1649
    %v1651 = vpop.xlane.xlu0 %1650
    %v1652 = vrcp.pop %v1651
    %v1653 = vmul.f32 %v1648, %v1652
    %1655 = vrot.lane.b32.xlu0 %v723, 120
    %v1656 = vpop.permute.xlu0 %1655
    %v1659 = vsel %vm726, %v1653, 0
    %1661 = vmatprep.subr.mxu0 0.0
    %1662 = vmatpush1.msra.mxu0 %v1656
    %1663 = vmatprep.subr.mxu0 0.0
    %1664 = vmatpush1.msra.mxu0 0.0
    %1665 = vmatprep.subr.mxu0 0.0
    %1666 = vmatpush1.msra.mxu0 0.0
    %1667 = vmatprep.subr.mxu0 0.0
    %1668 = vmatpush1.msra.mxu0 0.0
    %1669 = vmatprep.subr.mxu0 0.0
    %1670 = vmatpush1.msra.mxu0 0.0
    %1671 = vmatprep.subr.mxu0 0.0
    %1672 = vmatpush1.msra.mxu0 0.0
    %1673 = vmatprep.subr.mxu0 0.0
    %1674 = vmatpush1.msra.mxu0 0.0
    %1675 = vmatprep.subr.mxu0 0.0
    %1676 = vmatpush1.msra.mxu0 0.0
    %1677 = vmatprep.subr.mxu0 0.0
    %1678 = vmatpush1.msra.mxu0 0.0
    %1679 = vmatprep.subr.mxu0 0.0
    %1680 = vmatpush1.msra.mxu0 0.0
    %1681 = vmatprep.subr.mxu0 0.0
    %1682 = vmatpush1.msra.mxu0 0.0
    %1683 = vmatprep.subr.mxu0 0.0
    %1684 = vmatpush1.msra.mxu0 0.0
    %1685 = vmatprep.subr.mxu0 0.0
    %1686 = vmatpush1.msra.mxu0 0.0
    %1687 = vmatprep.subr.mxu0 0.0
    %1688 = vmatpush1.msra.mxu0 0.0
    %1689 = vmatprep.subr.mxu0 0.0
    %1690 = vmatpush1.msra.mxu0 0.0
    %1691 = vmatprep.subr.mxu0 0.0
    %1692 = vmatpush1.msra.mxu0 0.0
    %1693 = vmatprep.subr.mxu0 0.0
    %1694 = vmatpush1.msra.mxu0 0.0
    %1695 = vmatprep.subr.mxu0 0.0
    %1696 = vmatpush1.msra.mxu0 0.0
    %1697 = vmatprep.subr.mxu0 0.0
    %1698 = vmatpush1.msra.mxu0 0.0
    %1699 = vmatprep.subr.mxu0 0.0
    %1700 = vmatpush1.msra.mxu0 0.0
    %1701 = vmatprep.subr.mxu0 0.0
    %1702 = vmatpush1.msra.mxu0 0.0
    %1703 = vmatprep.subr.mxu0 0.0
    %1704 = vmatpush1.msra.mxu0 0.0
    %1705 = vmatprep.subr.mxu0 0.0
    %1706 = vmatpush1.msra.mxu0 0.0
    %1707 = vmatprep.subr.mxu0 0.0
    %1708 = vmatpush1.msra.mxu0 0.0
    %1709 = vmatprep.subr.mxu0 0.0
    %1710 = vmatpush1.msra.mxu0 0.0
    %1711 = vmatprep.subr.mxu0 0.0
    %1712 = vmatpush1.msra.mxu0 0.0
    %1713 = vmatprep.subr.mxu0 0.0
    %1714 = vmatpush1.msra.mxu0 0.0
    %1715 = vmatprep.subr.mxu0 0.0
    %1716 = vmatpush1.msra.mxu0 0.0
    %1717 = vmatprep.subr.mxu0 0.0
    %1718 = vmatpush1.msra.mxu0 0.0
    %1719 = vmatprep.subr.mxu0 0.0
    %1720 = vmatpush1.msra.mxu0 0.0
    %1721 = vmatprep.subr.mxu0 0.0
    %1722 = vmatpush1.msra.mxu0 0.0
    %1723 = vmatprep.subr.mxu0 0.0
    %1724 = vmatpush1.msra.mxu0 0.0
    %1725 = vmatprep.mubr.f32.mxu0 0.0
    %1726 = vmatmul.mubr.f32.gmra.mrb[0].mxu0 %v1659
    %v1727 = vpop.f32.mrb[0].mxu0
    %v1728 = vadd.f32 0.0, %v1727
    %v1729 = vpop.f32.mrb[0].mxu0
    %1730 = vdwg.mxu0
    %1731 = vrot.lane.b32.xlu0 %v561, 112
    %v1732 = vpop.permute.xlu0 %1731
    %1733 = vrot.lane.b32.xlu0 %v642, 112
    %v1734 = vpop.permute.xlu0 %1733
    %v1735 = vsel %vm726, %v1732, 0
    %v1737 = vsel %vm726, %v1734, 0
    %1739 = vmatprep.subr.mxu0 0.0
    %1740 = vmatpush1.xpose.msra.mxu0 %v1737
    %1741 = vmatprep.subr.mxu0 0.0
    %1742 = vmatpush1.xpose.msra.mxu0 0.0
    %1743 = vmatprep.subr.mxu0 0.0
    %1744 = vmatpush1.xpose.msra.mxu0 0.0
    %1745 = vmatprep.subr.mxu0 0.0
    %1746 = vmatpush1.xpose.msra.mxu0 0.0
    %1747 = vmatprep.subr.mxu0 0.0
    %1748 = vmatpush1.xpose.msra.mxu0 0.0
    %1749 = vmatprep.subr.mxu0 0.0
    %1750 = vmatpush1.xpose.msra.mxu0 0.0
    %1751 = vmatprep.subr.mxu0 0.0
    %1752 = vmatpush1.xpose.msra.mxu0 0.0
    %1753 = vmatprep.subr.mxu0 0.0
    %1754 = vmatpush1.xpose.msra.mxu0 0.0
    %1755 = vmatprep.subr.mxu0 0.0
    %1756 = vmatpush1.xpose.msra.mxu0 0.0
    %1757 = vmatprep.subr.mxu0 0.0
    %1758 = vmatpush1.xpose.msra.mxu0 0.0
    %1759 = vmatprep.subr.mxu0 0.0
    %1760 = vmatpush1.xpose.msra.mxu0 0.0
    %1761 = vmatprep.subr.mxu0 0.0
    %1762 = vmatpush1.xpose.msra.mxu0 0.0
    %1763 = vmatprep.subr.mxu0 0.0
    %1764 = vmatpush1.xpose.msra.mxu0 0.0
    %1765 = vmatprep.subr.mxu0 0.0
    %1766 = vmatpush1.xpose.msra.mxu0 0.0
    %1767 = vmatprep.subr.mxu0 0.0
    %1768 = vmatpush1.xpose.msra.mxu0 0.0
    %1769 = vmatprep.subr.mxu0 0.0
    %1770 = vmatpush1.xpose.msra.mxu0 0.0
    %1771 = vmatprep.subr.mxu0 0.0
    %1772 = vmatpush1.xpose.msra.mxu0 0.0
    %1773 = vmatprep.subr.mxu0 0.0
    %1774 = vmatpush1.xpose.msra.mxu0 0.0
    %1775 = vmatprep.subr.mxu0 0.0
    %1776 = vmatpush1.xpose.msra.mxu0 0.0
    %1777 = vmatprep.subr.mxu0 0.0
    %1778 = vmatpush1.xpose.msra.mxu0 0.0
    %1779 = vmatprep.subr.mxu0 0.0
    %1780 = vmatpush1.xpose.msra.mxu0 0.0
    %1781 = vmatprep.subr.mxu0 0.0
    %1782 = vmatpush1.xpose.msra.mxu0 0.0
    %1783 = vmatprep.subr.mxu0 0.0
    %1784 = vmatpush1.xpose.msra.mxu0 0.0
    %1785 = vmatprep.subr.mxu0 0.0
    %1786 = vmatpush1.xpose.msra.mxu0 0.0
    %1787 = vmatprep.subr.mxu0 0.0
    %1788 = vmatpush1.xpose.msra.mxu0 0.0
    %1789 = vmatprep.subr.mxu0 0.0
    %1790 = vmatpush1.xpose.msra.mxu0 0.0
    %1791 = vmatprep.subr.mxu0 0.0
    %1792 = vmatpush1.xpose.msra.mxu0 0.0
    %1793 = vmatprep.subr.mxu0 0.0
    %1794 = vmatpush1.xpose.msra.mxu0 0.0
    %1795 = vmatprep.subr.mxu0 0.0
    %1796 = vmatpush1.xpose.msra.mxu0 0.0
    %1797 = vmatprep.subr.mxu0 0.0
    %1798 = vmatpush1.xpose.msra.mxu0 0.0
    %1799 = vmatprep.subr.mxu0 0.0
    %1800 = vmatpush1.xpose.msra.mxu0 0.0
    %1801 = vmatprep.subr.mxu0 0.0
    %1802 = vmatpush1.xpose.msra.mxu0 0.0
    %1803 = vmatprep.mubr.f32.mxu0 0.0
    %1804 = vmatmul.mubr.f32.gmra.mrb[0].mxu0 %v1735
    %v1805 = vpop.f32.mrb[0].mxu0
    %v1806 = vadd.f32 0.0, %v1805
    %v1807 = vpop.f32.mrb[0].mxu0
    %1808 = vdwg.mxu0
    %v1809 = vmul.f32 %v1806, 0.35355338
    %v1810 = vsel %vm726, %v1809, -inf
    %1811 = vmax.xlane.f32.xlu0 %v1810
    %v1812 = vpop.xlane.xlu0 %1811
    %v1813 = vsub.f32 %v1809, %v1812
    %v1814 = vmul.f32 %v1813, 1.442695
    %v1815 = vpow.pop %v1814
    %v1816 = vsel %vm726, %v1815, 0.0
    %1817 = vadd.xlane.f32.xlu0 %v1816
    %v1818 = vpop.xlane.xlu0 %1817
    %v1819 = vrcp.pop %v1818
    %v1820 = vmul.f32 %v1815, %v1819
    %1821 = vrot.lane.b32.xlu0 %v723, 112
    %v1822 = vpop.permute.xlu0 %1821
    %v1825 = vsel %vm726, %v1820, 0
    %1827 = vmatprep.subr.mxu0 0.0
    %1828 = vmatpush1.msra.mxu0 %v1822
    %1829 = vmatprep.subr.mxu0 0.0
    %1830 = vmatpush1.msra.mxu0 0.0
    %1831 = vmatprep.subr.mxu0 0.0
    %1832 = vmatpush1.msra.mxu0 0.0
    %1833 = vmatprep.subr.mxu0 0.0
    %1834 = vmatpush1.msra.mxu0 0.0
    %1835 = vmatprep.subr.mxu0 0.0
    %1836 = vmatpush1.msra.mxu0 0.0
    %1837 = vmatprep.subr.mxu0 0.0
    %1838 = vmatpush1.msra.mxu0 0.0
    %1839 = vmatprep.subr.mxu0 0.0
    %1840 = vmatpush1.msra.mxu0 0.0
    %1841 = vmatprep.subr.mxu0 0.0
    %1842 = vmatpush1.msra.mxu0 0.0
    %1843 = vmatprep.subr.mxu0 0.0
    %1844 = vmatpush1.msra.mxu0 0.0
    %1845 = vmatprep.subr.mxu0 0.0
    %1846 = vmatpush1.msra.mxu0 0.0
    %1847 = vmatprep.subr.mxu0 0.0
    %1848 = vmatpush1.msra.mxu0 0.0
    %1849 = vmatprep.subr.mxu0 0.0
    %1850 = vmatpush1.msra.mxu0 0.0
    %1851 = vmatprep.subr.mxu0 0.0
    %1852 = vmatpush1.msra.mxu0 0.0
    %1853 = vmatprep.subr.mxu0 0.0
    %1854 = vmatpush1.msra.mxu0 0.0
    %1855 = vmatprep.subr.mxu0 0.0
    %1856 = vmatpush1.msra.mxu0 0.0
    %1857 = vmatprep.subr.mxu0 0.0
    %1858 = vmatpush1.msra.mxu0 0.0
    %1859 = vmatprep.subr.mxu0 0.0
    %1860 = vmatpush1.msra.mxu0 0.0
    %1861 = vmatprep.subr.mxu0 0.0
    %1862 = vmatpush1.msra.mxu0 0.0
    %1863 = vmatprep.subr.mxu0 0.0
    %1864 = vmatpush1.msra.mxu0 0.0
    %1865 = vmatprep.subr.mxu0 0.0
    %1866 = vmatpush1.msra.mxu0 0.0
    %1867 = vmatprep.subr.mxu0 0.0
    %1868 = vmatpush1.msra.mxu0 0.0
    %1869 = vmatprep.subr.mxu0 0.0
    %1870 = vmatpush1.msra.mxu0 0.0
    %1871 = vmatprep.subr.mxu0 0.0
    %1872 = vmatpush1.msra.mxu0 0.0
    %1873 = vmatprep.subr.mxu0 0.0
    %1874 = vmatpush1.msra.mxu0 0.0
    %1875 = vmatprep.subr.mxu0 0.0
    %1876 = vmatpush1.msra.mxu0 0.0
    %1877 = vmatprep.subr.mxu0 0.0
    %1878 = vmatpush1.msra.mxu0 0.0
    %1879 = vmatprep.subr.mxu0 0.0
    %1880 = vmatpush1.msra.mxu0 0.0
    %1881 = vmatprep.subr.mxu0 0.0
    %1882 = vmatpush1.msra.mxu0 0.0
    %1883 = vmatprep.subr.mxu0 0.0
    %1884 = vmatpush1.msra.mxu0 0.0
    %1885 = vmatprep.subr.mxu0 0.0
    %1886 = vmatpush1.msra.mxu0 0.0
    %1887 = vmatprep.subr.mxu0 0.0
    %1888 = vmatpush1.msra.mxu0 0.0
    %1889 = vmatprep.subr.mxu0 0.0
    %1890 = vmatpush1.msra.mxu0 0.0
    %1891 = vmatprep.mubr.f32.mxu0 0.0
    %1892 = vmatmul.mubr.f32.gmra.mrb[0].mxu0 %v1825
    %v1893 = vpop.f32.mrb[0].mxu0
    %v1894 = vadd.f32 0.0, %v1893
    %v1895 = vpop.f32.mrb[0].mxu0
    %1896 = vdwg.mxu0
    %1897 = vrot.lane.b32.xlu0 %v561, 104
    %v1898 = vpop.permute.xlu0 %1897
    %1899 = vrot.lane.b32.xlu0 %v642, 104
    %v1900 = vpop.permute.xlu0 %1899
    %v1901 = vsel %vm726, %v1898, 0
    %v1903 = vsel %vm726, %v1900, 0
    %1905 = vmatprep.subr.mxu0 0.0
    %1906 = vmatpush1.xpose.msra.mxu0 %v1903
    %1907 = vmatprep.subr.mxu0 0.0
    %1908 = vmatpush1.xpose.msra.mxu0 0.0
    %1909 = vmatprep.subr.mxu0 0.0
    %1910 = vmatpush1.xpose.msra.mxu0 0.0
    %1911 = vmatprep.subr.mxu0 0.0
    %1912 = vmatpush1.xpose.msra.mxu0 0.0
    %1913 = vmatprep.subr.mxu0 0.0
    %1914 = vmatpush1.xpose.msra.mxu0 0.0
    %1915 = vmatprep.subr.mxu0 0.0
    %1916 = vmatpush1.xpose.msra.mxu0 0.0
    %1917 = vmatprep.subr.mxu0 0.0
    %1918 = vmatpush1.xpose.msra.mxu0 0.0
    %1919 = vmatprep.subr.mxu0 0.0
    %1920 = vmatpush1.xpose.msra.mxu0 0.0
    %1921 = vmatprep.subr.mxu0 0.0
    %1922 = vmatpush1.xpose.msra.mxu0 0.0
    %1923 = vmatprep.subr.mxu0 0.0
    %1924 = vmatpush1.xpose.msra.mxu0 0.0
    %1925 = vmatprep.subr.mxu0 0.0
    %1926 = vmatpush1.xpose.msra.mxu0 0.0
    %1927 = vmatprep.subr.mxu0 0.0
    %1928 = vmatpush1.xpose.msra.mxu0 0.0
    %1929 = vmatprep.subr.mxu0 0.0
    %1930 = vmatpush1.xpose.msra.mxu0 0.0
    %1931 = vmatprep.subr.mxu0 0.0
    %1932 = vmatpush1.xpose.msra.mxu0 0.0
    %1933 = vmatprep.subr.mxu0 0.0
    %1934 = vmatpush1.xpose.msra.mxu0 0.0
    %1935 = vmatprep.subr.mxu0 0.0
    %1936 = vmatpush1.xpose.msra.mxu0 0.0
    %1937 = vmatprep.subr.mxu0 0.0
    %1938 = vmatpush1.xpose.msra.mxu0 0.0
    %1939 = vmatprep.subr.mxu0 0.0
    %1940 = vmatpush1.xpose.msra.mxu0 0.0
    %1941 = vmatprep.subr.mxu0 0.0
    %1942 = vmatpush1.xpose.msra.mxu0 0.0
    %1943 = vmatprep.subr.mxu0 0.0
    %1944 = vmatpush1.xpose.msra.mxu0 0.0
    %1945 = vmatprep.subr.mxu0 0.0
    %1946 = vmatpush1.xpose.msra.mxu0 0.0
    %1947 = vmatprep.subr.mxu0 0.0
    %1948 = vmatpush1.xpose.msra.mxu0 0.0
    %1949 = vmatprep.subr.mxu0 0.0
    %1950 = vmatpush1.xpose.msra.mxu0 0.0
    %1951 = vmatprep.subr.mxu0 0.0
    %1952 = vmatpush1.xpose.msra.mxu0 0.0
    %1953 = vmatprep.subr.mxu0 0.0
    %1954 = vmatpush1.xpose.msra.mxu0 0.0
    %1955 = vmatprep.subr.mxu0 0.0
    %1956 = vmatpush1.xpose.msra.mxu0 0.0
    %1957 = vmatprep.subr.mxu0 0.0
    %1958 = vmatpush1.xpose.msra.mxu0 0.0
    %1959 = vmatprep.subr.mxu0 0.0
    %1960 = vmatpush1.xpose.msra.mxu0 0.0
    %1961 = vmatprep.subr.mxu0 0.0
    %1962 = vmatpush1.xpose.msra.mxu0 0.0
    %1963 = vmatprep.subr.mxu0 0.0
    %1964 = vmatpush1.xpose.msra.mxu0 0.0
    %1965 = vmatprep.subr.mxu0 0.0
    %1966 = vmatpush1.xpose.msra.mxu0 0.0
    %1967 = vmatprep.subr.mxu0 0.0
    %1968 = vmatpush1.xpose.msra.mxu0 0.0
    %1969 = vmatprep.mubr.f32.mxu0 0.0
    %1970 = vmatmul.mubr.f32.gmra.mrb[0].mxu0 %v1901
    %v1971 = vpop.f32.mrb[0].mxu0
    %v1972 = vadd.f32 0.0, %v1971
    %v1973 = vpop.f32.mrb[0].mxu0
    %1974 = vdwg.mxu0
    %v1975 = vmul.f32 %v1972, 0.35355338
    %v1976 = vsel %vm726, %v1975, -inf
    %1977 = vmax.xlane.f32.xlu0 %v1976
    %v1978 = vpop.xlane.xlu0 %1977
    %v1979 = vsub.f32 %v1975, %v1978
    %v1980 = vmul.f32 %v1979, 1.442695
    %v1981 = vpow.pop %v1980
    %v1982 = vsel %vm726, %v1981, 0.0
    %1983 = vadd.xlane.f32.xlu0 %v1982
    %v1984 = vpop.xlane.xlu0 %1983
    %v1985 = vrcp.pop %v1984
    %v1986 = vmul.f32 %v1981, %v1985
    %1987 = vrot.lane.b32.xlu0 %v723, 104
    %v1988 = vpop.permute.xlu0 %1987
    %v1991 = vsel %vm726, %v1986, 0
    %1993 = vmatprep.subr.mxu0 0.0
    %1994 = vmatpush1.msra.mxu0 %v1988
    %1995 = vmatprep.subr.mxu0 0.0
    %1996 = vmatpush1.msra.mxu0 0.0
    %1997 = vmatprep.subr.mxu0 0.0
    %1998 = vmatpush1.msra.mxu0 0.0
    %1999 = vmatprep.subr.mxu0 0.0
    %2000 = vmatpush1.msra.mxu0 0.0
    %2001 = vmatprep.subr.mxu0 0.0
    %2002 = vmatpush1.msra.mxu0 0.0
    %2003 = vmatprep.subr.mxu0 0.0
    %2004 = vmatpush1.msra.mxu0 0.0
    %2005 = vmatprep.subr.mxu0 0.0
    %2006 = vmatpush1.msra.mxu0 0.0
    %2007 = vmatprep.subr.mxu0 0.0
    %2008 = vmatpush1.msra.mxu0 0.0
    %2009 = vmatprep.subr.mxu0 0.0
    %2010 = vmatpush1.msra.mxu0 0.0
    %2011 = vmatprep.subr.mxu0 0.0
    %2012 = vmatpush1.msra.mxu0 0.0
    %2013 = vmatprep.subr.mxu0 0.0
    %2014 = vmatpush1.msra.mxu0 0.0
    %2015 = vmatprep.subr.mxu0 0.0
    %2016 = vmatpush1.msra.mxu0 0.0
    %2017 = vmatprep.subr.mxu0 0.0
    %2018 = vmatpush1.msra.mxu0 0.0
    %2019 = vmatprep.subr.mxu0 0.0
    %2020 = vmatpush1.msra.mxu0 0.0
    %2021 = vmatprep.subr.mxu0 0.0
    %2022 = vmatpush1.msra.mxu0 0.0
    %2023 = vmatprep.subr.mxu0 0.0
    %2024 = vmatpush1.msra.mxu0 0.0
    %2025 = vmatprep.subr.mxu0 0.0
    %2026 = vmatpush1.msra.mxu0 0.0
    %2027 = vmatprep.subr.mxu0 0.0
    %2028 = vmatpush1.msra.mxu0 0.0
    %2029 = vmatprep.subr.mxu0 0.0
    %2030 = vmatpush1.msra.mxu0 0.0
    %2031 = vmatprep.subr.mxu0 0.0
    %2032 = vmatpush1.msra.mxu0 0.0
    %2033 = vmatprep.subr.mxu0 0.0
    %2034 = vmatpush1.msra.mxu0 0.0
    %2035 = vmatprep.subr.mxu0 0.0
    %2036 = vmatpush1.msra.mxu0 0.0
    %2037 = vmatprep.subr.mxu0 0.0
    %2038 = vmatpush1.msra.mxu0 0.0
    %2039 = vmatprep.subr.mxu0 0.0
    %2040 = vmatpush1.msra.mxu0 0.0
    %2041 = vmatprep.subr.mxu0 0.0
    %2042 = vmatpush1.msra.mxu0 0.0
    %2043 = vmatprep.subr.mxu0 0.0
    %2044 = vmatpush1.msra.mxu0 0.0
    %2045 = vmatprep.subr.mxu0 0.0
    %2046 = vmatpush1.msra.mxu0 0.0
    %2047 = vmatprep.subr.mxu0 0.0
    %2048 = vmatpush1.msra.mxu0 0.0
    %2049 = vmatprep.subr.mxu0 0.0
    %2050 = vmatpush1.msra.mxu0 0.0
    %2051 = vmatprep.subr.mxu0 0.0
    %2052 = vmatpush1.msra.mxu0 0.0
    %2053 = vmatprep.subr.mxu0 0.0
    %2054 = vmatpush1.msra.mxu0 0.0
    %2055 = vmatprep.subr.mxu0 0.0
    %2056 = vmatpush1.msra.mxu0 0.0
    %2057 = vmatprep.mubr.f32.mxu0 0.0
    %2058 = vmatmul.mubr.f32.gmra.mrb[0].mxu0 %v1991
    %v2059 = vpop.f32.mrb[0].mxu0
    %v2060 = vadd.f32 0.0, %v2059
    %v2061 = vpop.f32.mrb[0].mxu0
    %2062 = vdwg.mxu0
    %2064 = vrot.lane.b32.xlu0 %v1728, 8
    %v2065 = vpop.permute.xlu0 %2064
    %2068 = vrot.lane.b32.xlu0 %v1894, 16
    %v2069 = vpop.permute.xlu0 %2068
    %2072 = vrot.lane.b32.xlu0 %v2060, 24
    %v2073 = vpop.permute.xlu0 %2072
    %v2075 = vsel %vm726, %v1561, %v2065
    %v2076 = vsel %vm394, %v2075, %v2069
    %v2077 = vsel %vm1401, %v2076, %v2073
    %v2079 = vlaneseq
    %v2080 = vshrl.u32 %v2079, 7
    %v2081 = vsub.s32 0, %v2080
    %v2082 = vrot.slane %v345, %v2081
    %v2085 = vsel %vm482, %v1402, 0
    %v2088 = vsel %vm482, %v2077, 0
    %2090 = vmatprep.subr.mxu0 0.0
    %2091 = vmatpush1.msra.mxu0 %v341
    %2092 = vmatprep.subr.mxu0 0.0
    %2093 = vmatpush1.msra.mxu0 %v342
    %2094 = vmatprep.subr.mxu0 0.0
    %2095 = vmatpush1.msra.mxu0 %v343
    %2096 = vmatprep.subr.mxu0 0.0
    %2097 = vmatpush1.msra.mxu0 %v344
    %2098 = vmatprep.subr.mxu0 0.0
    %2099 = vmatpush1.msra.mxu0 0.0
    %2100 = vmatprep.subr.mxu0 0.0
    %2101 = vmatpush1.msra.mxu0 0.0
    %2102 = vmatprep.subr.mxu0 0.0
    %2103 = vmatpush1.msra.mxu0 0.0
    %2104 = vmatprep.subr.mxu0 0.0
    %2105 = vmatpush1.msra.mxu0 0.0
    %2106 = vmatprep.subr.mxu0 0.0
    %2107 = vmatpush1.msra.mxu0 0.0
    %2108 = vmatprep.subr.mxu0 0.0
    %2109 = vmatpush1.msra.mxu0 0.0
    %2110 = vmatprep.subr.mxu0 0.0
    %2111 = vmatpush1.msra.mxu0 0.0
    %2112 = vmatprep.subr.mxu0 0.0
    %2113 = vmatpush1.msra.mxu0 0.0
    %2114 = vmatprep.subr.mxu0 0.0
    %2115 = vmatpush1.msra.mxu0 0.0
    %2116 = vmatprep.subr.mxu0 0.0
    %2117 = vmatpush1.msra.mxu0 0.0
    %2118 = vmatprep.subr.mxu0 0.0
    %2119 = vmatpush1.msra.mxu0 0.0
    %2120 = vmatprep.subr.mxu0 0.0
    %2121 = vmatpush1.msra.mxu0 0.0
    %2122 = vmatprep.subr.mxu0 0.0
    %2123 = vmatpush1.msra.mxu0 0.0
    %2124 = vmatprep.subr.mxu0 0.0
    %2125 = vmatpush1.msra.mxu0 0.0
    %2126 = vmatprep.subr.mxu0 0.0
    %2127 = vmatpush1.msra.mxu0 0.0
    %2128 = vmatprep.subr.mxu0 0.0
    %2129 = vmatpush1.msra.mxu0 0.0
    %2130 = vmatprep.subr.mxu0 0.0
    %2131 = vmatpush1.msra.mxu0 0.0
    %2132 = vmatprep.subr.mxu0 0.0
    %2133 = vmatpush1.msra.mxu0 0.0
    %2134 = vmatprep.subr.mxu0 0.0
    %2135 = vmatpush1.msra.mxu0 0.0
    %2136 = vmatprep.subr.mxu0 0.0
    %2137 = vmatpush1.msra.mxu0 0.0
    %2138 = vmatprep.subr.mxu0 0.0
    %2139 = vmatpush1.msra.mxu0 0.0
    %2140 = vmatprep.subr.mxu0 0.0
    %2141 = vmatpush1.msra.mxu0 0.0
    %2142 = vmatprep.subr.mxu0 0.0
    %2143 = vmatpush1.msra.mxu0 0.0
    %2144 = vmatprep.subr.mxu0 0.0
    %2145 = vmatpush1.msra.mxu0 0.0
    %2146 = vmatprep.subr.mxu0 0.0
    %2147 = vmatpush1.msra.mxu0 0.0
    %2148 = vmatprep.subr.mxu0 0.0
    %2149 = vmatpush1.msra.mxu0 0.0
    %2150 = vmatprep.subr.mxu0 0.0
    %2151 = vmatpush1.msra.mxu0 0.0
    %2152 = vmatprep.subr.mxu0 0.0
    %2153 = vmatpush1.msra.mxu0 0.0
    %2154 = vmatprep.mubr.f32.mxu0 0.0
    %2155 = vmatmul.mubr.f32.gmra.mrb[0].mxu0 %v2085
    %v2156 = vpop.f32.mrb[0].mxu0
    %v2157 = vadd.f32 %v2082, %v2156
    %v2158 = vpop.f32.mrb[0].mxu0
    %2159 = vmatprep.mubr.f32.mxu0 0.0
    %2160 = vmatmul.mubr.f32.gmra.mrb[0].mxu0 %v2088
    %v2161 = vpop.f32.mrb[0].mxu0
    %v2162 = vadd.f32 %v2082, %v2161
    %v2163 = vpop.f32.mrb[0].mxu0
    %2164 = vdwg.mxu0
    %v2165 = vadd.f32 %v468, %v2157
    %v2166 = vadd.f32 %v473, %v2162
    %v2167 = vsel %vm482, %v2165, 0.0
    %2168 = vadd.xlane.f32.xlu0 %v2167
    %v2169 = vpop.xlane.xlu0 %2168
    %v2170 = vsel %vm482, %v2166, 0.0
    %2171 = vadd.xlane.f32.xlu0 %v2170
    %v2172 = vpop.xlane.xlu0 %2171
    %v2173 = vrcp.pop 32.0
    %v2174 = vmul.f32 %v2169, %v2173
    %v2175 = vmul.f32 %v2172, %v2173
    %v2176 = vsub.f32 %v2165, %v2174
    %v2177 = vsub.f32 %v2166, %v2175
    %v2178 = vmul.f32 %v2176, %v2176
    %v2179 = vmul.f32 %v2177, %v2177
    %v2180 = vsel %vm482, %v2178, 0.0
    %2181 = vadd.xlane.f32.xlu0 %v2180
    %v2182 = vpop.xlane.xlu0 %2181
    %v2183 = vsel %vm482, %v2179, 0.0
    %2184 = vadd.xlane.f32.xlu0 %v2183
    %v2185 = vpop.xlane.xlu0 %2184
    %v2186 = vmul.f32 %v2182, %v2173
    %v2187 = vmul.f32 %v2185, %v2173
    %v2188 = vadd.f32 %v2186, 1e-05
    %v2189 = vadd.f32 %v2187, 1e-05
    %v2190 = vrsqrt.pop %v2188
    %v2191 = vrsqrt.pop %v2189
    %v2192 = vmul.f32 %v2176, %v2190
    %v2193 = vmul.f32 %v2177, %v2191
    %v2195 = vlaneseq
    %v2196 = vshrl.u32 %v2195, 7
    %v2197 = vsub.s32 0, %v2196
    %v2198 = vrot.slane %v346, %v2197
    %v2200 = vmul.f32 %v2192, %v2198
    %v2201 = vmul.f32 %v2193, %v2198
    %v2203 = vlaneseq
    %v2204 = vshrl.u32 %v2203, 7
    %v2205 = vsub.s32 0, %v2204
    %v2206 = vrot.slane %v347, %v2205
    %v2208 = vadd.f32 %v2200, %v2206
    %v2209 = vadd.f32 %v2201, %v2206
    %v2211 = vlaneseq
    %v2212 = vshrl.u32 %v2211, 7
    %v2213 = vsub.s32 0, %v2212
    %v2214 = vrot.slane %v352, %v2213
    %v2217 = vsel %vm482, %v2208, 0
    %v2220 = vsel %vm482, %v2209, 0
    %2222 = vmatprep.subr.mxu0 0.0
    %2223 = vmatpush1.msra.mxu0 %v348
    %2224 = vmatprep.subr.mxu0 0.0
    %2225 = vmatpush1.msra.mxu0 %v349
    %2226 = vmatprep.subr.mxu0 0.0
    %2227 = vmatpush1.msra.mxu0 %v350
    %2228 = vmatprep.subr.mxu0 0.0
    %2229 = vmatpush1.msra.mxu0 %v351
    %2230 = vmatprep.subr.mxu0 0.0
    %2231 = vmatpush1.msra.mxu0 0.0
    %2232 = vmatprep.subr.mxu0 0.0
    %2233 = vmatpush1.msra.mxu0 0.0
    %2234 = vmatprep.subr.mxu0 0.0
    %2235 = vmatpush1.msra.mxu0 0.0
    %2236 = vmatprep.subr.mxu0 0.0
    %2237 = vmatpush1.msra.mxu0 0.0
    %2238 = vmatprep.subr.mxu0 0.0
    %2239 = vmatpush1.msra.mxu0 0.0
    %2240 = vmatprep.subr.mxu0 0.0
    %2241 = vmatpush1.msra.mxu0 0.0
    %2242 = vmatprep.subr.mxu0 0.0
    %2243 = vmatpush1.msra.mxu0 0.0
    %2244 = vmatprep.subr.mxu0 0.0
    %2245 = vmatpush1.msra.mxu0 0.0
    %2246 = vmatprep.subr.mxu0 0.0
    %2247 = vmatpush1.msra.mxu0 0.0
    %2248 = vmatprep.subr.mxu0 0.0
    %2249 = vmatpush1.msra.mxu0 0.0
    %2250 = vmatprep.subr.mxu0 0.0
    %2251 = vmatpush1.msra.mxu0 0.0
    %2252 = vmatprep.subr.mxu0 0.0
    %2253 = vmatpush1.msra.mxu0 0.0
    %2254 = vmatprep.subr.mxu0 0.0
    %2255 = vmatpush1.msra.mxu0 0.0
    %2256 = vmatprep.subr.mxu0 0.0
    %2257 = vmatpush1.msra.mxu0 0.0
    %2258 = vmatprep.subr.mxu0 0.0
    %2259 = vmatpush1.msra.mxu0 0.0
    %2260 = vmatprep.subr.mxu0 0.0
    %2261 = vmatpush1.msra.mxu0 0.0
    %2262 = vmatprep.subr.mxu0 0.0
    %2263 = vmatpush1.msra.mxu0 0.0
    %2264 = vmatprep.subr.mxu0 0.0
    %2265 = vmatpush1.msra.mxu0 0.0
    %2266 = vmatprep.subr.mxu0 0.0
    %2267 = vmatpush1.msra.mxu0 0.0
    %2268 = vmatprep.subr.mxu0 0.0
    %2269 = vmatpush1.msra.mxu0 0.0
    %2270 = vmatprep.subr.mxu0 0.0
    %2271 = vmatpush1.msra.mxu0 0.0
    %2272 = vmatprep.subr.mxu0 0.0
    %2273 = vmatpush1.msra.mxu0 0.0
    %2274 = vmatprep.subr.mxu0 0.0
    %2275 = vmatpush1.msra.mxu0 0.0
    %2276 = vmatprep.subr.mxu0 0.0
    %2277 = vmatpush1.msra.mxu0 0.0
    %2278 = vmatprep.subr.mxu0 0.0
    %2279 = vmatpush1.msra.mxu0 0.0
    %2280 = vmatprep.subr.mxu0 0.0
    %2281 = vmatpush1.msra.mxu0 0.0
    %2282 = vmatprep.subr.mxu0 0.0
    %2283 = vmatpush1.msra.mxu0 0.0
    %2284 = vmatprep.subr.mxu0 0.0
    %2285 = vmatpush1.msra.mxu0 0.0
    %2286 = vmatprep.mubr.f32.mxu0 0.0
    %2287 = vmatmul.mubr.f32.gmra.mrb[0].mxu0 %v2217
    %v2288 = vpop.f32.mrb[0].mxu0
    %v2289 = vadd.f32 %v2214, %v2288
    %v2290 = vpop.f32.mrb[0].mxu0
    %2291 = vmatprep.mubr.f32.mxu0 0.0
    %2292 = vmatmul.mubr.f32.gmra.mrb[0].mxu0 %v2220
    %v2293 = vpop.f32.mrb[0].mxu0
    %v2294 = vadd.f32 %v2214, %v2293
    %v2295 = vpop.f32.mrb[0].mxu0
    %2296 = vdwg.mxu0
    %v2297 = vmax.f32 %v2289, 0.0
    %v2298 = vmax.f32 %v2294, 0.0
    %v2300 = vlaneseq
    %v2301 = vshrl.u32 %v2300, 7
    %v2302 = vsub.s32 0, %v2301
    %v2303 = vrot.slane %v361, %v2302
    %vm2305 = vcmask 523264
    %v2307 = vsel %vm2305, %v2297, 0
    %v2310 = vsel %vm2305, %v2298, 0
    %2312 = vmatprep.subr.mxu0 0.0
    %2313 = vmatpush1.msra.mxu0 %v353
    %2314 = vmatprep.subr.mxu0 0.0
    %2315 = vmatpush1.msra.mxu0 %v354
    %2316 = vmatprep.subr.mxu0 0.0
    %2317 = vmatpush1.msra.mxu0 %v355
    %2318 = vmatprep.subr.mxu0 0.0
    %2319 = vmatpush1.msra.mxu0 %v356
    %2320 = vmatprep.subr.mxu0 0.0
    %2321 = vmatpush1.msra.mxu0 %v357
    %2322 = vmatprep.subr.mxu0 0.0
    %2323 = vmatpush1.msra.mxu0 %v358
    %2324 = vmatprep.subr.mxu0 0.0
    %2325 = vmatpush1.msra.mxu0 %v359
    %2326 = vmatprep.subr.mxu0 0.0
    %2327 = vmatpush1.msra.mxu0 %v360
    %2328 = vmatprep.subr.mxu0 0.0
    %2329 = vmatpush1.msra.mxu0 0.0
    %2330 = vmatprep.subr.mxu0 0.0
    %2331 = vmatpush1.msra.mxu0 0.0
    %2332 = vmatprep.subr.mxu0 0.0
    %2333 = vmatpush1.msra.mxu0 0.0
    %2334 = vmatprep.subr.mxu0 0.0
    %2335 = vmatpush1.msra.mxu0 0.0
    %2336 = vmatprep.subr.mxu0 0.0
    %2337 = vmatpush1.msra.mxu0 0.0
    %2338 = vmatprep.subr.mxu0 0.0
    %2339 = vmatpush1.msra.mxu0 0.0
    %2340 = vmatprep.subr.mxu0 0.0
    %2341 = vmatpush1.msra.mxu0 0.0
    %2342 = vmatprep.subr.mxu0 0.0
    %2343 = vmatpush1.msra.mxu0 0.0
    %2344 = vmatprep.subr.mxu0 0.0
    %2345 = vmatpush1.msra.mxu0 0.0
    %2346 = vmatprep.subr.mxu0 0.0
    %2347 = vmatpush1.msra.mxu0 0.0
    %2348 = vmatprep.subr.mxu0 0.0
    %2349 = vmatpush1.msra.mxu0 0.0
    %2350 = vmatprep.subr.mxu0 0.0
    %2351 = vmatpush1.msra.mxu0 0.0
    %2352 = vmatprep.subr.mxu0 0.0
    %2353 = vmatpush1.msra.mxu0 0.0
    %2354 = vmatprep.subr.mxu0 0.0
    %2355 = vmatpush1.msra.mxu0 0.0
    %2356 = vmatprep.subr.mxu0 0.0
    %2357 = vmatpush1.msra.mxu0 0.0
    %2358 = vmatprep.subr.mxu0 0.0
    %2359 = vmatpush1.msra.mxu0 0.0
    %2360 = vmatprep.subr.mxu0 0.0
    %2361 = vmatpush1.msra.mxu0 0.0
    %2362 = vmatprep.subr.mxu0 0.0
    %2363 = vmatpush1.msra.mxu0 0.0
    %2364 = vmatprep.subr.mxu0 0.0
    %2365 = vmatpush1.msra.mxu0 0.0
    %2366 = vmatprep.subr.mxu0 0.0
    %2367 = vmatpush1.msra.mxu0 0.0
    %2368 = vmatprep.subr.mxu0 0.0
    %2369 = vmatpush1.msra.mxu0 0.0
    %2370 = vmatprep.subr.mxu0 0.0
    %2371 = vmatpush1.msra.mxu0 0.0
    %2372 = vmatprep.subr.mxu0 0.0
    %2373 = vmatpush1.msra.mxu0 0.0
    %2374 = vmatprep.subr.mxu0 0.0
    %2375 = vmatpush1.msra.mxu0 0.0
    %2376 = vmatprep.mubr.f32.mxu0 0.0
    %2377 = vmatmul.mubr.f32.gmra.mrb[0].mxu0 %v2307
    %v2378 = vpop.f32.mrb[0].mxu0
    %v2379 = vadd.f32 %v2303, %v2378
    %v2380 = vpop.f32.mrb[0].mxu0
    %2381 = vmatprep.mubr.f32.mxu0 0.0
    %2382 = vmatmul.mubr.f32.gmra.mrb[0].mxu0 %v2310
    %v2383 = vpop.f32.mrb[0].mxu0
    %v2384 = vadd.f32 %v2303, %v2383
    %v2385 = vpop.f32.mrb[0].mxu0
    %2386 = vdwg.mxu0
    %v2387 = vadd.f32 %v2208, %v2379
    %v2388 = vadd.f32 %v2209, %v2384
    %v2389 = vsel %vm482, %v2387, 0.0
    %2390 = vadd.xlane.f32.xlu0 %v2389
    %v2391 = vpop.xlane.xlu0 %2390
    %v2392 = vsel %vm482, %v2388, 0.0
    %2393 = vadd.xlane.f32.xlu0 %v2392
    %v2394 = vpop.xlane.xlu0 %2393
    %v2395 = vmul.f32 %v2391, %v2173
    %v2396 = vmul.f32 %v2394, %v2173
    %v2397 = vsub.f32 %v2387, %v2395
    %v2398 = vsub.f32 %v2388, %v2396
    %v2399 = vmul.f32 %v2397, %v2397
    %v2400 = vmul.f32 %v2398, %v2398
    %v2401 = vsel %vm482, %v2399, 0.0
    %2402 = vadd.xlane.f32.xlu0 %v2401
    %v2403 = vpop.xlane.xlu0 %2402
    %v2404 = vsel %vm482, %v2400, 0.0
    %2405 = vadd.xlane.f32.xlu0 %v2404
    %v2406 = vpop.xlane.xlu0 %2405
    %v2407 = vmul.f32 %v2403, %v2173
    %v2408 = vmul.f32 %v2406, %v2173
    %v2409 = vadd.f32 %v2407, 1e-05
    %v2410 = vadd.f32 %v2408, 1e-05
    %v2411 = vrsqrt.pop %v2409
    %v2412 = vrsqrt.pop %v2410
    %v2413 = vmul.f32 %v2397, %v2411
    %v2414 = vmul.f32 %v2398, %v2412
    %v2416 = vlaneseq
    %v2417 = vshrl.u32 %v2416, 7
    %v2418 = vsub.s32 0, %v2417
    %v2419 = vrot.slane %v362, %v2418
    %v2421 = vmul.f32 %v2413, %v2419
    %v2422 = vmul.f32 %v2414, %v2419
    %v2424 = vlaneseq
    %v2425 = vshrl.u32 %v2424, 7
    %v2426 = vsub.s32 0, %v2425
    %v2427 = vrot.slane %v363, %v2426
    %v2429 = vadd.f32 %v2421, %v2427
    %v2430 = vadd.f32 %v2422, %v2427
    %v2432 = vlaneseq
    %v2433 = vshrl.u32 %v2432, 7
    %v2434 = vsub.s32 0, %v2433
    %v2435 = vrot.slane %v376, %v2434
    %v2438 = vsel %vm482, %v2429, 0
    %v2441 = vsel %vm482, %v2430, 0
    %2443 = vmatprep.subr.mxu0 0.0
    %2444 = vmatpush1.msra.mxu0 %v364
    %2445 = vmatprep.subr.mxu0 0.0
    %2446 = vmatpush1.msra.mxu0 %v365
    %2447 = vmatprep.subr.mxu0 0.0
    %2448 = vmatpush1.msra.mxu0 %v366
    %2449 = vmatprep.subr.mxu0 0.0
    %2450 = vmatpush1.msra.mxu0 %v367
    %2451 = vmatprep.subr.mxu0 0.0
    %2452 = vmatpush1.msra.mxu0 0.0
    %2453 = vmatprep.subr.mxu0 0.0
    %2454 = vmatpush1.msra.mxu0 0.0
    %2455 = vmatprep.subr.mxu0 0.0
    %2456 = vmatpush1.msra.mxu0 0.0
    %2457 = vmatprep.subr.mxu0 0.0
    %2458 = vmatpush1.msra.mxu0 0.0
    %2459 = vmatprep.subr.mxu0 0.0
    %2460 = vmatpush1.msra.mxu0 0.0
    %2461 = vmatprep.subr.mxu0 0.0
    %2462 = vmatpush1.msra.mxu0 0.0
    %2463 = vmatprep.subr.mxu0 0.0
    %2464 = vmatpush1.msra.mxu0 0.0
    %2465 = vmatprep.subr.mxu0 0.0
    %2466 = vmatpush1.msra.mxu0 0.0
    %2467 = vmatprep.subr.mxu0 0.0
    %2468 = vmatpush1.msra.mxu0 0.0
    %2469 = vmatprep.subr.mxu0 0.0
    %2470 = vmatpush1.msra.mxu0 0.0
    %2471 = vmatprep.subr.mxu0 0.0
    %2472 = vmatpush1.msra.mxu0 0.0
    %2473 = vmatprep.subr.mxu0 0.0
    %2474 = vmatpush1.msra.mxu0 0.0
    %2475 = vmatprep.subr.mxu0 0.0
    %2476 = vmatpush1.msra.mxu0 0.0
    %2477 = vmatprep.subr.mxu0 0.0
    %2478 = vmatpush1.msra.mxu0 0.0
    %2479 = vmatprep.subr.mxu0 0.0
    %2480 = vmatpush1.msra.mxu0 0.0
    %2481 = vmatprep.subr.mxu0 0.0
    %2482 = vmatpush1.msra.mxu0 0.0
    %2483 = vmatprep.subr.mxu0 0.0
    %2484 = vmatpush1.msra.mxu0 0.0
    %2485 = vmatprep.subr.mxu0 0.0
    %2486 = vmatpush1.msra.mxu0 0.0
    %2487 = vmatprep.subr.mxu0 0.0
    %2488 = vmatpush1.msra.mxu0 0.0
    %2489 = vmatprep.subr.mxu0 0.0
    %2490 = vmatpush1.msra.mxu0 0.0
    %2491 = vmatprep.subr.mxu0 0.0
    %2492 = vmatpush1.msra.mxu0 0.0
    %2493 = vmatprep.subr.mxu0 0.0
    %2494 = vmatpush1.msra.mxu0 0.0
    %2495 = vmatprep.subr.mxu0 0.0
    %2496 = vmatpush1.msra.mxu0 0.0
    %2497 = vmatprep.subr.mxu0 0.0
    %2498 = vmatpush1.msra.mxu0 0.0
    %2499 = vmatprep.subr.mxu0 0.0
    %2500 = vmatpush1.msra.mxu0 0.0
    %2501 = vmatprep.subr.mxu0 0.0
    %2502 = vmatpush1.msra.mxu0 0.0
    %2503 = vmatprep.subr.mxu0 0.0
    %2504 = vmatpush1.msra.mxu0 0.0
    %2505 = vmatprep.subr.mxu0 0.0
    %2506 = vmatpush1.msra.mxu0 0.0
    %2507 = vmatprep.mubr.f32.mxu0 0.0
    %2508 = vmatmul.mubr.f32.gmra.mrb[0].mxu0 %v2438
    %v2509 = vpop.f32.mrb[0].mxu0
    %v2510 = vadd.f32 %v2435, %v2509
    %v2511 = vpop.f32.mrb[0].mxu0
    %2512 = vmatprep.mubr.f32.mxu0 0.0
    %2513 = vmatmul.mubr.f32.gmra.mrb[0].mxu0 %v2441
    %v2514 = vpop.f32.mrb[0].mxu0
    %v2515 = vadd.f32 %v2435, %v2514
    %v2516 = vpop.f32.mrb[0].mxu0
    %2517 = vdwg.mxu0
    %v2519 = vlaneseq
    %v2520 = vshrl.u32 %v2519, 7
    %v2521 = vsub.s32 0, %v2520
    %v2522 = vrot.slane %v377, %v2521
    %v2525 = vsel %vm482, %v386, 0
    %v2528 = vsel %vm482, %v387, 0
    %2530 = vmatprep.subr.mxu0 0.0
    %2531 = vmatpush1.msra.mxu0 %v368
    %2532 = vmatprep.subr.mxu0 0.0
    %2533 = vmatpush1.msra.mxu0 %v369
    %2534 = vmatprep.subr.mxu0 0.0
    %2535 = vmatpush1.msra.mxu0 %v370
    %2536 = vmatprep.subr.mxu0 0.0
    %2537 = vmatpush1.msra.mxu0 %v371
    %2538 = vmatprep.subr.mxu0 0.0
    %2539 = vmatpush1.msra.mxu0 0.0
    %2540 = vmatprep.subr.mxu0 0.0
    %2541 = vmatpush1.msra.mxu0 0.0
    %2542 = vmatprep.subr.mxu0 0.0
    %2543 = vmatpush1.msra.mxu0 0.0
    %2544 = vmatprep.subr.mxu0 0.0
    %2545 = vmatpush1.msra.mxu0 0.0
    %2546 = vmatprep.subr.mxu0 0.0
    %2547 = vmatpush1.msra.mxu0 0.0
    %2548 = vmatprep.subr.mxu0 0.0
    %2549 = vmatpush1.msra.mxu0 0.0
    %2550 = vmatprep.subr.mxu0 0.0
    %2551 = vmatpush1.msra.mxu0 0.0
    %2552 = vmatprep.subr.mxu0 0.0
    %2553 = vmatpush1.msra.mxu0 0.0
    %2554 = vmatprep.subr.mxu0 0.0
    %2555 = vmatpush1.msra.mxu0 0.0
    %2556 = vmatprep.subr.mxu0 0.0
    %2557 = vmatpush1.msra.mxu0 0.0
    %2558 = vmatprep.subr.mxu0 0.0
    %2559 = vmatpush1.msra.mxu0 0.0
    %2560 = vmatprep.subr.mxu0 0.0
    %2561 = vmatpush1.msra.mxu0 0.0
    %2562 = vmatprep.subr.mxu0 0.0
    %2563 = vmatpush1.msra.mxu0 0.0
    %2564 = vmatprep.subr.mxu0 0.0
    %2565 = vmatpush1.msra.mxu0 0.0
    %2566 = vmatprep.subr.mxu0 0.0
    %2567 = vmatpush1.msra.mxu0 0.0
    %2568 = vmatprep.subr.mxu0 0.0
    %2569 = vmatpush1.msra.mxu0 0.0
    %2570 = vmatprep.subr.mxu0 0.0
    %2571 = vmatpush1.msra.mxu0 0.0
    %2572 = vmatprep.subr.mxu0 0.0
    %2573 = vmatpush1.msra.mxu0 0.0
    %2574 = vmatprep.subr.mxu0 0.0
    %2575 = vmatpush1.msra.mxu0 0.0
    %2576 = vmatprep.subr.mxu0 0.0
    %2577 = vmatpush1.msra.mxu0 0.0
    %2578 = vmatprep.subr.mxu0 0.0
    %2579 = vmatpush1.msra.mxu0 0.0
    %2580 = vmatprep.subr.mxu0 0.0
    %2581 = vmatpush1.msra.mxu0 0.0
    %2582 = vmatprep.subr.mxu0 0.0
    %2583 = vmatpush1.msra.mxu0 0.0
    %2584 = vmatprep.subr.mxu0 0.0
    %2585 = vmatpush1.msra.mxu0 0.0
    %2586 = vmatprep.subr.mxu0 0.0
    %2587 = vmatpush1.msra.mxu0 0.0
    %2588 = vmatprep.subr.mxu0 0.0
    %2589 = vmatpush1.msra.mxu0 0.0
    %2590 = vmatprep.subr.mxu0 0.0
    %2591 = vmatpush1.msra.mxu0 0.0
    %2592 = vmatprep.subr.mxu0 0.0
    %2593 = vmatpush1.msra.mxu0 0.0
    %2594 = vmatprep.mubr.f32.mxu0 0.0
    %2595 = vmatmul.mubr.f32.gmra.mrb[0].mxu0 %v2525
    %v2596 = vpop.f32.mrb[0].mxu0
    %v2597 = vadd.f32 %v2522, %v2596
    %v2598 = vpop.f32.mrb[0].mxu0
    %2599 = vmatprep.mubr.f32.mxu0 0.0
    %2600 = vmatmul.mubr.f32.gmra.mrb[0].mxu0 %v2528
    %v2601 = vpop.f32.mrb[0].mxu0
    %v2602 = vadd.f32 %v2522, %v2601
    %v2603 = vpop.f32.mrb[0].mxu0
    %2604 = vdwg.mxu0
    %v2606 = vlaneseq
    %v2607 = vshrl.u32 %v2606, 7
    %v2608 = vsub.s32 0, %v2607
    %v2609 = vrot.slane %v378, %v2608
    %2611 = vmatprep.subr.mxu0 0.0
    %2612 = vmatpush1.msra.mxu0 %v372
    %2613 = vmatprep.subr.mxu0 0.0
    %2614 = vmatpush1.msra.mxu0 %v373
    %2615 = vmatprep.subr.mxu0 0.0
    %2616 = vmatpush1.msra.mxu0 %v374
    %2617 = vmatprep.subr.mxu0 0.0
    %2618 = vmatpush1.msra.mxu0 %v375
    %2619 = vmatprep.subr.mxu0 0.0
    %2620 = vmatpush1.msra.mxu0 0.0
    %2621 = vmatprep.subr.mxu0 0.0
    %2622 = vmatpush1.msra.mxu0 0.0
    %2623 = vmatprep.subr.mxu0 0.0
    %2624 = vmatpush1.msra.mxu0 0.0
    %2625 = vmatprep.subr.mxu0 0.0
    %2626 = vmatpush1.msra.mxu0 0.0
    %2627 = vmatprep.subr.mxu0 0.0
    %2628 = vmatpush1.msra.mxu0 0.0
    %2629 = vmatprep.subr.mxu0 0.0
    %2630 = vmatpush1.msra.mxu0 0.0
    %2631 = vmatprep.subr.mxu0 0.0
    %2632 = vmatpush1.msra.mxu0 0.0
    %2633 = vmatprep.subr.mxu0 0.0
    %2634 = vmatpush1.msra.mxu0 0.0
    %2635 = vmatprep.subr.mxu0 0.0
    %2636 = vmatpush1.msra.mxu0 0.0
    %2637 = vmatprep.subr.mxu0 0.0
    %2638 = vmatpush1.msra.mxu0 0.0
    %2639 = vmatprep.subr.mxu0 0.0
    %2640 = vmatpush1.msra.mxu0 0.0
    %2641 = vmatprep.subr.mxu0 0.0
    %2642 = vmatpush1.msra.mxu0 0.0
    %2643 = vmatprep.subr.mxu0 0.0
    %2644 = vmatpush1.msra.mxu0 0.0
    %2645 = vmatprep.subr.mxu0 0.0
    %2646 = vmatpush1.msra.mxu0 0.0
    %2647 = vmatprep.subr.mxu0 0.0
    %2648 = vmatpush1.msra.mxu0 0.0
    %2649 = vmatprep.subr.mxu0 0.0
    %2650 = vmatpush1.msra.mxu0 0.0
    %2651 = vmatprep.subr.mxu0 0.0
    %2652 = vmatpush1.msra.mxu0 0.0
    %2653 = vmatprep.subr.mxu0 0.0
    %2654 = vmatpush1.msra.mxu0 0.0
    %2655 = vmatprep.subr.mxu0 0.0
    %2656 = vmatpush1.msra.mxu0 0.0
    %2657 = vmatprep.subr.mxu0 0.0
    %2658 = vmatpush1.msra.mxu0 0.0
    %2659 = vmatprep.subr.mxu0 0.0
    %2660 = vmatpush1.msra.mxu0 0.0
    %2661 = vmatprep.subr.mxu0 0.0
    %2662 = vmatpush1.msra.mxu0 0.0
    %2663 = vmatprep.subr.mxu0 0.0
    %2664 = vmatpush1.msra.mxu0 0.0
    %2665 = vmatprep.subr.mxu0 0.0
    %2666 = vmatpush1.msra.mxu0 0.0
    %2667 = vmatprep.subr.mxu0 0.0
    %2668 = vmatpush1.msra.mxu0 0.0
    %2669 = vmatprep.subr.mxu0 0.0
    %2670 = vmatpush1.msra.mxu0 0.0
    %2671 = vmatprep.subr.mxu0 0.0
    %2672 = vmatpush1.msra.mxu0 0.0
    %2673 = vmatprep.subr.mxu0 0.0
    %2674 = vmatpush1.msra.mxu0 0.0
    %2675 = vmatprep.mubr.f32.mxu0 0.0
    %2676 = vmatmul.mubr.f32.gmra.mrb[0].mxu0 %v2525
    %v2677 = vpop.f32.mrb[0].mxu0
    %v2678 = vadd.f32 %v2609, %v2677
    %v2679 = vpop.f32.mrb[0].mxu0
    %2680 = vmatprep.mubr.f32.mxu0 0.0
    %2681 = vmatmul.mubr.f32.gmra.mrb[0].mxu0 %v2528
    %v2682 = vpop.f32.mrb[0].mxu0
    %v2683 = vadd.f32 %v2609, %v2682
    %v2684 = vpop.f32.mrb[0].mxu0
    %2685 = vdwg.mxu0
    %v2687 = vsel %vm726, %v2510, 0
    %v2690 = vsel %vm726, %v2515, 0
    %v2693 = vsel %vm726, %v2597, 0
    %v2696 = vsel %vm726, %v2602, 0
    %2698 = vmatprep.subr.mxu0 0.0
    %2699 = vmatpush1.xpose.msra.mxu0 %v2693
    %2700 = vmatprep.subr.mxu0 0.0
    %2701 = vmatpush1.xpose.msra.mxu0 %v2696
    %2702 = vmatprep.subr.mxu0 0.0
    %2703 = vmatpush1.xpose.msra.mxu0 0.0
    %2704 = vmatprep.subr.mxu0 0.0
    %2705 = vmatpush1.xpose.msra.mxu0 0.0
    %2706 = vmatprep.subr.mxu0 0.0
    %2707 = vmatpush1.xpose.msra.mxu0 0.0
    %2708 = vmatprep.subr.mxu0 0.0
    %2709 = vmatpush1.xpose.msra.mxu0 0.0
    %2710 = vmatprep.subr.mxu0 0.0
    %2711 = vmatpush1.xpose.msra.mxu0 0.0
    %2712 = vmatprep.subr.mxu0 0.0
    %2713 = vmatpush1.xpose.msra.mxu0 0.0
    %2714 = vmatprep.subr.mxu0 0.0
    %2715 = vmatpush1.xpose.msra.mxu0 0.0
    %2716 = vmatprep.subr.mxu0 0.0
    %2717 = vmatpush1.xpose.msra.mxu0 0.0
    %2718 = vmatprep.subr.mxu0 0.0
    %2719 = vmatpush1.xpose.msra.mxu0 0.0
    %2720 = vmatprep.subr.mxu0 0.0
    %2721 = vmatpush1.xpose.msra.mxu0 0.0
    %2722 = vmatprep.subr.mxu0 0.0
    %2723 = vmatpush1.xpose.msra.mxu0 0.0
    %2724 = vmatprep.subr.mxu0 0.0
    %2725 = vmatpush1.xpose.msra.mxu0 0.0
    %2726 = vmatprep.subr.mxu0 0.0
    %2727 = vmatpush1.xpose.msra.mxu0 0.0
    %2728 = vmatprep.subr.mxu0 0.0
    %2729 = vmatpush1.xpose.msra.mxu0 0.0
    %2730 = vmatprep.subr.mxu0 0.0
    %2731 = vmatpush1.xpose.msra.mxu0 0.0
    %2732 = vmatprep.subr.mxu0 0.0
    %2733 = vmatpush1.xpose.msra.mxu0 0.0
    %2734 = vmatprep.subr.mxu0 0.0
    %2735 = vmatpush1.xpose.msra.mxu0 0.0
    %2736 = vmatprep.subr.mxu0 0.0
    %2737 = vmatpush1.xpose.msra.mxu0 0.0
    %2738 = vmatprep.subr.mxu0 0.0
    %2739 = vmatpush1.xpose.msra.mxu0 0.0
    %2740 = vmatprep.subr.mxu0 0.0
    %2741 = vmatpush1.xpose.msra.mxu0 0.0
    %2742 = vmatprep.subr.mxu0 0.0
    %2743 = vmatpush1.xpose.msra.mxu0 0.0
    %2744 = vmatprep.subr.mxu0 0.0
    %2745 = vmatpush1.xpose.msra.mxu0 0.0
    %2746 = vmatprep.subr.mxu0 0.0
    %2747 = vmatpush1.xpose.msra.mxu0 0.0
    %2748 = vmatprep.subr.mxu0 0.0
    %2749 = vmatpush1.xpose.msra.mxu0 0.0
    %2750 = vmatprep.subr.mxu0 0.0
    %2751 = vmatpush1.xpose.msra.mxu0 0.0
    %2752 = vmatprep.subr.mxu0 0.0
    %2753 = vmatpush1.xpose.msra.mxu0 0.0
    %2754 = vmatprep.subr.mxu0 0.0
    %2755 = vmatpush1.xpose.msra.mxu0 0.0
    %2756 = vmatprep.subr.mxu0 0.0
    %2757 = vmatpush1.xpose.msra.mxu0 0.0
    %2758 = vmatprep.subr.mxu0 0.0
    %2759 = vmatpush1.xpose.msra.mxu0 0.0
    %2760 = vmatprep.subr.mxu0 0.0
    %2761 = vmatpush1.xpose.msra.mxu0 0.0
    %2762 = vmatprep.mubr.f32.mxu0 0.0
    %2763 = vmatmul.mubr.f32.gmra.mrb[0].mxu0 %v2687
    %v2764 = vpop.f32.mrb[0].mxu0
    %v2765 = vadd.f32 0.0, %v2764
    %v2766 = vpop.f32.mrb[0].mxu0
    %2767 = vmatprep.mubr.f32.mxu0 0.0
    %2768 = vmatmul.mubr.f32.gmra.mrb[0].mxu0 %v2690
    %v2769 = vpop.f32.mrb[0].mxu0
    %v2770 = vadd.f32 0.0, %v2769
    %v2771 = vpop.f32.mrb[0].mxu0
    %2772 = vdwg.mxu0
    %v2773 = vmul.f32 %v2765, 0.35355338
    %v2774 = vmul.f32 %v2770, 0.35355338
    %v2775 = vsel %vm394, %v2773, -inf
    %2776 = vmax.xlane.f32.xlu0 %v2775
    %v2777 = vpop.xlane.xlu0 %2776
    %v2778 = vsel %vm394, %v2774, -inf
    %2779 = vmax.xlane.f32.xlu0 %v2778
    %v2780 = vpop.xlane.xlu0 %2779
    %v2781 = vsub.f32 %v2773, %v2777
    %v2782 = vsub.f32 %v2774, %v2780
    %v2783 = vmul.f32 %v2781, 1.442695
    %v2784 = vpow.pop %v2783
    %v2785 = vmul.f32 %v2782, 1.442695
    %v2786 = vpow.pop %v2785
    %v2787 = vsel %vm394, %v2784, 0.0
    %2788 = vadd.xlane.f32.xlu0 %v2787
    %v2789 = vpop.xlane.xlu0 %2788
    %v2790 = vsel %vm394, %v2786, 0.0
    %2791 = vadd.xlane.f32.xlu0 %v2790
    %v2792 = vpop.xlane.xlu0 %2791
    %v2793 = vrcp.pop %v2789
    %v2794 = vrcp.pop %v2792
    %v2795 = vmul.f32 %v2784, %v2793
    %v2796 = vmul.f32 %v2786, %v2794
    %v2798 = vsel %vm394, %v2795, 0
    %v2801 = vsel %vm394, %v2796, 0
    %2803 = vmatprep.subr.mxu0 0.0
    %2804 = vmatpush1.msra.mxu0 %v2678
    %2805 = vmatprep.subr.mxu0 0.0
    %2806 = vmatpush1.msra.mxu0 %v2683
    %2807 = vmatprep.subr.mxu0 0.0
    %2808 = vmatpush1.msra.mxu0 0.0
    %2809 = vmatprep.subr.mxu0 0.0
    %2810 = vmatpush1.msra.mxu0 0.0
    %2811 = vmatprep.subr.mxu0 0.0
    %2812 = vmatpush1.msra.mxu0 0.0
    %2813 = vmatprep.subr.mxu0 0.0
    %2814 = vmatpush1.msra.mxu0 0.0
    %2815 = vmatprep.subr.mxu0 0.0
    %2816 = vmatpush1.msra.mxu0 0.0
    %2817 = vmatprep.subr.mxu0 0.0
    %2818 = vmatpush1.msra.mxu0 0.0
    %2819 = vmatprep.subr.mxu0 0.0
    %2820 = vmatpush1.msra.mxu0 0.0
    %2821 = vmatprep.subr.mxu0 0.0
    %2822 = vmatpush1.msra.mxu0 0.0
    %2823 = vmatprep.subr.mxu0 0.0
    %2824 = vmatpush1.msra.mxu0 0.0
    %2825 = vmatprep.subr.mxu0 0.0
    %2826 = vmatpush1.msra.mxu0 0.0
    %2827 = vmatprep.subr.mxu0 0.0
    %2828 = vmatpush1.msra.mxu0 0.0
    %2829 = vmatprep.subr.mxu0 0.0
    %2830 = vmatpush1.msra.mxu0 0.0
    %2831 = vmatprep.subr.mxu0 0.0
    %2832 = vmatpush1.msra.mxu0 0.0
    %2833 = vmatprep.subr.mxu0 0.0
    %2834 = vmatpush1.msra.mxu0 0.0
    %2835 = vmatprep.subr.mxu0 0.0
    %2836 = vmatpush1.msra.mxu0 0.0
    %2837 = vmatprep.subr.mxu0 0.0
    %2838 = vmatpush1.msra.mxu0 0.0
    %2839 = vmatprep.subr.mxu0 0.0
    %2840 = vmatpush1.msra.mxu0 0.0
    %2841 = vmatprep.subr.mxu0 0.0
    %2842 = vmatpush1.msra.mxu0 0.0
    %2843 = vmatprep.subr.mxu0 0.0
    %2844 = vmatpush1.msra.mxu0 0.0
    %2845 = vmatprep.subr.mxu0 0.0
    %2846 = vmatpush1.msra.mxu0 0.0
    %2847 = vmatprep.subr.mxu0 0.0
    %2848 = vmatpush1.msra.mxu0 0.0
    %2849 = vmatprep.subr.mxu0 0.0
    %2850 = vmatpush1.msra.mxu0 0.0
    %2851 = vmatprep.subr.mxu0 0.0
    %2852 = vmatpush1.msra.mxu0 0.0
    %2853 = vmatprep.subr.mxu0 0.0
    %2854 = vmatpush1.msra.mxu0 0.0
    %2855 = vmatprep.subr.mxu0 0.0
    %2856 = vmatpush1.msra.mxu0 0.0
    %2857 = vmatprep.subr.mxu0 0.0
    %2858 = vmatpush1.msra.mxu0 0.0
    %2859 = vmatprep.subr.mxu0 0.0
    %2860 = vmatpush1.msra.mxu0 0.0
    %2861 = vmatprep.subr.mxu0 0.0
    %2862 = vmatpush1.msra.mxu0 0.0
    %2863 = vmatprep.subr.mxu0 0.0
    %2864 = vmatpush1.msra.mxu0 0.0
    %2865 = vmatprep.subr.mxu0 0.0
    %2866 = vmatpush1.msra.mxu0 0.0
    %2867 = vmatprep.mubr.f32.mxu0 0.0
    %2868 = vmatmul.mubr.f32.gmra.mrb[0].mxu0 %v2798
    %v2869 = vpop.f32.mrb[0].mxu0
    %v2870 = vadd.f32 0.0, %v2869
    %v2871 = vpop.f32.mrb[0].mxu0
    %2872 = vmatprep.mubr.f32.mxu0 0.0
    %2873 = vmatmul.mubr.f32.gmra.mrb[0].mxu0 %v2801
    %v2874 = vpop.f32.mrb[0].mxu0
    %v2875 = vadd.f32 0.0, %v2874
    %v2876 = vpop.f32.mrb[0].mxu0
    %2877 = vdwg.mxu0
    %2878 = vrot.lane.b32.xlu0 %v2510, 120
    %v2879 = vpop.permute.xlu0 %2878
    %2880 = vrot.lane.b32.xlu0 %v2515, 120
    %v2881 = vpop.permute.xlu0 %2880
    %2882 = vrot.lane.b32.xlu0 %v2597, 120
    %v2883 = vpop.permute.xlu0 %2882
    %2884 = vrot.lane.b32.xlu0 %v2602, 120
    %v2885 = vpop.permute.xlu0 %2884
    %v2886 = vsel %vm726, %v2879, 0
    %v2888 = vsel %vm726, %v2881, 0
    %v2890 = vsel %vm726, %v2883, 0
    %v2892 = vsel %vm726, %v2885, 0
    %2894 = vmatprep.subr.mxu0 0.0
    %2895 = vmatpush1.xpose.msra.mxu0 %v2890
    %2896 = vmatprep.subr.mxu0 0.0
    %2897 = vmatpush1.xpose.msra.mxu0 %v2892
    %2898 = vmatprep.subr.mxu0 0.0
    %2899 = vmatpush1.xpose.msra.mxu0 0.0
    %2900 = vmatprep.subr.mxu0 0.0
    %2901 = vmatpush1.xpose.msra.mxu0 0.0
    %2902 = vmatprep.subr.mxu0 0.0
    %2903 = vmatpush1.xpose.msra.mxu0 0.0
    %2904 = vmatprep.subr.mxu0 0.0
    %2905 = vmatpush1.xpose.msra.mxu0 0.0
    %2906 = vmatprep.subr.mxu0 0.0
    %2907 = vmatpush1.xpose.msra.mxu0 0.0
    %2908 = vmatprep.subr.mxu0 0.0
    %2909 = vmatpush1.xpose.msra.mxu0 0.0
    %2910 = vmatprep.subr.mxu0 0.0
    %2911 = vmatpush1.xpose.msra.mxu0 0.0
    %2912 = vmatprep.subr.mxu0 0.0
    %2913 = vmatpush1.xpose.msra.mxu0 0.0
    %2914 = vmatprep.subr.mxu0 0.0
    %2915 = vmatpush1.xpose.msra.mxu0 0.0
    %2916 = vmatprep.subr.mxu0 0.0
    %2917 = vmatpush1.xpose.msra.mxu0 0.0
    %2918 = vmatprep.subr.mxu0 0.0
    %2919 = vmatpush1.xpose.msra.mxu0 0.0
    %2920 = vmatprep.subr.mxu0 0.0
    %2921 = vmatpush1.xpose.msra.mxu0 0.0
    %2922 = vmatprep.subr.mxu0 0.0
    %2923 = vmatpush1.xpose.msra.mxu0 0.0
    %2924 = vmatprep.subr.mxu0 0.0
    %2925 = vmatpush1.xpose.msra.mxu0 0.0
    %2926 = vmatprep.subr.mxu0 0.0
    %2927 = vmatpush1.xpose.msra.mxu0 0.0
    %2928 = vmatprep.subr.mxu0 0.0
    %2929 = vmatpush1.xpose.msra.mxu0 0.0
    %2930 = vmatprep.subr.mxu0 0.0
    %2931 = vmatpush1.xpose.msra.mxu0 0.0
    %2932 = vmatprep.subr.mxu0 0.0
    %2933 = vmatpush1.xpose.msra.mxu0 0.0
    %2934 = vmatprep.subr.mxu0 0.0
    %2935 = vmatpush1.xpose.msra.mxu0 0.0
    %2936 = vmatprep.subr.mxu0 0.0
    %2937 = vmatpush1.xpose.msra.mxu0 0.0
    %2938 = vmatprep.subr.mxu0 0.0
    %2939 = vmatpush1.xpose.msra.mxu0 0.0
    %2940 = vmatprep.subr.mxu0 0.0
    %2941 = vmatpush1.xpose.msra.mxu0 0.0
    %2942 = vmatprep.subr.mxu0 0.0
    %2943 = vmatpush1.xpose.msra.mxu0 0.0
    %2944 = vmatprep.subr.mxu0 0.0
    %2945 = vmatpush1.xpose.msra.mxu0 0.0
    %2946 = vmatprep.subr.mxu0 0.0
    %2947 = vmatpush1.xpose.msra.mxu0 0.0
    %2948 = vmatprep.subr.mxu0 0.0
    %2949 = vmatpush1.xpose.msra.mxu0 0.0
    %2950 = vmatprep.subr.mxu0 0.0
    %2951 = vmatpush1.xpose.msra.mxu0 0.0
    %2952 = vmatprep.subr.mxu0 0.0
    %2953 = vmatpush1.xpose.msra.mxu0 0.0
    %2954 = vmatprep.subr.mxu0 0.0
    %2955 = vmatpush1.xpose.msra.mxu0 0.0
    %2956 = vmatprep.subr.mxu0 0.0
    %2957 = vmatpush1.xpose.msra.mxu0 0.0
    %2958 = vmatprep.mubr.f32.mxu0 0.0
    %2959 = vmatmul.mubr.f32.gmra.mrb[0].mxu0 %v2886
    %v2960 = vpop.f32.mrb[0].mxu0
    %v2961 = vadd.f32 0.0, %v2960
    %v2962 = vpop.f32.mrb[0].mxu0
    %2963 = vmatprep.mubr.f32.mxu0 0.0
    %2964 = vmatmul.mubr.f32.gmra.mrb[0].mxu0 %v2888
    %v2965 = vpop.f32.mrb[0].mxu0
    %v2966 = vadd.f32 0.0, %v2965
    %v2967 = vpop.f32.mrb[0].mxu0
    %2968 = vdwg.mxu0
    %v2969 = vmul.f32 %v2961, 0.35355338
    %v2970 = vmul.f32 %v2966, 0.35355338
    %v2971 = vsel %vm394, %v2969, -inf
    %2972 = vmax.xlane.f32.xlu0 %v2971
    %v2973 = vpop.xlane.xlu0 %2972
    %v2974 = vsel %vm394, %v2970, -inf
    %2975 = vmax.xlane.f32.xlu0 %v2974
    %v2976 = vpop.xlane.xlu0 %2975
    %v2977 = vsub.f32 %v2969, %v2973
    %v2978 = vsub.f32 %v2970, %v2976
    %v2979 = vmul.f32 %v2977, 1.442695
    %v2980 = vpow.pop %v2979
    %v2981 = vmul.f32 %v2978, 1.442695
    %v2982 = vpow.pop %v2981
    %v2983 = vsel %vm394, %v2980, 0.0
    %2984 = vadd.xlane.f32.xlu0 %v2983
    %v2985 = vpop.xlane.xlu0 %2984
    %v2986 = vsel %vm394, %v2982, 0.0
    %2987 = vadd.xlane.f32.xlu0 %v2986
    %v2988 = vpop.xlane.xlu0 %2987
    %v2989 = vrcp.pop %v2985
    %v2990 = vrcp.pop %v2988
    %v2991 = vmul.f32 %v2980, %v2989
    %v2992 = vmul.f32 %v2982, %v2990
    %2995 = vrot.lane.b32.xlu0 %v2678, 120
    %v2996 = vpop.permute.xlu0 %2995
    %2997 = vrot.lane.b32.xlu0 %v2683, 120
    %v2998 = vpop.permute.xlu0 %2997
    %v3002 = vsel %vm394, %v2991, 0
    %v3005 = vsel %vm394, %v2992, 0
    %3007 = vmatprep.subr.mxu0 0.0
    %3008 = vmatpush1.msra.mxu0 %v2996
    %3009 = vmatprep.subr.mxu0 0.0
    %3010 = vmatpush1.msra.mxu0 %v2998
    %3011 = vmatprep.subr.mxu0 0.0
    %3012 = vmatpush1.msra.mxu0 0.0
    %3013 = vmatprep.subr.mxu0 0.0
    %3014 = vmatpush1.msra.mxu0 0.0
    %3015 = vmatprep.subr.mxu0 0.0
    %3016 = vmatpush1.msra.mxu0 0.0
    %3017 = vmatprep.subr.mxu0 0.0
    %3018 = vmatpush1.msra.mxu0 0.0
    %3019 = vmatprep.subr.mxu0 0.0
    %3020 = vmatpush1.msra.mxu0 0.0
    %3021 = vmatprep.subr.mxu0 0.0
    %3022 = vmatpush1.msra.mxu0 0.0
    %3023 = vmatprep.subr.mxu0 0.0
    %3024 = vmatpush1.msra.mxu0 0.0
    %3025 = vmatprep.subr.mxu0 0.0
    %3026 = vmatpush1.msra.mxu0 0.0
    %3027 = vmatprep.subr.mxu0 0.0
    %3028 = vmatpush1.msra.mxu0 0.0
    %3029 = vmatprep.subr.mxu0 0.0
    %3030 = vmatpush1.msra.mxu0 0.0
    %3031 = vmatprep.subr.mxu0 0.0
    %3032 = vmatpush1.msra.mxu0 0.0
    %3033 = vmatprep.subr.mxu0 0.0
    %3034 = vmatpush1.msra.mxu0 0.0
    %3035 = vmatprep.subr.mxu0 0.0
    %3036 = vmatpush1.msra.mxu0 0.0
    %3037 = vmatprep.subr.mxu0 0.0
    %3038 = vmatpush1.msra.mxu0 0.0
    %3039 = vmatprep.subr.mxu0 0.0
    %3040 = vmatpush1.msra.mxu0 0.0
    %3041 = vmatprep.subr.mxu0 0.0
    %3042 = vmatpush1.msra.mxu0 0.0
    %3043 = vmatprep.subr.mxu0 0.0
    %3044 = vmatpush1.msra.mxu0 0.0
    %3045 = vmatprep.subr.mxu0 0.0
    %3046 = vmatpush1.msra.mxu0 0.0
    %3047 = vmatprep.subr.mxu0 0.0
    %3048 = vmatpush1.msra.mxu0 0.0
    %3049 = vmatprep.subr.mxu0 0.0
    %3050 = vmatpush1.msra.mxu0 0.0
    %3051 = vmatprep.subr.mxu0 0.0
    %3052 = vmatpush1.msra.mxu0 0.0
    %3053 = vmatprep.subr.mxu0 0.0
    %3054 = vmatpush1.msra.mxu0 0.0
    %3055 = vmatprep.subr.mxu0 0.0
    %3056 = vmatpush1.msra.mxu0 0.0
    %3057 = vmatprep.subr.mxu0 0.0
    %3058 = vmatpush1.msra.mxu0 0.0
    %3059 = vmatprep.subr.mxu0 0.0
    %3060 = vmatpush1.msra.mxu0 0.0
    %3061 = vmatprep.subr.mxu0 0.0
    %3062 = vmatpush1.msra.mxu0 0.0
    %3063 = vmatprep.subr.mxu0 0.0
    %3064 = vmatpush1.msra.mxu0 0.0
    %3065 = vmatprep.subr.mxu0 0.0
    %3066 = vmatpush1.msra.mxu0 0.0
    %3067 = vmatprep.subr.mxu0 0.0
    %3068 = vmatpush1.msra.mxu0 0.0
    %3069 = vmatprep.subr.mxu0 0.0
    %3070 = vmatpush1.msra.mxu0 0.0
    %3071 = vmatprep.mubr.f32.mxu0 0.0
    %3072 = vmatmul.mubr.f32.gmra.mrb[0].mxu0 %v3002
    %v3073 = vpop.f32.mrb[0].mxu0
    %v3074 = vadd.f32 0.0, %v3073
    %v3075 = vpop.f32.mrb[0].mxu0
    %3076 = vmatprep.mubr.f32.mxu0 0.0
    %3077 = vmatmul.mubr.f32.gmra.mrb[0].mxu0 %v3005
    %v3078 = vpop.f32.mrb[0].mxu0
    %v3079 = vadd.f32 0.0, %v3078
    %v3080 = vpop.f32.mrb[0].mxu0
    %3081 = vdwg.mxu0
    %3082 = vrot.lane.b32.xlu0 %v2510, 112
    %v3083 = vpop.permute.xlu0 %3082
    %3084 = vrot.lane.b32.xlu0 %v2515, 112
    %v3085 = vpop.permute.xlu0 %3084
    %3086 = vrot.lane.b32.xlu0 %v2597, 112
    %v3087 = vpop.permute.xlu0 %3086
    %3088 = vrot.lane.b32.xlu0 %v2602, 112
    %v3089 = vpop.permute.xlu0 %3088
    %v3090 = vsel %vm726, %v3083, 0
    %v3092 = vsel %vm726, %v3085, 0
    %v3094 = vsel %vm726, %v3087, 0
    %v3096 = vsel %vm726, %v3089, 0
    %3098 = vmatprep.subr.mxu0 0.0
    %3099 = vmatpush1.xpose.msra.mxu0 %v3094
    %3100 = vmatprep.subr.mxu0 0.0
    %3101 = vmatpush1.xpose.msra.mxu0 %v3096
    %3102 = vmatprep.subr.mxu0 0.0
    %3103 = vmatpush1.xpose.msra.mxu0 0.0
    %3104 = vmatprep.subr.mxu0 0.0
    %3105 = vmatpush1.xpose.msra.mxu0 0.0
    %3106 = vmatprep.subr.mxu0 0.0
    %3107 = vmatpush1.xpose.msra.mxu0 0.0
    %3108 = vmatprep.subr.mxu0 0.0
    %3109 = vmatpush1.xpose.msra.mxu0 0.0
    %3110 = vmatprep.subr.mxu0 0.0
    %3111 = vmatpush1.xpose.msra.mxu0 0.0
    %3112 = vmatprep.subr.mxu0 0.0
    %3113 = vmatpush1.xpose.msra.mxu0 0.0
    %3114 = vmatprep.subr.mxu0 0.0
    %3115 = vmatpush1.xpose.msra.mxu0 0.0
    %3116 = vmatprep.subr.mxu0 0.0
    %3117 = vmatpush1.xpose.msra.mxu0 0.0
    %3118 = vmatprep.subr.mxu0 0.0
    %3119 = vmatpush1.xpose.msra.mxu0 0.0
    %3120 = vmatprep.subr.mxu0 0.0
    %3121 = vmatpush1.xpose.msra.mxu0 0.0
    %3122 = vmatprep.subr.mxu0 0.0
    %3123 = vmatpush1.xpose.msra.mxu0 0.0
    %3124 = vmatprep.subr.mxu0 0.0
    %3125 = vmatpush1.xpose.msra.mxu0 0.0
    %3126 = vmatprep.subr.mxu0 0.0
    %3127 = vmatpush1.xpose.msra.mxu0 0.0
    %3128 = vmatprep.subr.mxu0 0.0
    %3129 = vmatpush1.xpose.msra.mxu0 0.0
    %3130 = vmatprep.subr.mxu0 0.0
    %3131 = vmatpush1.xpose.msra.mxu0 0.0
    %3132 = vmatprep.subr.mxu0 0.0
    %3133 = vmatpush1.xpose.msra.mxu0 0.0
    %3134 = vmatprep.subr.mxu0 0.0
    %3135 = vmatpush1.xpose.msra.mxu0 0.0
    %3136 = vmatprep.subr.mxu0 0.0
    %3137 = vmatpush1.xpose.msra.mxu0 0.0
    %3138 = vmatprep.subr.mxu0 0.0
    %3139 = vmatpush1.xpose.msra.mxu0 0.0
    %3140 = vmatprep.subr.mxu0 0.0
    %3141 = vmatpush1.xpose.msra.mxu0 0.0
    %3142 = vmatprep.subr.mxu0 0.0
    %3143 = vmatpush1.xpose.msra.mxu0 0.0
    %3144 = vmatprep.subr.mxu0 0.0
    %3145 = vmatpush1.xpose.msra.mxu0 0.0
    %3146 = vmatprep.subr.mxu0 0.0
    %3147 = vmatpush1.xpose.msra.mxu0 0.0
    %3148 = vmatprep.subr.mxu0 0.0
    %3149 = vmatpush1.xpose.msra.mxu0 0.0
    %3150 = vmatprep.subr.mxu0 0.0
    %3151 = vmatpush1.xpose.msra.mxu0 0.0
    %3152 = vmatprep.subr.mxu0 0.0
    %3153 = vmatpush1.xpose.msra.mxu0 0.0
    %3154 = vmatprep.subr.mxu0 0.0
    %3155 = vmatpush1.xpose.msra.mxu0 0.0
    %3156 = vmatprep.subr.mxu0 0.0
    %3157 = vmatpush1.xpose.msra.mxu0 0.0
    %3158 = vmatprep.subr.mxu0 0.0
    %3159 = vmatpush1.xpose.msra.mxu0 0.0
    %3160 = vmatprep.subr.mxu0 0.0
    %3161 = vmatpush1.xpose.msra.mxu0 0.0
    %3162 = vmatprep.mubr.f32.mxu0 0.0
    %3163 = vmatmul.mubr.f32.gmra.mrb[0].mxu0 %v3090
    %v3164 = vpop.f32.mrb[0].mxu0
    %v3165 = vadd.f32 0.0, %v3164
    %v3166 = vpop.f32.mrb[0].mxu0
    %3167 = vmatprep.mubr.f32.mxu0 0.0
    %3168 = vmatmul.mubr.f32.gmra.mrb[0].mxu0 %v3092
    %v3169 = vpop.f32.mrb[0].mxu0
    %v3170 = vadd.f32 0.0, %v3169
    %v3171 = vpop.f32.mrb[0].mxu0
    %3172 = vdwg.mxu0
    %v3173 = vmul.f32 %v3165, 0.35355338
    %v3174 = vmul.f32 %v3170, 0.35355338
    %v3175 = vsel %vm394, %v3173, -inf
    %3176 = vmax.xlane.f32.xlu0 %v3175
    %v3177 = vpop.xlane.xlu0 %3176
    %v3178 = vsel %vm394, %v3174, -inf
    %3179 = vmax.xlane.f32.xlu0 %v3178
    %v3180 = vpop.xlane.xlu0 %3179
    %v3181 = vsub.f32 %v3173, %v3177
    %v3182 = vsub.f32 %v3174, %v3180
    %v3183 = vmul.f32 %v3181, 1.442695
    %v3184 = vpow.pop %v3183
    %v3185 = vmul.f32 %v3182, 1.442695
    %v3186 = vpow.pop %v3185
    %v3187 = vsel %vm394, %v3184, 0.0
    %3188 = vadd.xlane.f32.xlu0 %v3187
    %v3189 = vpop.xlane.xlu0 %3188
    %v3190 = vsel %vm394, %v3186, 0.0
    %3191 = vadd.xlane.f32.xlu0 %v3190
    %v3192 = vpop.xlane.xlu0 %3191
    %v3193 = vrcp.pop %v3189
    %v3194 = vrcp.pop %v3192
    %v3195 = vmul.f32 %v3184, %v3193
    %v3196 = vmul.f32 %v3186, %v3194
    %3197 = vrot.lane.b32.xlu0 %v2678, 112
    %v3198 = vpop.permute.xlu0 %3197
    %3199 = vrot.lane.b32.xlu0 %v2683, 112
    %v3200 = vpop.permute.xlu0 %3199
    %v3204 = vsel %vm394, %v3195, 0
    %v3207 = vsel %vm394, %v3196, 0
    %3209 = vmatprep.subr.mxu0 0.0
    %3210 = vmatpush1.msra.mxu0 %v3198
    %3211 = vmatprep.subr.mxu0 0.0
    %3212 = vmatpush1.msra.mxu0 %v3200
    %3213 = vmatprep.subr.mxu0 0.0
    %3214 = vmatpush1.msra.mxu0 0.0
    %3215 = vmatprep.subr.mxu0 0.0
    %3216 = vmatpush1.msra.mxu0 0.0
    %3217 = vmatprep.subr.mxu0 0.0
    %3218 = vmatpush1.msra.mxu0 0.0
    %3219 = vmatprep.subr.mxu0 0.0
    %3220 = vmatpush1.msra.mxu0 0.0
    %3221 = vmatprep.subr.mxu0 0.0
    %3222 = vmatpush1.msra.mxu0 0.0
    %3223 = vmatprep.subr.mxu0 0.0
    %3224 = vmatpush1.msra.mxu0 0.0
    %3225 = vmatprep.subr.mxu0 0.0
    %3226 = vmatpush1.msra.mxu0 0.0
    %3227 = vmatprep.subr.mxu0 0.0
    %3228 = vmatpush1.msra.mxu0 0.0
    %3229 = vmatprep.subr.mxu0 0.0
    %3230 = vmatpush1.msra.mxu0 0.0
    %3231 = vmatprep.subr.mxu0 0.0
    %3232 = vmatpush1.msra.mxu0 0.0
    %3233 = vmatprep.subr.mxu0 0.0
    %3234 = vmatpush1.msra.mxu0 0.0
    %3235 = vmatprep.subr.mxu0 0.0
    %3236 = vmatpush1.msra.mxu0 0.0
    %3237 = vmatprep.subr.mxu0 0.0
    %3238 = vmatpush1.msra.mxu0 0.0
    %3239 = vmatprep.subr.mxu0 0.0
    %3240 = vmatpush1.msra.mxu0 0.0
    %3241 = vmatprep.subr.mxu0 0.0
    %3242 = vmatpush1.msra.mxu0 0.0
    %3243 = vmatprep.subr.mxu0 0.0
    %3244 = vmatpush1.msra.mxu0 0.0
    %3245 = vmatprep.subr.mxu0 0.0
    %3246 = vmatpush1.msra.mxu0 0.0
    %3247 = vmatprep.subr.mxu0 0.0
    %3248 = vmatpush1.msra.mxu0 0.0
    %3249 = vmatprep.subr.mxu0 0.0
    %3250 = vmatpush1.msra.mxu0 0.0
    %3251 = vmatprep.subr.mxu0 0.0
    %3252 = vmatpush1.msra.mxu0 0.0
    %3253 = vmatprep.subr.mxu0 0.0
    %3254 = vmatpush1.msra.mxu0 0.0
    %3255 = vmatprep.subr.mxu0 0.0
    %3256 = vmatpush1.msra.mxu0 0.0
    %3257 = vmatprep.subr.mxu0 0.0
    %3258 = vmatpush1.msra.mxu0 0.0
    %3259 = vmatprep.subr.mxu0 0.0
    %3260 = vmatpush1.msra.mxu0 0.0
    %3261 = vmatprep.subr.mxu0 0.0
    %3262 = vmatpush1.msra.mxu0 0.0
    %3263 = vmatprep.subr.mxu0 0.0
    %3264 = vmatpush1.msra.mxu0 0.0
    %3265 = vmatprep.subr.mxu0 0.0
    %3266 = vmatpush1.msra.mxu0 0.0
    %3267 = vmatprep.subr.mxu0 0.0
    %3268 = vmatpush1.msra.mxu0 0.0
    %3269 = vmatprep.subr.mxu0 0.0
    %3270 = vmatpush1.msra.mxu0 0.0
    %3271 = vmatprep.subr.mxu0 0.0
    %3272 = vmatpush1.msra.mxu0 0.0
    %3273 = vmatprep.mubr.f32.mxu0 0.0
    %3274 = vmatmul.mubr.f32.gmra.mrb[0].mxu0 %v3204
    %v3275 = vpop.f32.mrb[0].mxu0
    %v3276 = vadd.f32 0.0, %v3275
    %v3277 = vpop.f32.mrb[0].mxu0
    %3278 = vmatprep.mubr.f32.mxu0 0.0
    %3279 = vmatmul.mubr.f32.gmra.mrb[0].mxu0 %v3207
    %v3280 = vpop.f32.mrb[0].mxu0
    %v3281 = vadd.f32 0.0, %v3280
    %v3282 = vpop.f32.mrb[0].mxu0
    %3283 = vdwg.mxu0
    %3284 = vrot.lane.b32.xlu0 %v2510, 104
    %v3285 = vpop.permute.xlu0 %3284
    %3286 = vrot.lane.b32.xlu0 %v2515, 104
    %v3287 = vpop.permute.xlu0 %3286
    %3288 = vrot.lane.b32.xlu0 %v2597, 104
    %v3289 = vpop.permute.xlu0 %3288
    %3290 = vrot.lane.b32.xlu0 %v2602, 104
    %v3291 = vpop.permute.xlu0 %3290
    %v3292 = vsel %vm726, %v3285, 0
    %v3294 = vsel %vm726, %v3287, 0
    %v3296 = vsel %vm726, %v3289, 0
    %v3298 = vsel %vm726, %v3291, 0
    %3300 = vmatprep.subr.mxu0 0.0
    %3301 = vmatpush1.xpose.msra.mxu0 %v3296
    %3302 = vmatprep.subr.mxu0 0.0
    %3303 = vmatpush1.xpose.msra.mxu0 %v3298
    %3304 = vmatprep.subr.mxu0 0.0
    %3305 = vmatpush1.xpose.msra.mxu0 0.0
    %3306 = vmatprep.subr.mxu0 0.0
    %3307 = vmatpush1.xpose.msra.mxu0 0.0
    %3308 = vmatprep.subr.mxu0 0.0
    %3309 = vmatpush1.xpose.msra.mxu0 0.0
    %3310 = vmatprep.subr.mxu0 0.0
    %3311 = vmatpush1.xpose.msra.mxu0 0.0
    %3312 = vmatprep.subr.mxu0 0.0
    %3313 = vmatpush1.xpose.msra.mxu0 0.0
    %3314 = vmatprep.subr.mxu0 0.0
    %3315 = vmatpush1.xpose.msra.mxu0 0.0
    %3316 = vmatprep.subr.mxu0 0.0
    %3317 = vmatpush1.xpose.msra.mxu0 0.0
    %3318 = vmatprep.subr.mxu0 0.0
    %3319 = vmatpush1.xpose.msra.mxu0 0.0
    %3320 = vmatprep.subr.mxu0 0.0
    %3321 = vmatpush1.xpose.msra.mxu0 0.0
    %3322 = vmatprep.subr.mxu0 0.0
    %3323 = vmatpush1.xpose.msra.mxu0 0.0
    %3324 = vmatprep.subr.mxu0 0.0
    %3325 = vmatpush1.xpose.msra.mxu0 0.0
    %3326 = vmatprep.subr.mxu0 0.0
    %3327 = vmatpush1.xpose.msra.mxu0 0.0
    %3328 = vmatprep.subr.mxu0 0.0
    %3329 = vmatpush1.xpose.msra.mxu0 0.0
    %3330 = vmatprep.subr.mxu0 0.0
    %3331 = vmatpush1.xpose.msra.mxu0 0.0
    %3332 = vmatprep.subr.mxu0 0.0
    %3333 = vmatpush1.xpose.msra.mxu0 0.0
    %3334 = vmatprep.subr.mxu0 0.0
    %3335 = vmatpush1.xpose.msra.mxu0 0.0
    %3336 = vmatprep.subr.mxu0 0.0
    %3337 = vmatpush1.xpose.msra.mxu0 0.0
    %3338 = vmatprep.subr.mxu0 0.0
    %3339 = vmatpush1.xpose.msra.mxu0 0.0
    %3340 = vmatprep.subr.mxu0 0.0
    %3341 = vmatpush1.xpose.msra.mxu0 0.0
    %3342 = vmatprep.subr.mxu0 0.0
    %3343 = vmatpush1.xpose.msra.mxu0 0.0
    %3344 = vmatprep.subr.mxu0 0.0
    %3345 = vmatpush1.xpose.msra.mxu0 0.0
    %3346 = vmatprep.subr.mxu0 0.0
    %3347 = vmatpush1.xpose.msra.mxu0 0.0
    %3348 = vmatprep.subr.mxu0 0.0
    %3349 = vmatpush1.xpose.msra.mxu0 0.0
    %3350 = vmatprep.subr.mxu0 0.0
    %3351 = vmatpush1.xpose.msra.mxu0 0.0
    %3352 = vmatprep.subr.mxu0 0.0
    %3353 = vmatpush1.xpose.msra.mxu0 0.0
    %3354 = vmatprep.subr.mxu0 0.0
    %3355 = vmatpush1.xpose.msra.mxu0 0.0
    %3356 = vmatprep.subr.mxu0 0.0
    %3357 = vmatpush1.xpose.msra.mxu0 0.0
    %3358 = vmatprep.subr.mxu0 0.0
    %3359 = vmatpush1.xpose.msra.mxu0 0.0
    %3360 = vmatprep.subr.mxu0 0.0
    %3361 = vmatpush1.xpose.msra.mxu0 0.0
    %3362 = vmatprep.subr.mxu0 0.0
    %3363 = vmatpush1.xpose.msra.mxu0 0.0
    %3364 = vmatprep.mubr.f32.mxu0 0.0
    %3365 = vmatmul.mubr.f32.gmra.mrb[0].mxu0 %v3292
    %v3366 = vpop.f32.mrb[0].mxu0
    %v3367 = vadd.f32 0.0, %v3366
    %v3368 = vpop.f32.mrb[0].mxu0
    %3369 = vmatprep.mubr.f32.mxu0 0.0
    %3370 = vmatmul.mubr.f32.gmra.mrb[0].mxu0 %v3294
    %v3371 = vpop.f32.mrb[0].mxu0
    %v3372 = vadd.f32 0.0, %v3371
    %v3373 = vpop.f32.mrb[0].mxu0
    %3374 = vdwg.mxu0
    %v3375 = vmul.f32 %v3367, 0.35355338
    %v3376 = vmul.f32 %v3372, 0.35355338
    %v3377 = vsel %vm394, %v3375, -inf
    %3378 = vmax.xlane.f32.xlu0 %v3377
    %v3379 = vpop.xlane.xlu0 %3378
    %v3380 = vsel %vm394, %v3376, -inf
    %3381 = vmax.xlane.f32.xlu0 %v3380
    %v3382 = vpop.xlane.xlu0 %3381
    %v3383 = vsub.f32 %v3375, %v3379
    %v3384 = vsub.f32 %v3376, %v3382
    %v3385 = vmul.f32 %v3383, 1.442695
    %v3386 = vpow.pop %v3385
    %v3387 = vmul.f32 %v3384, 1.442695
    %v3388 = vpow.pop %v3387
    %v3389 = vsel %vm394, %v3386, 0.0
    %3390 = vadd.xlane.f32.xlu0 %v3389
    %v3391 = vpop.xlane.xlu0 %3390
    %v3392 = vsel %vm394, %v3388, 0.0
    %3393 = vadd.xlane.f32.xlu0 %v3392
    %v3394 = vpop.xlane.xlu0 %3393
    %v3395 = vrcp.pop %v3391
    %v3396 = vrcp.pop %v3394
    %v3397 = vmul.f32 %v3386, %v3395
    %v3398 = vmul.f32 %v3388, %v3396
    %3399 = vrot.lane.b32.xlu0 %v2678, 104
    %v3400 = vpop.permute.xlu0 %3399
    %3401 = vrot.lane.b32.xlu0 %v2683, 104
    %v3402 = vpop.permute.xlu0 %3401
    %v3406 = vsel %vm394, %v3397, 0
    %v3409 = vsel %vm394, %v3398, 0
    %3411 = vmatprep.subr.mxu0 0.0
    %3412 = vmatpush1.msra.mxu0 %v3400
    %3413 = vmatprep.subr.mxu0 0.0
    %3414 = vmatpush1.msra.mxu0 %v3402
    %3415 = vmatprep.subr.mxu0 0.0
    %3416 = vmatpush1.msra.mxu0 0.0
    %3417 = vmatprep.subr.mxu0 0.0
    %3418 = vmatpush1.msra.mxu0 0.0
    %3419 = vmatprep.subr.mxu0 0.0
    %3420 = vmatpush1.msra.mxu0 0.0
    %3421 = vmatprep.subr.mxu0 0.0
    %3422 = vmatpush1.msra.mxu0 0.0
    %3423 = vmatprep.subr.mxu0 0.0
    %3424 = vmatpush1.msra.mxu0 0.0
    %3425 = vmatprep.subr.mxu0 0.0
    %3426 = vmatpush1.msra.mxu0 0.0
    %3427 = vmatprep.subr.mxu0 0.0
    %3428 = vmatpush1.msra.mxu0 0.0
    %3429 = vmatprep.subr.mxu0 0.0
    %3430 = vmatpush1.msra.mxu0 0.0
    %3431 = vmatprep.subr.mxu0 0.0
    %3432 = vmatpush1.msra.mxu0 0.0
    %3433 = vmatprep.subr.mxu0 0.0
    %3434 = vmatpush1.msra.mxu0 0.0
    %3435 = vmatprep.subr.mxu0 0.0
    %3436 = vmatpush1.msra.mxu0 0.0
    %3437 = vmatprep.subr.mxu0 0.0
    %3438 = vmatpush1.msra.mxu0 0.0
    %3439 = vmatprep.subr.mxu0 0.0
    %3440 = vmatpush1.msra.mxu0 0.0
    %3441 = vmatprep.subr.mxu0 0.0
    %3442 = vmatpush1.msra.mxu0 0.0
    %3443 = vmatprep.subr.mxu0 0.0
    %3444 = vmatpush1.msra.mxu0 0.0
    %3445 = vmatprep.subr.mxu0 0.0
    %3446 = vmatpush1.msra.mxu0 0.0
    %3447 = vmatprep.subr.mxu0 0.0
    %3448 = vmatpush1.msra.mxu0 0.0
    %3449 = vmatprep.subr.mxu0 0.0
    %3450 = vmatpush1.msra.mxu0 0.0
    %3451 = vmatprep.subr.mxu0 0.0
    %3452 = vmatpush1.msra.mxu0 0.0
    %3453 = vmatprep.subr.mxu0 0.0
    %3454 = vmatpush1.msra.mxu0 0.0
    %3455 = vmatprep.subr.mxu0 0.0
    %3456 = vmatpush1.msra.mxu0 0.0
    %3457 = vmatprep.subr.mxu0 0.0
    %3458 = vmatpush1.msra.mxu0 0.0
    %3459 = vmatprep.subr.mxu0 0.0
    %3460 = vmatpush1.msra.mxu0 0.0
    %3461 = vmatprep.subr.mxu0 0.0
    %3462 = vmatpush1.msra.mxu0 0.0
    %3463 = vmatprep.subr.mxu0 0.0
    %3464 = vmatpush1.msra.mxu0 0.0
    %3465 = vmatprep.subr.mxu0 0.0
    %3466 = vmatpush1.msra.mxu0 0.0
    %3467 = vmatprep.subr.mxu0 0.0
    %3468 = vmatpush1.msra.mxu0 0.0
    %3469 = vmatprep.subr.mxu0 0.0
    %3470 = vmatpush1.msra.mxu0 0.0
    %3471 = vmatprep.subr.mxu0 0.0
    %3472 = vmatpush1.msra.mxu0 0.0
    %3473 = vmatprep.subr.mxu0 0.0
    %3474 = vmatpush1.msra.mxu0 0.0
    %3475 = vmatprep.mubr.f32.mxu0 0.0
    %3476 = vmatmul.mubr.f32.gmra.mrb[0].mxu0 %v3406
    %v3477 = vpop.f32.mrb[0].mxu0
    %v3478 = vadd.f32 0.0, %v3477
    %v3479 = vpop.f32.mrb[0].mxu0
    %3480 = vmatprep.mubr.f32.mxu0 0.0
    %3481 = vmatmul.mubr.f32.gmra.mrb[0].mxu0 %v3409
    %v3482 = vpop.f32.mrb[0].mxu0
    %v3483 = vadd.f32 0.0, %v3482
    %v3484 = vpop.f32.mrb[0].mxu0
    %3485 = vdwg.mxu0
    %3488 = vrot.lane.b32.xlu0 %v3074, 8
    %v3489 = vpop.permute.xlu0 %3488
    %3490 = vrot.lane.b32.xlu0 %v3079, 8
    %v3491 = vpop.permute.xlu0 %3490
    %3496 = vrot.lane.b32.xlu0 %v3276, 16
    %v3497 = vpop.permute.xlu0 %3496
    %3498 = vrot.lane.b32.xlu0 %v3281, 16
    %v3499 = vpop.permute.xlu0 %3498
    %3504 = vrot.lane.b32.xlu0 %v3478, 24
    %v3505 = vpop.permute.xlu0 %3504
    %3506 = vrot.lane.b32.xlu0 %v3483, 24
    %v3507 = vpop.permute.xlu0 %3506
    %v3510 = vsel %vm726, %v2870, %v3489
    %v3511 = vsel %vm726, %v2875, %v3491
    %v3512 = vsel %vm394, %v3510, %v3497
    %v3513 = vsel %vm394, %v3511, %v3499
    %v3514 = vsel %vm1401, %v3512, %v3505
    %v3515 = vsel %vm1401, %v3513, %v3507
    %v3517 = vlaneseq
    %v3518 = vshrl.u32 %v3517, 7
    %v3519 = vsub.s32 0, %v3518
    %v3520 = vrot.slane %v383, %v3519
    %v3523 = vsel %vm482, %v3514, 0
    %v3526 = vsel %vm482, %v3515, 0
    %3528 = vmatprep.subr.mxu0 0.0
    %3529 = vmatpush1.msra.mxu0 %v379
    %3530 = vmatprep.subr.mxu0 0.0
    %3531 = vmatpush1.msra.mxu0 %v380
    %3532 = vmatprep.subr.mxu0 0.0
    %3533 = vmatpush1.msra.mxu0 %v381
    %3534 = vmatprep.subr.mxu0 0.0
    %3535 = vmatpush1.msra.mxu0 %v382
    %3536 = vmatprep.subr.mxu0 0.0
    %3537 = vmatpush1.msra.mxu0 0.0
    %3538 = vmatprep.subr.mxu0 0.0
    %3539 = vmatpush1.msra.mxu0 0.0
    %3540 = vmatprep.subr.mxu0 0.0
    %3541 = vmatpush1.msra.mxu0 0.0
    %3542 = vmatprep.subr.mxu0 0.0
    %3543 = vmatpush1.msra.mxu0 0.0
    %3544 = vmatprep.subr.mxu0 0.0
    %3545 = vmatpush1.msra.mxu0 0.0
    %3546 = vmatprep.subr.mxu0 0.0
    %3547 = vmatpush1.msra.mxu0 0.0
    %3548 = vmatprep.subr.mxu0 0.0
    %3549 = vmatpush1.msra.mxu0 0.0
    %3550 = vmatprep.subr.mxu0 0.0
    %3551 = vmatpush1.msra.mxu0 0.0
    %3552 = vmatprep.subr.mxu0 0.0
    %3553 = vmatpush1.msra.mxu0 0.0
    %3554 = vmatprep.subr.mxu0 0.0
    %3555 = vmatpush1.msra.mxu0 0.0
    %3556 = vmatprep.subr.mxu0 0.0
    %3557 = vmatpush1.msra.mxu0 0.0
    %3558 = vmatprep.subr.mxu0 0.0
    %3559 = vmatpush1.msra.mxu0 0.0
    %3560 = vmatprep.subr.mxu0 0.0
    %3561 = vmatpush1.msra.mxu0 0.0
    %3562 = vmatprep.subr.mxu0 0.0
    %3563 = vmatpush1.msra.mxu0 0.0
    %3564 = vmatprep.subr.mxu0 0.0
    %3565 = vmatpush1.msra.mxu0 0.0
    %3566 = vmatprep.subr.mxu0 0.0
    %3567 = vmatpush1.msra.mxu0 0.0
    %3568 = vmatprep.subr.mxu0 0.0
    %3569 = vmatpush1.msra.mxu0 0.0
    %3570 = vmatprep.subr.mxu0 0.0
    %3571 = vmatpush1.msra.mxu0 0.0
    %3572 = vmatprep.subr.mxu0 0.0
    %3573 = vmatpush1.msra.mxu0 0.0
    %3574 = vmatprep.subr.mxu0 0.0
    %3575 = vmatpush1.msra.mxu0 0.0
    %3576 = vmatprep.subr.mxu0 0.0
    %3577 = vmatpush1.msra.mxu0 0.0
    %3578 = vmatprep.subr.mxu0 0.0
    %3579 = vmatpush1.msra.mxu0 0.0
    %3580 = vmatprep.subr.mxu0 0.0
    %3581 = vmatpush1.msra.mxu0 0.0
    %3582 = vmatprep.subr.mxu0 0.0
    %3583 = vmatpush1.msra.mxu0 0.0
    %3584 = vmatprep.subr.mxu0 0.0
    %3585 = vmatpush1.msra.mxu0 0.0
    %3586 = vmatprep.subr.mxu0 0.0
    %3587 = vmatpush1.msra.mxu0 0.0
    %3588 = vmatprep.subr.mxu0 0.0
    %3589 = vmatpush1.msra.mxu0 0.0
    %3590 = vmatprep.subr.mxu0 0.0
    %3591 = vmatpush1.msra.mxu0 0.0
    %3592 = vmatprep.mubr.f32.mxu0 0.0
    %3593 = vmatmul.mubr.f32.gmra.mrb[0].mxu0 %v3523
    %v3594 = vpop.f32.mrb[0].mxu0
    %v3595 = vadd.f32 %v3520, %v3594
    %v3596 = vpop.f32.mrb[0].mxu0
    %3597 = vmatprep.mubr.f32.mxu0 0.0
    %3598 = vmatmul.mubr.f32.gmra.mrb[0].mxu0 %v3526
    %v3599 = vpop.f32.mrb[0].mxu0
    %v3600 = vadd.f32 %v3520, %v3599
    %v3601 = vpop.f32.mrb[0].mxu0
    %3602 = vdwg.mxu0
    %3605 = vrot.lane.b32.xlu0 %v3595, 32
    %v3606 = vpop.permute.xlu0 %3605
    %3607 = vrot.lane.b32.xlu0 %v3600, 32
    %v3608 = vpop.permute.xlu0 %3607
    %v3611 = vsel %vm482, %v2429, %v3606
    %v3612 = vsel %vm482, %v2430, %v3608
    %3613 = vst.msk [vmem:[#allocation32] sm:$0xff] %vm2305, %v3611
    %3614 = vst.msk [vmem:[#allocation32 + $0x8] sm:$0xff] %vm2305, %v3612
    // Predicated region
    $region190: #{tpu_custom_call.1} parent=1 // pred_check
      _
    $region191: #{tpu_custom_call.1} parent=1 // pred_check_branch
      %3616 = sbr.rel (0) target = $region193
    $region192: #{tpu_custom_call.1} parent=1 // pred_region
      %s3618 = ssub.s32 256, 256
      %3619 = vsyncadd [#allocation4], %s3618
      %s3620 = sshll.u32 [#allocation32], 4
      %s3621 = int_to_ptr.vmem [resolvable:$true] %s3620
      %3626 = dma.vmem_to_hbm [thread:$0]  %s3621, 256, %s28, [#allocation4], 128, 128, 8
    $region193: #{tpu_custom_call.1} parent=1 // pred_fallthru
      _
    // Predicated region
    $region194: #{tpu_custom_call.1} parent=1 // pred_check
      _
    $region195: #{tpu_custom_call.1} parent=1 // pred_check_branch
      %3628 = sbr.rel (0) target = $region197
    $region196: #{tpu_custom_call.1} parent=1 // pred_region
      %3629 = dma.done [#allocation4], 256
    $region197: #{tpu_custom_call.1} parent=1 // pred_fallthru
      _
    %3630 = vsyncpa [#allocation3], 1
    %3631 = vsyncpa [#allocation6], 1
    %3632 = vsyncpa [#allocation9], 1
    %3633 = vsyncpa [#allocation12], 1
    %3634 = vsyncpa [#allocation15], 1
    %3635 = vsyncpa [#allocation18], 1
    %3636 = vsyncpa [#allocation21], 1
    %3637 = vsyncpa [#allocation24], 1
    %3638 = vsyncpa [#allocation27], 1
    %3639 = vsyncpa [#allocation30], 1
    %3640 = vsyncpa [#allocation4], 1

</llo_original>
